<compile_context>
chip_gen: v7x
topology: tpu7x:2x2x1
jax: 0.10.0
libtpu: 0.0.40
codegen_flags: <defaults>
</compile_context>

<pallas_src>
import functools

import jax
import jax.numpy as jnp
import numpy as np
from jax import lax
from jax.experimental import pallas as pl
from jax.experimental.pallas import tpu as pltpu

KSIZE = 3  # kernel_size of default_conv


# ----------------------------- fused Pallas kernel ----------------------------- #

def _rfcab_kernel(x_ref, m_ref, w1_ref, b1_ref, w2_ref, b2_ref,
                  wdt_ref, bd_ref, wut_ref, bu_ref, o_ref, *, W):
    """block_b images: conv3x3+ReLU -> conv3x3 -> channel attention -> + residual.

    Activations are channels-major, spatial-flattened (C, H*W): the lane dim is H*W
    (lane-dense, multiple of 128 here).  A 3x3 tap at offset (oy, ox) is a lane rotation
    of the flattened row by -(oy*W + ox) (pltpu.roll -> XLU slot), with image-boundary
    wrap killed by precomputed masks.  Masks depend only on the output position, so the
    vertical ones commute with the channel contraction and are applied after the dot.
    """
    Bt, C, HW = x_ref.shape

    m = m_ref[...]                 # (4, HW) f32 {0,1}
    h_m1 = m[0:1, :]               # valid where w >= 1      (ox = -1)
    h_p1 = m[1:2, :]               # valid where w <= W-2    (ox = +1)
    v_m1 = m[2:3, :]               # valid where h >= 1      (oy = -1)
    v_p1 = m[3:4, :]               # valid where h <= H-2    (oy = +1)

    def conv3x3(src, w_ref, b_ref):
        # src: (C, HW) f32 -> (C, HW) f32.  Nine accumulating (C,C)@(C,HW) bf16 MXU dots.
        # Horizontal tap variants (mask-before-dot == 'SAME' zero padding), built once and
        # reused by all three vertical groups.
        srcs = {
            -1: h_m1 * pltpu.roll(src, 1, axis=1),        # tap[p] = src[p-1]
             0: src,
            +1: h_p1 * pltpu.roll(src, HW - 1, axis=1),   # tap[p] = src[p+1]
        }

        def oy_group(oy):
            out = None
            for ox in (-1, 0, 1):
                tap = srcs[ox]
                if oy != 0:
                    tap = pltpu.roll(tap, (-oy * W) % HW, axis=1)   # shift by -oy*W
                k = (oy + 1) * KSIZE + (ox + 1)
                d = jnp.dot(w_ref[k], tap.astype(jnp.bfloat16),
                            preferred_element_type=jnp.float32)
                out = d if out is None else out + d
            return out

        # Vertical wrap of the oy = +-1 groups is invalid in the first/last image row.
        return (oy_group(0) + v_m1 * oy_group(-1) + v_p1 * oy_group(1)) + b_ref[...]

    inv_hw = 1.0 / HW
    for b in range(Bt):                                        # static, small block_b
        x = x_ref[b]                                           # (C, HW)
        y1 = jnp.maximum(conv3x3(x, w1_ref, b1_ref), 0.0)      # conv1 + bias + ReLU
        y2 = conv3x3(y1, w2_ref, b2_ref)                       # conv2 + bias

        # Channel attention: GAP -> 1x1 reduce -> ReLU -> 1x1 expand -> sigmoid.
        pooled = jnp.sum(y2, axis=1, keepdims=True) * inv_hw   # (C, 1)
        z = jnp.maximum(
            jnp.dot(wdt_ref[...], pooled.astype(jnp.bfloat16),
                    preferred_element_type=jnp.float32) + bd_ref[...], 0.0)
        att = jax.nn.sigmoid(
            jnp.dot(wut_ref[...], z.astype(jnp.bfloat16),
                    preferred_element_type=jnp.float32) + bu_ref[...])   # (C, 1)

        # Channel-wise scale + residual; lane-dense (C, HW) store.
        o_ref[b] = y2 * att + x


# ----------------------------------- wrapper ----------------------------------- #

def rfcab_forward(x_nchw, params, *, block_b=None):
    """RFCAB forward. x_nchw: (B, C, H, W) f32 -> (B, C, H, W) f32 (NCHW native)."""
    w1, b1, w2, b2, wd, bd, wu, bu = params
    B, C, H, W = x_nchw.shape
    HW = H * W
    Cr = wd.shape[1]

    if block_b is None:
        block_b = 2 if B % 2 == 0 else 1          # amortize the per-grid-step overhead
    assert B % block_b == 0, "batch must be divisible by block_b"

    x2 = x_nchw.reshape(B, C, HW)                 # free reshape, no transpose / pad passes

    # Conv weights HWIO (3,3,Cin,Cout) -> per-tap (9, Cout, Cin), bf16 MXU operands.
    # (Torch (Cout,Cin,kH,kW) weights map to HWIO via permute(2,3,1,0).)
    w1t = jnp.transpose(w1, (0, 1, 3, 2)).reshape(KSIZE * KSIZE, C, C).astype(jnp.bfloat16)
    w2t = jnp.transpose(w2, (0, 1, 3, 2)).reshape(KSIZE * KSIZE, C, C).astype(jnp.bfloat16)
    wdt = wd.T.astype(jnp.bfloat16)               # (Cr, C)
    wut = wu.T.astype(jnp.bfloat16)               # (C, Cr)

    # {0,1} validity masks over the flattened spatial axis for the 4 boundary directions.
    col = jnp.tile(jnp.arange(W), H)
    row = jnp.repeat(jnp.arange(H), W)
    masks = jnp.stack([col >= 1, col <= W - 2,
                       row >= 1, row <= H - 2]).astype(jnp.float32)      # (4, HW)

    kernel = functools.partial(_rfcab_kernel, W=W)
    out = pl.pallas_call(
        kernel,
        out_shape=jax.ShapeDtypeStruct((B, C, HW), jnp.float32),
        grid_spec=pltpu.PrefetchScalarGridSpec(
            num_scalar_prefetch=0,
            grid=(B // block_b,),
            in_specs=[
                pl.BlockSpec((block_b, C, HW), lambda i: (i, 0, 0)),         # x
                pl.BlockSpec((4, HW), lambda i: (0, 0)),                     # boundary masks
                pl.BlockSpec((KSIZE * KSIZE, C, C), lambda i: (0, 0, 0)),    # w1 per-tap bf16
                pl.BlockSpec((C, 1), lambda i: (0, 0)),                      # b1
                pl.BlockSpec((KSIZE * KSIZE, C, C), lambda i: (0, 0, 0)),    # w2 per-tap bf16
                pl.BlockSpec((C, 1), lambda i: (0, 0)),                      # b2
                pl.BlockSpec((Cr, C), lambda i: (0, 0)),                     # CA reduce w^T
                pl.BlockSpec((Cr, 1), lambda i: (0, 0)),                     # CA reduce bias
                pl.BlockSpec((C, Cr), lambda i: (0, 0)),                     # CA expand w^T
                pl.BlockSpec((C, 1), lambda i: (0, 0)),                      # CA expand bias
            ],
            out_specs=pl.BlockSpec((block_b, C, HW), lambda i: (i, 0, 0)),
        ),
        compiler_params=pltpu.CompilerParams(
            dimension_semantics=("parallel",),     # batch blocks shard across TensorCores
        ),
    )(x2, masks, w1t, b1.reshape(C, 1), w2t, b2.reshape(C, 1),
      wdt, bd.reshape(Cr, 1), wut, bu.reshape(C, 1))

    return out.reshape(B, C, H, W)


# ----------------------------- plain-JAX reference ----------------------------- #

def rfcab_reference(x_nchw, params):
    """Reference with matched precision: bf16 matmul/conv operands, f32 accumulate."""
    w1, b1, w2, b2, wd, bd, wu, bu = params
    dn = ('NCHW', 'HWIO', 'NCHW')
    bf = jnp.bfloat16
    y = lax.conv_general_dilated(x_nchw.astype(bf), w1.astype(bf), (1, 1), 'SAME',
                                 dimension_numbers=dn, preferred_element_type=jnp.float32)
    y = jnp.maximum(y + b1[None, :, None, None], 0.0)
    y = lax.conv_general_dilated(y.astype(bf), w2.astype(bf), (1, 1), 'SAME',
                                 dimension_numbers=dn, preferred_element_type=jnp.float32)
    y = y + b2[None, :, None, None]
    pooled = jnp.mean(y, axis=(2, 3))                                     # (B, C)
    z = jnp.maximum(jnp.dot(pooled.astype(bf), wd.astype(bf),
                            preferred_element_type=jnp.float32) + bd, 0.0)
    att = jax.nn.sigmoid(jnp.dot(z.astype(bf), wu.astype(bf),
                                 preferred_element_type=jnp.float32) + bu)
    return y * att[:, :, None, None] + x_nchw


# ------------------------------------- main ------------------------------------ #

if __name__ == "__main__":
    B, C, H, W = 4, 16, 16, 16        # small n_feat / spatial smoke test (block_b=2, grid=2)
    reduction = 4                     # CA bottleneck = C // reduction
    Cr = C // reduction

    key = jax.random.PRNGKey(0)
    ks = jax.random.split(key, 9)

    # Deterministic synthetic parameters (conv weights in HWIO layout).
    w1 = 0.1 * jax.random.normal(ks[0], (KSIZE, KSIZE, C, C), jnp.float32)
    b1 = 0.1 * jax.random.normal(ks[1], (C,), jnp.float32)
    w2 = 0.1 * jax.random.normal(ks[2], (KSIZE, KSIZE, C, C), jnp.float32)
    b2 = 0.1 * jax.random.normal(ks[3], (C,), jnp.float32)
    wd = 0.1 * jax.random.normal(ks[4], (C, Cr), jnp.float32)   # 1x1 reduce
    bd = 0.1 * jax.random.normal(ks[5], (Cr,), jnp.float32)
    wu = 0.1 * jax.random.normal(ks[6], (Cr, C), jnp.float32)   # 1x1 expand
    bu = 0.1 * jax.random.normal(ks[7], (C,), jnp.float32)
    params = (w1, b1, w2, b2, wd, bd, wu, bu)

    x = jax.random.normal(ks[8], (B, C, H, W), jnp.float32)     # PyTorch-style NCHW input

    out = jax.block_until_ready(jax.jit(rfcab_forward)(x, params))
    ref = jax.block_until_ready(rfcab_reference(x, params))

    assert out.shape == (B, C, H, W)
    o = np.asarray(out)
    r = np.asarray(ref)
    # Both pipelines use bf16 operands / f32 accumulation; they can still round the bf16
    # intermediate activation to adjacent values (1 bf16 ulp) on rare boundary cases, so the
    # elementwise bound is loose-ish while the aggregate bound stays tight.
    np.testing.assert_allclose(o, r, rtol=2e-2, atol=2e-2)
    assert float(np.mean(np.abs(o - r))) < 1e-3

    print("KERNEL_OK")
</pallas_src>

<mosaic_0001>
module attributes {stable_mosaic.version = 11 : i64} {
  func.func @_rfcab_kernel(%arg0: i32, %arg1: memref<2x16x256xf32, #tpu.memory_space<vmem>>, %arg2: memref<4x256xf32, #tpu.memory_space<vmem>>, %arg3: memref<9x16x16xbf16, #tpu.memory_space<vmem>>, %arg4: memref<16x1xf32, #tpu.memory_space<vmem>>, %arg5: memref<9x16x16xbf16, #tpu.memory_space<vmem>>, %arg6: memref<16x1xf32, #tpu.memory_space<vmem>>, %arg7: memref<4x16xbf16, #tpu.memory_space<vmem>>, %arg8: memref<4x1xf32, #tpu.memory_space<vmem>>, %arg9: memref<16x4xbf16, #tpu.memory_space<vmem>>, %arg10: memref<16x1xf32, #tpu.memory_space<vmem>>, %arg11: memref<2x16x256xf32, #tpu.memory_space<vmem>>) attributes {dimension_semantics = [#tpu.dimension_semantics<parallel>], iteration_bounds = array<i64: 2>, scalar_prefetch = 0 : i64, scratch_operands = 0 : i64, tpu.core_type = #tpu.core_type<tc>, window_params = [{transform_indices = @transform_0, window_bounds = array<i64: 2, 16, 256>}, {pipeline_mode = #tpu.pipeline_mode<synchronous>, transform_indices = @transform_1, window_bounds = array<i64: 4, 256>}, {pipeline_mode = #tpu.pipeline_mode<synchronous>, transform_indices = @transform_2, window_bounds = array<i64: 9, 16, 16>}, {pipeline_mode = #tpu.pipeline_mode<synchronous>, transform_indices = @transform_3, window_bounds = array<i64: 16, 1>}, {pipeline_mode = #tpu.pipeline_mode<synchronous>, transform_indices = @transform_4, window_bounds = array<i64: 9, 16, 16>}, {pipeline_mode = #tpu.pipeline_mode<synchronous>, transform_indices = @transform_5, window_bounds = array<i64: 16, 1>}, {pipeline_mode = #tpu.pipeline_mode<synchronous>, transform_indices = @transform_6, window_bounds = array<i64: 4, 16>}, {pipeline_mode = #tpu.pipeline_mode<synchronous>, transform_indices = @transform_7, window_bounds = array<i64: 4, 1>}, {pipeline_mode = #tpu.pipeline_mode<synchronous>, transform_indices = @transform_8, window_bounds = array<i64: 16, 4>}, {pipeline_mode = #tpu.pipeline_mode<synchronous>, transform_indices = @transform_9, window_bounds = array<i64: 16, 1>}, {transform_indices = @transform_10, window_bounds = array<i64: 2, 16, 256>}]} {
    %c0 = arith.constant 0 : index
    %c0_0 = arith.constant 0 : index
    %0 = vector.load %arg2[%c0, %c0_0] : memref<4x256xf32, #tpu.memory_space<vmem>>, vector<4x256xf32>
    %1 = vector.extract_strided_slice %0 {offsets = [0, 0], sizes = [1, 256], strides = [1, 1]} : vector<4x256xf32> to vector<1x256xf32>
    %2 = vector.extract_strided_slice %0 {offsets = [1, 0], sizes = [1, 256], strides = [1, 1]} : vector<4x256xf32> to vector<1x256xf32>
    %3 = vector.extract_strided_slice %0 {offsets = [2, 0], sizes = [1, 256], strides = [1, 1]} : vector<4x256xf32> to vector<1x256xf32>
    %4 = vector.extract_strided_slice %0 {offsets = [3, 0], sizes = [1, 256], strides = [1, 1]} : vector<4x256xf32> to vector<1x256xf32>
    %c0_1 = arith.constant 0 : index
    %c0_2 = arith.constant 0 : index
    %c0_3 = arith.constant 0 : index
    %5 = vector.load %arg1[%c0_1, %c0_2, %c0_3] : memref<2x16x256xf32, #tpu.memory_space<vmem>>, vector<1x16x256xf32>
    %6 = vector.shape_cast %5 : vector<1x16x256xf32> to vector<16x256xf32>
    %c1_i32 = arith.constant 1 : i32
    %7 = tpu.dynamic_rotate %6 by %c1_i32 dim 1 : vector<16x256xf32>, i32 -> vector<16x256xf32>
    %8 = vector.broadcast %1 : vector<1x256xf32> to vector<16x256xf32>
    %9 = arith.mulf %8, %7 : vector<16x256xf32>
    %c255_i32 = arith.constant 255 : i32
    %10 = tpu.dynamic_rotate %6 by %c255_i32 dim 1 : vector<16x256xf32>, i32 -> vector<16x256xf32>
    %11 = vector.broadcast %2 : vector<1x256xf32> to vector<16x256xf32>
    %12 = arith.mulf %11, %10 : vector<16x256xf32>
    %c3 = arith.constant 3 : index
    %c0_4 = arith.constant 0 : index
    %c0_5 = arith.constant 0 : index
    %13 = vector.load %arg3[%c3, %c0_4, %c0_5] : memref<9x16x16xbf16, #tpu.memory_space<vmem>>, vector<1x16x16xbf16>
    %14 = vector.shape_cast %13 : vector<1x16x16xbf16> to vector<16x16xbf16>
    %15 = arith.truncf %9 : vector<16x256xf32> to vector<16x256xbf16>
    %cst = arith.constant dense<0.000000e+00> : vector<16x256xf32>
    %16 = tpu.matmul %14, %15, %cst {dimension_numbers = #tpu.dot_dimension_numbers<[1], [0], [0], [1], [0, 0, 1, 1], [], []>} : vector<16x16xbf16>, vector<16x256xbf16>, vector<16x256xf32> -> vector<16x256xf32>
    %c4 = arith.constant 4 : index
    %c0_6 = arith.constant 0 : index
    %c0_7 = arith.constant 0 : index
    %17 = vector.load %arg3[%c4, %c0_6, %c0_7] : memref<9x16x16xbf16, #tpu.memory_space<vmem>>, vector<1x16x16xbf16>
    %18 = vector.shape_cast %17 : vector<1x16x16xbf16> to vector<16x16xbf16>
    %19 = arith.truncf %6 : vector<16x256xf32> to vector<16x256xbf16>
    %cst_8 = arith.constant dense<0.000000e+00> : vector<16x256xf32>
    %20 = tpu.matmul %18, %19, %cst_8 {dimension_numbers = #tpu.dot_dimension_numbers<[1], [0], [0], [1], [0, 0, 1, 1], [], []>} : vector<16x16xbf16>, vector<16x256xbf16>, vector<16x256xf32> -> vector<16x256xf32>
    %21 = arith.addf %16, %20 : vector<16x256xf32>
    %c5 = arith.constant 5 : index
    %c0_9 = arith.constant 0 : index
    %c0_10 = arith.constant 0 : index
    %22 = vector.load %arg3[%c5, %c0_9, %c0_10] : memref<9x16x16xbf16, #tpu.memory_space<vmem>>, vector<1x16x16xbf16>
    %23 = vector.shape_cast %22 : vector<1x16x16xbf16> to vector<16x16xbf16>
    %24 = arith.truncf %12 : vector<16x256xf32> to vector<16x256xbf16>
    %cst_11 = arith.constant dense<0.000000e+00> : vector<16x256xf32>
    %25 = tpu.matmul %23, %24, %cst_11 {dimension_numbers = #tpu.dot_dimension_numbers<[1], [0], [0], [1], [0, 0, 1, 1], [], []>} : vector<16x16xbf16>, vector<16x256xbf16>, vector<16x256xf32> -> vector<16x256xf32>
    %26 = arith.addf %21, %25 : vector<16x256xf32>
    %c16_i32 = arith.constant 16 : i32
    %27 = tpu.dynamic_rotate %9 by %c16_i32 dim 1 : vector<16x256xf32>, i32 -> vector<16x256xf32>
    %c0_12 = arith.constant 0 : index
    %c0_13 = arith.constant 0 : index
    %c0_14 = arith.constant 0 : index
    %28 = vector.load %arg3[%c0_12, %c0_13, %c0_14] : memref<9x16x16xbf16, #tpu.memory_space<vmem>>, vector<1x16x16xbf16>
    %29 = vector.shape_cast %28 : vector<1x16x16xbf16> to vector<16x16xbf16>
    %30 = arith.truncf %27 : vector<16x256xf32> to vector<16x256xbf16>
    %cst_15 = arith.constant dense<0.000000e+00> : vector<16x256xf32>
    %31 = tpu.matmul %29, %30, %cst_15 {dimension_numbers = #tpu.dot_dimension_numbers<[1], [0], [0], [1], [0, 0, 1, 1], [], []>} : vector<16x16xbf16>, vector<16x256xbf16>, vector<16x256xf32> -> vector<16x256xf32>
    %c16_i32_16 = arith.constant 16 : i32
    %32 = tpu.dynamic_rotate %6 by %c16_i32_16 dim 1 : vector<16x256xf32>, i32 -> vector<16x256xf32>
    %c1 = arith.constant 1 : index
    %c0_17 = arith.constant 0 : index
    %c0_18 = arith.constant 0 : index
    %33 = vector.load %arg3[%c1, %c0_17, %c0_18] : memref<9x16x16xbf16, #tpu.memory_space<vmem>>, vector<1x16x16xbf16>
    %34 = vector.shape_cast %33 : vector<1x16x16xbf16> to vector<16x16xbf16>
    %35 = arith.truncf %32 : vector<16x256xf32> to vector<16x256xbf16>
    %cst_19 = arith.constant dense<0.000000e+00> : vector<16x256xf32>
    %36 = tpu.matmul %34, %35, %cst_19 {dimension_numbers = #tpu.dot_dimension_numbers<[1], [0], [0], [1], [0, 0, 1, 1], [], []>} : vector<16x16xbf16>, vector<16x256xbf16>, vector<16x256xf32> -> vector<16x256xf32>
    %37 = arith.addf %31, %36 : vector<16x256xf32>
    %c16_i32_20 = arith.constant 16 : i32
    %38 = tpu.dynamic_rotate %12 by %c16_i32_20 dim 1 : vector<16x256xf32>, i32 -> vector<16x256xf32>
    %c2 = arith.constant 2 : index
    %c0_21 = arith.constant 0 : index
    %c0_22 = arith.constant 0 : index
    %39 = vector.load %arg3[%c2, %c0_21, %c0_22] : memref<9x16x16xbf16, #tpu.memory_space<vmem>>, vector<1x16x16xbf16>
    %40 = vector.shape_cast %39 : vector<1x16x16xbf16> to vector<16x16xbf16>
    %41 = arith.truncf %38 : vector<16x256xf32> to vector<16x256xbf16>
    %cst_23 = arith.constant dense<0.000000e+00> : vector<16x256xf32>
    %42 = tpu.matmul %40, %41, %cst_23 {dimension_numbers = #tpu.dot_dimension_numbers<[1], [0], [0], [1], [0, 0, 1, 1], [], []>} : vector<16x16xbf16>, vector<16x256xbf16>, vector<16x256xf32> -> vector<16x256xf32>
    %43 = arith.addf %37, %42 : vector<16x256xf32>
    %44 = vector.broadcast %3 : vector<1x256xf32> to vector<16x256xf32>
    %45 = arith.mulf %44, %43 : vector<16x256xf32>
    %46 = arith.addf %26, %45 : vector<16x256xf32>
    %c240_i32 = arith.constant 240 : i32
    %47 = tpu.dynamic_rotate %9 by %c240_i32 dim 1 : vector<16x256xf32>, i32 -> vector<16x256xf32>
    %c6 = arith.constant 6 : index
    %c0_24 = arith.constant 0 : index
    %c0_25 = arith.constant 0 : index
    %48 = vector.load %arg3[%c6, %c0_24, %c0_25] : memref<9x16x16xbf16, #tpu.memory_space<vmem>>, vector<1x16x16xbf16>
    %49 = vector.shape_cast %48 : vector<1x16x16xbf16> to vector<16x16xbf16>
    %50 = arith.truncf %47 : vector<16x256xf32> to vector<16x256xbf16>
    %cst_26 = arith.constant dense<0.000000e+00> : vector<16x256xf32>
    %51 = tpu.matmul %49, %50, %cst_26 {dimension_numbers = #tpu.dot_dimension_numbers<[1], [0], [0], [1], [0, 0, 1, 1], [], []>} : vector<16x16xbf16>, vector<16x256xbf16>, vector<16x256xf32> -> vector<16x256xf32>
    %c240_i32_27 = arith.constant 240 : i32
    %52 = tpu.dynamic_rotate %6 by %c240_i32_27 dim 1 : vector<16x256xf32>, i32 -> vector<16x256xf32>
    %c7 = arith.constant 7 : index
    %c0_28 = arith.constant 0 : index
    %c0_29 = arith.constant 0 : index
    %53 = vector.load %arg3[%c7, %c0_28, %c0_29] : memref<9x16x16xbf16, #tpu.memory_space<vmem>>, vector<1x16x16xbf16>
    %54 = vector.shape_cast %53 : vector<1x16x16xbf16> to vector<16x16xbf16>
    %55 = arith.truncf %52 : vector<16x256xf32> to vector<16x256xbf16>
    %cst_30 = arith.constant dense<0.000000e+00> : vector<16x256xf32>
    %56 = tpu.matmul %54, %55, %cst_30 {dimension_numbers = #tpu.dot_dimension_numbers<[1], [0], [0], [1], [0, 0, 1, 1], [], []>} : vector<16x16xbf16>, vector<16x256xbf16>, vector<16x256xf32> -> vector<16x256xf32>
    %57 = arith.addf %51, %56 : vector<16x256xf32>
    %c240_i32_31 = arith.constant 240 : i32
    %58 = tpu.dynamic_rotate %12 by %c240_i32_31 dim 1 : vector<16x256xf32>, i32 -> vector<16x256xf32>
    %c8 = arith.constant 8 : index
    %c0_32 = arith.constant 0 : index
    %c0_33 = arith.constant 0 : index
    %59 = vector.load %arg3[%c8, %c0_32, %c0_33] : memref<9x16x16xbf16, #tpu.memory_space<vmem>>, vector<1x16x16xbf16>
    %60 = vector.shape_cast %59 : vector<1x16x16xbf16> to vector<16x16xbf16>
    %61 = arith.truncf %58 : vector<16x256xf32> to vector<16x256xbf16>
    %cst_34 = arith.constant dense<0.000000e+00> : vector<16x256xf32>
    %62 = tpu.matmul %60, %61, %cst_34 {dimension_numbers = #tpu.dot_dimension_numbers<[1], [0], [0], [1], [0, 0, 1, 1], [], []>} : vector<16x16xbf16>, vector<16x256xbf16>, vector<16x256xf32> -> vector<16x256xf32>
    %63 = arith.addf %57, %62 : vector<16x256xf32>
    %64 = vector.broadcast %4 : vector<1x256xf32> to vector<16x256xf32>
    %65 = arith.mulf %64, %63 : vector<16x256xf32>
    %66 = arith.addf %46, %65 : vector<16x256xf32>
    %c0_35 = arith.constant 0 : index
    %c0_36 = arith.constant 0 : index
    %67 = vector.load %arg4[%c0_35, %c0_36] : memref<16x1xf32, #tpu.memory_space<vmem>>, vector<16x1xf32>
    %68 = vector.broadcast %67 : vector<16x1xf32> to vector<16x256xf32>
    %69 = arith.addf %66, %68 : vector<16x256xf32>
    %cst_37 = arith.constant 0.000000e+00 : f32
    %70 = vector.broadcast %cst_37 : f32 to vector<16x256xf32>
    %71 = arith.maximumf %69, %70 : vector<16x256xf32>
    %c1_i32_38 = arith.constant 1 : i32
    %72 = tpu.dynamic_rotate %71 by %c1_i32_38 dim 1 : vector<16x256xf32>, i32 -> vector<16x256xf32>
    %73 = vector.broadcast %1 : vector<1x256xf32> to vector<16x256xf32>
    %74 = arith.mulf %73, %72 : vector<16x256xf32>
    %c255_i32_39 = arith.constant 255 : i32
    %75 = tpu.dynamic_rotate %71 by %c255_i32_39 dim 1 : vector<16x256xf32>, i32 -> vector<16x256xf32>
    %76 = vector.broadcast %2 : vector<1x256xf32> to vector<16x256xf32>
    %77 = arith.mulf %76, %75 : vector<16x256xf32>
    %c3_40 = arith.constant 3 : index
    %c0_41 = arith.constant 0 : index
    %c0_42 = arith.constant 0 : index
    %78 = vector.load %arg5[%c3_40, %c0_41, %c0_42] : memref<9x16x16xbf16, #tpu.memory_space<vmem>>, vector<1x16x16xbf16>
    %79 = vector.shape_cast %78 : vector<1x16x16xbf16> to vector<16x16xbf16>
    %80 = arith.truncf %74 : vector<16x256xf32> to vector<16x256xbf16>
    %cst_43 = arith.constant dense<0.000000e+00> : vector<16x256xf32>
    %81 = tpu.matmul %79, %80, %cst_43 {dimension_numbers = #tpu.dot_dimension_numbers<[1], [0], [0], [1], [0, 0, 1, 1], [], []>} : vector<16x16xbf16>, vector<16x256xbf16>, vector<16x256xf32> -> vector<16x256xf32>
    %c4_44 = arith.constant 4 : index
    %c0_45 = arith.constant 0 : index
    %c0_46 = arith.constant 0 : index
    %82 = vector.load %arg5[%c4_44, %c0_45, %c0_46] : memref<9x16x16xbf16, #tpu.memory_space<vmem>>, vector<1x16x16xbf16>
    %83 = vector.shape_cast %82 : vector<1x16x16xbf16> to vector<16x16xbf16>
    %84 = arith.truncf %71 : vector<16x256xf32> to vector<16x256xbf16>
    %cst_47 = arith.constant dense<0.000000e+00> : vector<16x256xf32>
    %85 = tpu.matmul %83, %84, %cst_47 {dimension_numbers = #tpu.dot_dimension_numbers<[1], [0], [0], [1], [0, 0, 1, 1], [], []>} : vector<16x16xbf16>, vector<16x256xbf16>, vector<16x256xf32> -> vector<16x256xf32>
    %86 = arith.addf %81, %85 : vector<16x256xf32>
    %c5_48 = arith.constant 5 : index
    %c0_49 = arith.constant 0 : index
    %c0_50 = arith.constant 0 : index
    %87 = vector.load %arg5[%c5_48, %c0_49, %c0_50] : memref<9x16x16xbf16, #tpu.memory_space<vmem>>, vector<1x16x16xbf16>
    %88 = vector.shape_cast %87 : vector<1x16x16xbf16> to vector<16x16xbf16>
    %89 = arith.truncf %77 : vector<16x256xf32> to vector<16x256xbf16>
    %cst_51 = arith.constant dense<0.000000e+00> : vector<16x256xf32>
    %90 = tpu.matmul %88, %89, %cst_51 {dimension_numbers = #tpu.dot_dimension_numbers<[1], [0], [0], [1], [0, 0, 1, 1], [], []>} : vector<16x16xbf16>, vector<16x256xbf16>, vector<16x256xf32> -> vector<16x256xf32>
    %91 = arith.addf %86, %90 : vector<16x256xf32>
    %c16_i32_52 = arith.constant 16 : i32
    %92 = tpu.dynamic_rotate %74 by %c16_i32_52 dim 1 : vector<16x256xf32>, i32 -> vector<16x256xf32>
    %c0_53 = arith.constant 0 : index
    %c0_54 = arith.constant 0 : index
    %c0_55 = arith.constant 0 : index
    %93 = vector.load %arg5[%c0_53, %c0_54, %c0_55] : memref<9x16x16xbf16, #tpu.memory_space<vmem>>, vector<1x16x16xbf16>
    %94 = vector.shape_cast %93 : vector<1x16x16xbf16> to vector<16x16xbf16>
    %95 = arith.truncf %92 : vector<16x256xf32> to vector<16x256xbf16>
    %cst_56 = arith.constant dense<0.000000e+00> : vector<16x256xf32>
    %96 = tpu.matmul %94, %95, %cst_56 {dimension_numbers = #tpu.dot_dimension_numbers<[1], [0], [0], [1], [0, 0, 1, 1], [], []>} : vector<16x16xbf16>, vector<16x256xbf16>, vector<16x256xf32> -> vector<16x256xf32>
    %c16_i32_57 = arith.constant 16 : i32
    %97 = tpu.dynamic_rotate %71 by %c16_i32_57 dim 1 : vector<16x256xf32>, i32 -> vector<16x256xf32>
    %c1_58 = arith.constant 1 : index
    %c0_59 = arith.constant 0 : index
    %c0_60 = arith.constant 0 : index
    %98 = vector.load %arg5[%c1_58, %c0_59, %c0_60] : memref<9x16x16xbf16, #tpu.memory_space<vmem>>, vector<1x16x16xbf16>
    %99 = vector.shape_cast %98 : vector<1x16x16xbf16> to vector<16x16xbf16>
    %100 = arith.truncf %97 : vector<16x256xf32> to vector<16x256xbf16>
    %cst_61 = arith.constant dense<0.000000e+00> : vector<16x256xf32>
    %101 = tpu.matmul %99, %100, %cst_61 {dimension_numbers = #tpu.dot_dimension_numbers<[1], [0], [0], [1], [0, 0, 1, 1], [], []>} : vector<16x16xbf16>, vector<16x256xbf16>, vector<16x256xf32> -> vector<16x256xf32>
    %102 = arith.addf %96, %101 : vector<16x256xf32>
    %c16_i32_62 = arith.constant 16 : i32
    %103 = tpu.dynamic_rotate %77 by %c16_i32_62 dim 1 : vector<16x256xf32>, i32 -> vector<16x256xf32>
    %c2_63 = arith.constant 2 : index
    %c0_64 = arith.constant 0 : index
    %c0_65 = arith.constant 0 : index
    %104 = vector.load %arg5[%c2_63, %c0_64, %c0_65] : memref<9x16x16xbf16, #tpu.memory_space<vmem>>, vector<1x16x16xbf16>
    %105 = vector.shape_cast %104 : vector<1x16x16xbf16> to vector<16x16xbf16>
    %106 = arith.truncf %103 : vector<16x256xf32> to vector<16x256xbf16>
    %cst_66 = arith.constant dense<0.000000e+00> : vector<16x256xf32>
    %107 = tpu.matmul %105, %106, %cst_66 {dimension_numbers = #tpu.dot_dimension_numbers<[1], [0], [0], [1], [0, 0, 1, 1], [], []>} : vector<16x16xbf16>, vector<16x256xbf16>, vector<16x256xf32> -> vector<16x256xf32>
    %108 = arith.addf %102, %107 : vector<16x256xf32>
    %109 = vector.broadcast %3 : vector<1x256xf32> to vector<16x256xf32>
    %110 = arith.mulf %109, %108 : vector<16x256xf32>
    %111 = arith.addf %91, %110 : vector<16x256xf32>
    %c240_i32_67 = arith.constant 240 : i32
    %112 = tpu.dynamic_rotate %74 by %c240_i32_67 dim 1 : vector<16x256xf32>, i32 -> vector<16x256xf32>
    %c6_68 = arith.constant 6 : index
    %c0_69 = arith.constant 0 : index
    %c0_70 = arith.constant 0 : index
    %113 = vector.load %arg5[%c6_68, %c0_69, %c0_70] : memref<9x16x16xbf16, #tpu.memory_space<vmem>>, vector<1x16x16xbf16>
    %114 = vector.shape_cast %113 : vector<1x16x16xbf16> to vector<16x16xbf16>
    %115 = arith.truncf %112 : vector<16x256xf32> to vector<16x256xbf16>
    %cst_71 = arith.constant dense<0.000000e+00> : vector<16x256xf32>
    %116 = tpu.matmul %114, %115, %cst_71 {dimension_numbers = #tpu.dot_dimension_numbers<[1], [0], [0], [1], [0, 0, 1, 1], [], []>} : vector<16x16xbf16>, vector<16x256xbf16>, vector<16x256xf32> -> vector<16x256xf32>
    %c240_i32_72 = arith.constant 240 : i32
    %117 = tpu.dynamic_rotate %71 by %c240_i32_72 dim 1 : vector<16x256xf32>, i32 -> vector<16x256xf32>
    %c7_73 = arith.constant 7 : index
    %c0_74 = arith.constant 0 : index
    %c0_75 = arith.constant 0 : index
    %118 = vector.load %arg5[%c7_73, %c0_74, %c0_75] : memref<9x16x16xbf16, #tpu.memory_space<vmem>>, vector<1x16x16xbf16>
    %119 = vector.shape_cast %118 : vector<1x16x16xbf16> to vector<16x16xbf16>
    %120 = arith.truncf %117 : vector<16x256xf32> to vector<16x256xbf16>
    %cst_76 = arith.constant dense<0.000000e+00> : vector<16x256xf32>
    %121 = tpu.matmul %119, %120, %cst_76 {dimension_numbers = #tpu.dot_dimension_numbers<[1], [0], [0], [1], [0, 0, 1, 1], [], []>} : vector<16x16xbf16>, vector<16x256xbf16>, vector<16x256xf32> -> vector<16x256xf32>
    %122 = arith.addf %116, %121 : vector<16x256xf32>
    %c240_i32_77 = arith.constant 240 : i32
    %123 = tpu.dynamic_rotate %77 by %c240_i32_77 dim 1 : vector<16x256xf32>, i32 -> vector<16x256xf32>
    %c8_78 = arith.constant 8 : index
    %c0_79 = arith.constant 0 : index
    %c0_80 = arith.constant 0 : index
    %124 = vector.load %arg5[%c8_78, %c0_79, %c0_80] : memref<9x16x16xbf16, #tpu.memory_space<vmem>>, vector<1x16x16xbf16>
    %125 = vector.shape_cast %124 : vector<1x16x16xbf16> to vector<16x16xbf16>
    %126 = arith.truncf %123 : vector<16x256xf32> to vector<16x256xbf16>
    %cst_81 = arith.constant dense<0.000000e+00> : vector<16x256xf32>
    %127 = tpu.matmul %125, %126, %cst_81 {dimension_numbers = #tpu.dot_dimension_numbers<[1], [0], [0], [1], [0, 0, 1, 1], [], []>} : vector<16x16xbf16>, vector<16x256xbf16>, vector<16x256xf32> -> vector<16x256xf32>
    %128 = arith.addf %122, %127 : vector<16x256xf32>
    %129 = vector.broadcast %4 : vector<1x256xf32> to vector<16x256xf32>
    %130 = arith.mulf %129, %128 : vector<16x256xf32>
    %131 = arith.addf %111, %130 : vector<16x256xf32>
    %c0_82 = arith.constant 0 : index
    %c0_83 = arith.constant 0 : index
    %132 = vector.load %arg6[%c0_82, %c0_83] : memref<16x1xf32, #tpu.memory_space<vmem>>, vector<16x1xf32>
    %133 = vector.broadcast %132 : vector<16x1xf32> to vector<16x256xf32>
    %134 = arith.addf %131, %133 : vector<16x256xf32>
    %cst_84 = arith.constant dense<0.000000e+00> : vector<16xf32>
    %135 = vector.multi_reduction <add>, %134, %cst_84 [1] : vector<16x256xf32> to vector<16xf32>
    %136 = vector.shape_cast %135 : vector<16xf32> to vector<16x1xf32>
    %cst_85 = arith.constant 3.906250e-03 : f32
    %137 = vector.broadcast %cst_85 : f32 to vector<16x1xf32>
    %138 = arith.mulf %136, %137 : vector<16x1xf32>
    %c0_86 = arith.constant 0 : index
    %c0_87 = arith.constant 0 : index
    %139 = vector.load %arg7[%c0_86, %c0_87] : memref<4x16xbf16, #tpu.memory_space<vmem>>, vector<4x16xbf16>
    %140 = arith.truncf %138 : vector<16x1xf32> to vector<16x1xbf16>
    %cst_88 = arith.constant dense<0.000000e+00> : vector<4x1xf32>
    %141 = tpu.matmul %139, %140, %cst_88 {dimension_numbers = #tpu.dot_dimension_numbers<[1], [0], [0], [1], [0, 0, 1, 1], [], []>} : vector<4x16xbf16>, vector<16x1xbf16>, vector<4x1xf32> -> vector<4x1xf32>
    %c0_89 = arith.constant 0 : index
    %c0_90 = arith.constant 0 : index
    %142 = vector.load %arg8[%c0_89, %c0_90] : memref<4x1xf32, #tpu.memory_space<vmem>>, vector<4x1xf32>
    %143 = arith.addf %141, %142 : vector<4x1xf32>
    %cst_91 = arith.constant 0.000000e+00 : f32
    %144 = vector.broadcast %cst_91 : f32 to vector<4x1xf32>
    %145 = arith.maximumf %143, %144 : vector<4x1xf32>
    %c0_92 = arith.constant 0 : index
    %c0_93 = arith.constant 0 : index
    %146 = vector.load %arg9[%c0_92, %c0_93] : memref<16x4xbf16, #tpu.memory_space<vmem>>, vector<16x4xbf16>
    %147 = arith.truncf %145 : vector<4x1xf32> to vector<4x1xbf16>
    %cst_94 = arith.constant dense<0.000000e+00> : vector<16x1xf32>
    %148 = tpu.matmul %146, %147, %cst_94 {dimension_numbers = #tpu.dot_dimension_numbers<[1], [0], [0], [1], [0, 0, 1, 1], [], []>} : vector<16x4xbf16>, vector<4x1xbf16>, vector<16x1xf32> -> vector<16x1xf32>
    %c0_95 = arith.constant 0 : index
    %c0_96 = arith.constant 0 : index
    %149 = vector.load %arg10[%c0_95, %c0_96] : memref<16x1xf32, #tpu.memory_space<vmem>>, vector<16x1xf32>
    %150 = arith.addf %148, %149 : vector<16x1xf32>
    %151 = arith.negf %150 : vector<16x1xf32>
    %152 = math.exp %151 : vector<16x1xf32>
    %cst_97 = arith.constant 1.000000e+00 : f32
    %153 = vector.broadcast %cst_97 : f32 to vector<16x1xf32>
    %154 = arith.addf %153, %152 : vector<16x1xf32>
    %155 = arith.divf %153, %154 : vector<16x1xf32>
    %156 = vector.broadcast %155 : vector<16x1xf32> to vector<16x256xf32>
    %157 = arith.mulf %134, %156 : vector<16x256xf32>
    %158 = arith.addf %157, %6 : vector<16x256xf32>
    %c0_98 = arith.constant 0 : index
    %c0_99 = arith.constant 0 : index
    %c0_100 = arith.constant 0 : index
    %159 = vector.load %arg11[%c0_98, %c0_99, %c0_100] : memref<2x16x256xf32, #tpu.memory_space<vmem>>, vector<1x16x256xf32>
    %160 = vector.shape_cast %159 : vector<1x16x256xf32> to vector<16x256xf32>
    %161 = vector.shape_cast %158 : vector<16x256xf32> to vector<1x16x256xf32>
    tpu.vector_store %arg11[%c0_98, %c0_99, %c0_100], %161 {strides = array<i32>} : memref<2x16x256xf32, #tpu.memory_space<vmem>>, vector<1x16x256xf32>,
    %c1_101 = arith.constant 1 : index
    %c0_102 = arith.constant 0 : index
    %c0_103 = arith.constant 0 : index
    %162 = vector.load %arg1[%c1_101, %c0_102, %c0_103] : memref<2x16x256xf32, #tpu.memory_space<vmem>>, vector<1x16x256xf32>
    %163 = vector.shape_cast %162 : vector<1x16x256xf32> to vector<16x256xf32>
    %c1_i32_104 = arith.constant 1 : i32
    %164 = tpu.dynamic_rotate %163 by %c1_i32_104 dim 1 : vector<16x256xf32>, i32 -> vector<16x256xf32>
    %165 = vector.broadcast %1 : vector<1x256xf32> to vector<16x256xf32>
    %166 = arith.mulf %165, %164 : vector<16x256xf32>
    %c255_i32_105 = arith.constant 255 : i32
    %167 = tpu.dynamic_rotate %163 by %c255_i32_105 dim 1 : vector<16x256xf32>, i32 -> vector<16x256xf32>
    %168 = vector.broadcast %2 : vector<1x256xf32> to vector<16x256xf32>
    %169 = arith.mulf %168, %167 : vector<16x256xf32>
    %c3_106 = arith.constant 3 : index
    %c0_107 = arith.constant 0 : index
    %c0_108 = arith.constant 0 : index
    %170 = vector.load %arg3[%c3_106, %c0_107, %c0_108] : memref<9x16x16xbf16, #tpu.memory_space<vmem>>, vector<1x16x16xbf16>
    %171 = vector.shape_cast %170 : vector<1x16x16xbf16> to vector<16x16xbf16>
    %172 = arith.truncf %166 : vector<16x256xf32> to vector<16x256xbf16>
    %cst_109 = arith.constant dense<0.000000e+00> : vector<16x256xf32>
    %173 = tpu.matmul %171, %172, %cst_109 {dimension_numbers = #tpu.dot_dimension_numbers<[1], [0], [0], [1], [0, 0, 1, 1], [], []>} : vector<16x16xbf16>, vector<16x256xbf16>, vector<16x256xf32> -> vector<16x256xf32>
    %c4_110 = arith.constant 4 : index
    %c0_111 = arith.constant 0 : index
    %c0_112 = arith.constant 0 : index
    %174 = vector.load %arg3[%c4_110, %c0_111, %c0_112] : memref<9x16x16xbf16, #tpu.memory_space<vmem>>, vector<1x16x16xbf16>
    %175 = vector.shape_cast %174 : vector<1x16x16xbf16> to vector<16x16xbf16>
    %176 = arith.truncf %163 : vector<16x256xf32> to vector<16x256xbf16>
    %cst_113 = arith.constant dense<0.000000e+00> : vector<16x256xf32>
    %177 = tpu.matmul %175, %176, %cst_113 {dimension_numbers = #tpu.dot_dimension_numbers<[1], [0], [0], [1], [0, 0, 1, 1], [], []>} : vector<16x16xbf16>, vector<16x256xbf16>, vector<16x256xf32> -> vector<16x256xf32>
    %178 = arith.addf %173, %177 : vector<16x256xf32>
    %c5_114 = arith.constant 5 : index
    %c0_115 = arith.constant 0 : index
    %c0_116 = arith.constant 0 : index
    %179 = vector.load %arg3[%c5_114, %c0_115, %c0_116] : memref<9x16x16xbf16, #tpu.memory_space<vmem>>, vector<1x16x16xbf16>
    %180 = vector.shape_cast %179 : vector<1x16x16xbf16> to vector<16x16xbf16>
    %181 = arith.truncf %169 : vector<16x256xf32> to vector<16x256xbf16>
    %cst_117 = arith.constant dense<0.000000e+00> : vector<16x256xf32>
    %182 = tpu.matmul %180, %181, %cst_117 {dimension_numbers = #tpu.dot_dimension_numbers<[1], [0], [0], [1], [0, 0, 1, 1], [], []>} : vector<16x16xbf16>, vector<16x256xbf16>, vector<16x256xf32> -> vector<16x256xf32>
    %183 = arith.addf %178, %182 : vector<16x256xf32>
    %c16_i32_118 = arith.constant 16 : i32
    %184 = tpu.dynamic_rotate %166 by %c16_i32_118 dim 1 : vector<16x256xf32>, i32 -> vector<16x256xf32>
    %c0_119 = arith.constant 0 : index
    %c0_120 = arith.constant 0 : index
    %c0_121 = arith.constant 0 : index
    %185 = vector.load %arg3[%c0_119, %c0_120, %c0_121] : memref<9x16x16xbf16, #tpu.memory_space<vmem>>, vector<1x16x16xbf16>
    %186 = vector.shape_cast %185 : vector<1x16x16xbf16> to vector<16x16xbf16>
    %187 = arith.truncf %184 : vector<16x256xf32> to vector<16x256xbf16>
    %cst_122 = arith.constant dense<0.000000e+00> : vector<16x256xf32>
    %188 = tpu.matmul %186, %187, %cst_122 {dimension_numbers = #tpu.dot_dimension_numbers<[1], [0], [0], [1], [0, 0, 1, 1], [], []>} : vector<16x16xbf16>, vector<16x256xbf16>, vector<16x256xf32> -> vector<16x256xf32>
    %c16_i32_123 = arith.constant 16 : i32
    %189 = tpu.dynamic_rotate %163 by %c16_i32_123 dim 1 : vector<16x256xf32>, i32 -> vector<16x256xf32>
    %c1_124 = arith.constant 1 : index
    %c0_125 = arith.constant 0 : index
    %c0_126 = arith.constant 0 : index
    %190 = vector.load %arg3[%c1_124, %c0_125, %c0_126] : memref<9x16x16xbf16, #tpu.memory_space<vmem>>, vector<1x16x16xbf16>
    %191 = vector.shape_cast %190 : vector<1x16x16xbf16> to vector<16x16xbf16>
    %192 = arith.truncf %189 : vector<16x256xf32> to vector<16x256xbf16>
    %cst_127 = arith.constant dense<0.000000e+00> : vector<16x256xf32>
    %193 = tpu.matmul %191, %192, %cst_127 {dimension_numbers = #tpu.dot_dimension_numbers<[1], [0], [0], [1], [0, 0, 1, 1], [], []>} : vector<16x16xbf16>, vector<16x256xbf16>, vector<16x256xf32> -> vector<16x256xf32>
    %194 = arith.addf %188, %193 : vector<16x256xf32>
    %c16_i32_128 = arith.constant 16 : i32
    %195 = tpu.dynamic_rotate %169 by %c16_i32_128 dim 1 : vector<16x256xf32>, i32 -> vector<16x256xf32>
    %c2_129 = arith.constant 2 : index
    %c0_130 = arith.constant 0 : index
    %c0_131 = arith.constant 0 : index
    %196 = vector.load %arg3[%c2_129, %c0_130, %c0_131] : memref<9x16x16xbf16, #tpu.memory_space<vmem>>, vector<1x16x16xbf16>
    %197 = vector.shape_cast %196 : vector<1x16x16xbf16> to vector<16x16xbf16>
    %198 = arith.truncf %195 : vector<16x256xf32> to vector<16x256xbf16>
    %cst_132 = arith.constant dense<0.000000e+00> : vector<16x256xf32>
    %199 = tpu.matmul %197, %198, %cst_132 {dimension_numbers = #tpu.dot_dimension_numbers<[1], [0], [0], [1], [0, 0, 1, 1], [], []>} : vector<16x16xbf16>, vector<16x256xbf16>, vector<16x256xf32> -> vector<16x256xf32>
    %200 = arith.addf %194, %199 : vector<16x256xf32>
    %201 = vector.broadcast %3 : vector<1x256xf32> to vector<16x256xf32>
    %202 = arith.mulf %201, %200 : vector<16x256xf32>
    %203 = arith.addf %183, %202 : vector<16x256xf32>
    %c240_i32_133 = arith.constant 240 : i32
    %204 = tpu.dynamic_rotate %166 by %c240_i32_133 dim 1 : vector<16x256xf32>, i32 -> vector<16x256xf32>
    %c6_134 = arith.constant 6 : index
    %c0_135 = arith.constant 0 : index
    %c0_136 = arith.constant 0 : index
    %205 = vector.load %arg3[%c6_134, %c0_135, %c0_136] : memref<9x16x16xbf16, #tpu.memory_space<vmem>>, vector<1x16x16xbf16>
    %206 = vector.shape_cast %205 : vector<1x16x16xbf16> to vector<16x16xbf16>
    %207 = arith.truncf %204 : vector<16x256xf32> to vector<16x256xbf16>
    %cst_137 = arith.constant dense<0.000000e+00> : vector<16x256xf32>
    %208 = tpu.matmul %206, %207, %cst_137 {dimension_numbers = #tpu.dot_dimension_numbers<[1], [0], [0], [1], [0, 0, 1, 1], [], []>} : vector<16x16xbf16>, vector<16x256xbf16>, vector<16x256xf32> -> vector<16x256xf32>
    %c240_i32_138 = arith.constant 240 : i32
    %209 = tpu.dynamic_rotate %163 by %c240_i32_138 dim 1 : vector<16x256xf32>, i32 -> vector<16x256xf32>
    %c7_139 = arith.constant 7 : index
    %c0_140 = arith.constant 0 : index
    %c0_141 = arith.constant 0 : index
    %210 = vector.load %arg3[%c7_139, %c0_140, %c0_141] : memref<9x16x16xbf16, #tpu.memory_space<vmem>>, vector<1x16x16xbf16>
    %211 = vector.shape_cast %210 : vector<1x16x16xbf16> to vector<16x16xbf16>
    %212 = arith.truncf %209 : vector<16x256xf32> to vector<16x256xbf16>
    %cst_142 = arith.constant dense<0.000000e+00> : vector<16x256xf32>
    %213 = tpu.matmul %211, %212, %cst_142 {dimension_numbers = #tpu.dot_dimension_numbers<[1], [0], [0], [1], [0, 0, 1, 1], [], []>} : vector<16x16xbf16>, vector<16x256xbf16>, vector<16x256xf32> -> vector<16x256xf32>
    %214 = arith.addf %208, %213 : vector<16x256xf32>
    %c240_i32_143 = arith.constant 240 : i32
    %215 = tpu.dynamic_rotate %169 by %c240_i32_143 dim 1 : vector<16x256xf32>, i32 -> vector<16x256xf32>
    %c8_144 = arith.constant 8 : index
    %c0_145 = arith.constant 0 : index
    %c0_146 = arith.constant 0 : index
    %216 = vector.load %arg3[%c8_144, %c0_145, %c0_146] : memref<9x16x16xbf16, #tpu.memory_space<vmem>>, vector<1x16x16xbf16>
    %217 = vector.shape_cast %216 : vector<1x16x16xbf16> to vector<16x16xbf16>
    %218 = arith.truncf %215 : vector<16x256xf32> to vector<16x256xbf16>
    %cst_147 = arith.constant dense<0.000000e+00> : vector<16x256xf32>
    %219 = tpu.matmul %217, %218, %cst_147 {dimension_numbers = #tpu.dot_dimension_numbers<[1], [0], [0], [1], [0, 0, 1, 1], [], []>} : vector<16x16xbf16>, vector<16x256xbf16>, vector<16x256xf32> -> vector<16x256xf32>
    %220 = arith.addf %214, %219 : vector<16x256xf32>
    %221 = vector.broadcast %4 : vector<1x256xf32> to vector<16x256xf32>
    %222 = arith.mulf %221, %220 : vector<16x256xf32>
    %223 = arith.addf %203, %222 : vector<16x256xf32>
    %c0_148 = arith.constant 0 : index
    %c0_149 = arith.constant 0 : index
    %224 = vector.load %arg4[%c0_148, %c0_149] : memref<16x1xf32, #tpu.memory_space<vmem>>, vector<16x1xf32>
    %225 = vector.broadcast %224 : vector<16x1xf32> to vector<16x256xf32>
    %226 = arith.addf %223, %225 : vector<16x256xf32>
    %cst_150 = arith.constant 0.000000e+00 : f32
    %227 = vector.broadcast %cst_150 : f32 to vector<16x256xf32>
    %228 = arith.maximumf %226, %227 : vector<16x256xf32>
    %c1_i32_151 = arith.constant 1 : i32
    %229 = tpu.dynamic_rotate %228 by %c1_i32_151 dim 1 : vector<16x256xf32>, i32 -> vector<16x256xf32>
    %230 = vector.broadcast %1 : vector<1x256xf32> to vector<16x256xf32>
    %231 = arith.mulf %230, %229 : vector<16x256xf32>
    %c255_i32_152 = arith.constant 255 : i32
    %232 = tpu.dynamic_rotate %228 by %c255_i32_152 dim 1 : vector<16x256xf32>, i32 -> vector<16x256xf32>
    %233 = vector.broadcast %2 : vector<1x256xf32> to vector<16x256xf32>
    %234 = arith.mulf %233, %232 : vector<16x256xf32>
    %c3_153 = arith.constant 3 : index
    %c0_154 = arith.constant 0 : index
    %c0_155 = arith.constant 0 : index
    %235 = vector.load %arg5[%c3_153, %c0_154, %c0_155] : memref<9x16x16xbf16, #tpu.memory_space<vmem>>, vector<1x16x16xbf16>
    %236 = vector.shape_cast %235 : vector<1x16x16xbf16> to vector<16x16xbf16>
    %237 = arith.truncf %231 : vector<16x256xf32> to vector<16x256xbf16>
    %cst_156 = arith.constant dense<0.000000e+00> : vector<16x256xf32>
    %238 = tpu.matmul %236, %237, %cst_156 {dimension_numbers = #tpu.dot_dimension_numbers<[1], [0], [0], [1], [0, 0, 1, 1], [], []>} : vector<16x16xbf16>, vector<16x256xbf16>, vector<16x256xf32> -> vector<16x256xf32>
    %c4_157 = arith.constant 4 : index
    %c0_158 = arith.constant 0 : index
    %c0_159 = arith.constant 0 : index
    %239 = vector.load %arg5[%c4_157, %c0_158, %c0_159] : memref<9x16x16xbf16, #tpu.memory_space<vmem>>, vector<1x16x16xbf16>
    %240 = vector.shape_cast %239 : vector<1x16x16xbf16> to vector<16x16xbf16>
    %241 = arith.truncf %228 : vector<16x256xf32> to vector<16x256xbf16>
    %cst_160 = arith.constant dense<0.000000e+00> : vector<16x256xf32>
    %242 = tpu.matmul %240, %241, %cst_160 {dimension_numbers = #tpu.dot_dimension_numbers<[1], [0], [0], [1], [0, 0, 1, 1], [], []>} : vector<16x16xbf16>, vector<16x256xbf16>, vector<16x256xf32> -> vector<16x256xf32>
    %243 = arith.addf %238, %242 : vector<16x256xf32>
    %c5_161 = arith.constant 5 : index
    %c0_162 = arith.constant 0 : index
    %c0_163 = arith.constant 0 : index
    %244 = vector.load %arg5[%c5_161, %c0_162, %c0_163] : memref<9x16x16xbf16, #tpu.memory_space<vmem>>, vector<1x16x16xbf16>
    %245 = vector.shape_cast %244 : vector<1x16x16xbf16> to vector<16x16xbf16>
    %246 = arith.truncf %234 : vector<16x256xf32> to vector<16x256xbf16>
    %cst_164 = arith.constant dense<0.000000e+00> : vector<16x256xf32>
    %247 = tpu.matmul %245, %246, %cst_164 {dimension_numbers = #tpu.dot_dimension_numbers<[1], [0], [0], [1], [0, 0, 1, 1], [], []>} : vector<16x16xbf16>, vector<16x256xbf16>, vector<16x256xf32> -> vector<16x256xf32>
    %248 = arith.addf %243, %247 : vector<16x256xf32>
    %c16_i32_165 = arith.constant 16 : i32
    %249 = tpu.dynamic_rotate %231 by %c16_i32_165 dim 1 : vector<16x256xf32>, i32 -> vector<16x256xf32>
    %c0_166 = arith.constant 0 : index
    %c0_167 = arith.constant 0 : index
    %c0_168 = arith.constant 0 : index
    %250 = vector.load %arg5[%c0_166, %c0_167, %c0_168] : memref<9x16x16xbf16, #tpu.memory_space<vmem>>, vector<1x16x16xbf16>
    %251 = vector.shape_cast %250 : vector<1x16x16xbf16> to vector<16x16xbf16>
    %252 = arith.truncf %249 : vector<16x256xf32> to vector<16x256xbf16>
    %cst_169 = arith.constant dense<0.000000e+00> : vector<16x256xf32>
    %253 = tpu.matmul %251, %252, %cst_169 {dimension_numbers = #tpu.dot_dimension_numbers<[1], [0], [0], [1], [0, 0, 1, 1], [], []>} : vector<16x16xbf16>, vector<16x256xbf16>, vector<16x256xf32> -> vector<16x256xf32>
    %c16_i32_170 = arith.constant 16 : i32
    %254 = tpu.dynamic_rotate %228 by %c16_i32_170 dim 1 : vector<16x256xf32>, i32 -> vector<16x256xf32>
    %c1_171 = arith.constant 1 : index
    %c0_172 = arith.constant 0 : index
    %c0_173 = arith.constant 0 : index
    %255 = vector.load %arg5[%c1_171, %c0_172, %c0_173] : memref<9x16x16xbf16, #tpu.memory_space<vmem>>, vector<1x16x16xbf16>
    %256 = vector.shape_cast %255 : vector<1x16x16xbf16> to vector<16x16xbf16>
    %257 = arith.truncf %254 : vector<16x256xf32> to vector<16x256xbf16>
    %cst_174 = arith.constant dense<0.000000e+00> : vector<16x256xf32>
    %258 = tpu.matmul %256, %257, %cst_174 {dimension_numbers = #tpu.dot_dimension_numbers<[1], [0], [0], [1], [0, 0, 1, 1], [], []>} : vector<16x16xbf16>, vector<16x256xbf16>, vector<16x256xf32> -> vector<16x256xf32>
    %259 = arith.addf %253, %258 : vector<16x256xf32>
    %c16_i32_175 = arith.constant 16 : i32
    %260 = tpu.dynamic_rotate %234 by %c16_i32_175 dim 1 : vector<16x256xf32>, i32 -> vector<16x256xf32>
    %c2_176 = arith.constant 2 : index
    %c0_177 = arith.constant 0 : index
    %c0_178 = arith.constant 0 : index
    %261 = vector.load %arg5[%c2_176, %c0_177, %c0_178] : memref<9x16x16xbf16, #tpu.memory_space<vmem>>, vector<1x16x16xbf16>
    %262 = vector.shape_cast %261 : vector<1x16x16xbf16> to vector<16x16xbf16>
    %263 = arith.truncf %260 : vector<16x256xf32> to vector<16x256xbf16>
    %cst_179 = arith.constant dense<0.000000e+00> : vector<16x256xf32>
    %264 = tpu.matmul %262, %263, %cst_179 {dimension_numbers = #tpu.dot_dimension_numbers<[1], [0], [0], [1], [0, 0, 1, 1], [], []>} : vector<16x16xbf16>, vector<16x256xbf16>, vector<16x256xf32> -> vector<16x256xf32>
    %265 = arith.addf %259, %264 : vector<16x256xf32>
    %266 = vector.broadcast %3 : vector<1x256xf32> to vector<16x256xf32>
    %267 = arith.mulf %266, %265 : vector<16x256xf32>
    %268 = arith.addf %248, %267 : vector<16x256xf32>
    %c240_i32_180 = arith.constant 240 : i32
    %269 = tpu.dynamic_rotate %231 by %c240_i32_180 dim 1 : vector<16x256xf32>, i32 -> vector<16x256xf32>
    %c6_181 = arith.constant 6 : index
    %c0_182 = arith.constant 0 : index
    %c0_183 = arith.constant 0 : index
    %270 = vector.load %arg5[%c6_181, %c0_182, %c0_183] : memref<9x16x16xbf16, #tpu.memory_space<vmem>>, vector<1x16x16xbf16>
    %271 = vector.shape_cast %270 : vector<1x16x16xbf16> to vector<16x16xbf16>
    %272 = arith.truncf %269 : vector<16x256xf32> to vector<16x256xbf16>
    %cst_184 = arith.constant dense<0.000000e+00> : vector<16x256xf32>
    %273 = tpu.matmul %271, %272, %cst_184 {dimension_numbers = #tpu.dot_dimension_numbers<[1], [0], [0], [1], [0, 0, 1, 1], [], []>} : vector<16x16xbf16>, vector<16x256xbf16>, vector<16x256xf32> -> vector<16x256xf32>
    %c240_i32_185 = arith.constant 240 : i32
    %274 = tpu.dynamic_rotate %228 by %c240_i32_185 dim 1 : vector<16x256xf32>, i32 -> vector<16x256xf32>
    %c7_186 = arith.constant 7 : index
    %c0_187 = arith.constant 0 : index
    %c0_188 = arith.constant 0 : index
    %275 = vector.load %arg5[%c7_186, %c0_187, %c0_188] : memref<9x16x16xbf16, #tpu.memory_space<vmem>>, vector<1x16x16xbf16>
    %276 = vector.shape_cast %275 : vector<1x16x16xbf16> to vector<16x16xbf16>
    %277 = arith.truncf %274 : vector<16x256xf32> to vector<16x256xbf16>
    %cst_189 = arith.constant dense<0.000000e+00> : vector<16x256xf32>
    %278 = tpu.matmul %276, %277, %cst_189 {dimension_numbers = #tpu.dot_dimension_numbers<[1], [0], [0], [1], [0, 0, 1, 1], [], []>} : vector<16x16xbf16>, vector<16x256xbf16>, vector<16x256xf32> -> vector<16x256xf32>
    %279 = arith.addf %273, %278 : vector<16x256xf32>
    %c240_i32_190 = arith.constant 240 : i32
    %280 = tpu.dynamic_rotate %234 by %c240_i32_190 dim 1 : vector<16x256xf32>, i32 -> vector<16x256xf32>
    %c8_191 = arith.constant 8 : index
    %c0_192 = arith.constant 0 : index
    %c0_193 = arith.constant 0 : index
    %281 = vector.load %arg5[%c8_191, %c0_192, %c0_193] : memref<9x16x16xbf16, #tpu.memory_space<vmem>>, vector<1x16x16xbf16>
    %282 = vector.shape_cast %281 : vector<1x16x16xbf16> to vector<16x16xbf16>
    %283 = arith.truncf %280 : vector<16x256xf32> to vector<16x256xbf16>
    %cst_194 = arith.constant dense<0.000000e+00> : vector<16x256xf32>
    %284 = tpu.matmul %282, %283, %cst_194 {dimension_numbers = #tpu.dot_dimension_numbers<[1], [0], [0], [1], [0, 0, 1, 1], [], []>} : vector<16x16xbf16>, vector<16x256xbf16>, vector<16x256xf32> -> vector<16x256xf32>
    %285 = arith.addf %279, %284 : vector<16x256xf32>
    %286 = vector.broadcast %4 : vector<1x256xf32> to vector<16x256xf32>
    %287 = arith.mulf %286, %285 : vector<16x256xf32>
    %288 = arith.addf %268, %287 : vector<16x256xf32>
    %c0_195 = arith.constant 0 : index
    %c0_196 = arith.constant 0 : index
    %289 = vector.load %arg6[%c0_195, %c0_196] : memref<16x1xf32, #tpu.memory_space<vmem>>, vector<16x1xf32>
    %290 = vector.broadcast %289 : vector<16x1xf32> to vector<16x256xf32>
    %291 = arith.addf %288, %290 : vector<16x256xf32>
    %cst_197 = arith.constant dense<0.000000e+00> : vector<16xf32>
    %292 = vector.multi_reduction <add>, %291, %cst_197 [1] : vector<16x256xf32> to vector<16xf32>
    %293 = vector.shape_cast %292 : vector<16xf32> to vector<16x1xf32>
    %cst_198 = arith.constant 3.906250e-03 : f32
    %294 = vector.broadcast %cst_198 : f32 to vector<16x1xf32>
    %295 = arith.mulf %293, %294 : vector<16x1xf32>
    %c0_199 = arith.constant 0 : index
    %c0_200 = arith.constant 0 : index
    %296 = vector.load %arg7[%c0_199, %c0_200] : memref<4x16xbf16, #tpu.memory_space<vmem>>, vector<4x16xbf16>
    %297 = arith.truncf %295 : vector<16x1xf32> to vector<16x1xbf16>
    %cst_201 = arith.constant dense<0.000000e+00> : vector<4x1xf32>
    %298 = tpu.matmul %296, %297, %cst_201 {dimension_numbers = #tpu.dot_dimension_numbers<[1], [0], [0], [1], [0, 0, 1, 1], [], []>} : vector<4x16xbf16>, vector<16x1xbf16>, vector<4x1xf32> -> vector<4x1xf32>
    %c0_202 = arith.constant 0 : index
    %c0_203 = arith.constant 0 : index
    %299 = vector.load %arg8[%c0_202, %c0_203] : memref<4x1xf32, #tpu.memory_space<vmem>>, vector<4x1xf32>
    %300 = arith.addf %298, %299 : vector<4x1xf32>
    %cst_204 = arith.constant 0.000000e+00 : f32
    %301 = vector.broadcast %cst_204 : f32 to vector<4x1xf32>
    %302 = arith.maximumf %300, %301 : vector<4x1xf32>
    %c0_205 = arith.constant 0 : index
    %c0_206 = arith.constant 0 : index
    %303 = vector.load %arg9[%c0_205, %c0_206] : memref<16x4xbf16, #tpu.memory_space<vmem>>, vector<16x4xbf16>
    %304 = arith.truncf %302 : vector<4x1xf32> to vector<4x1xbf16>
    %cst_207 = arith.constant dense<0.000000e+00> : vector<16x1xf32>
    %305 = tpu.matmul %303, %304, %cst_207 {dimension_numbers = #tpu.dot_dimension_numbers<[1], [0], [0], [1], [0, 0, 1, 1], [], []>} : vector<16x4xbf16>, vector<4x1xbf16>, vector<16x1xf32> -> vector<16x1xf32>
    %c0_208 = arith.constant 0 : index
    %c0_209 = arith.constant 0 : index
    %306 = vector.load %arg10[%c0_208, %c0_209] : memref<16x1xf32, #tpu.memory_space<vmem>>, vector<16x1xf32>
    %307 = arith.addf %305, %306 : vector<16x1xf32>
    %308 = arith.negf %307 : vector<16x1xf32>
    %309 = math.exp %308 : vector<16x1xf32>
    %cst_210 = arith.constant 1.000000e+00 : f32
    %310 = vector.broadcast %cst_210 : f32 to vector<16x1xf32>
    %311 = arith.addf %310, %309 : vector<16x1xf32>
    %312 = arith.divf %310, %311 : vector<16x1xf32>
    %313 = vector.broadcast %312 : vector<16x1xf32> to vector<16x256xf32>
    %314 = arith.mulf %291, %313 : vector<16x256xf32>
    %315 = arith.addf %314, %163 : vector<16x256xf32>
    %c1_211 = arith.constant 1 : index
    %c0_212 = arith.constant 0 : index
    %c0_213 = arith.constant 0 : index
    %316 = vector.load %arg11[%c1_211, %c0_212, %c0_213] : memref<2x16x256xf32, #tpu.memory_space<vmem>>, vector<1x16x256xf32>
    %317 = vector.shape_cast %316 : vector<1x16x256xf32> to vector<16x256xf32>
    %318 = vector.shape_cast %315 : vector<16x256xf32> to vector<1x16x256xf32>
    tpu.vector_store %arg11[%c1_211, %c0_212, %c0_213], %318 {strides = array<i32>} : memref<2x16x256xf32, #tpu.memory_space<vmem>>, vector<1x16x256xf32>,
    return
  }
  func.func @transform_0(%arg0: i32) -> (i32, i32, i32) {
    %c0_i32 = arith.constant 0 : i32
    %c0_i32_0 = arith.constant 0 : i32
    %c0_i32_1 = arith.constant 0 : i32
    return %arg0, %c0_i32, %c0_i32_0 : i32, i32, i32
  }
  func.func @transform_1(%arg0: i32) -> (i32, i32) {
    %c0_i32 = arith.constant 0 : i32
    %c0_i32_0 = arith.constant 0 : i32
    %c0_i32_1 = arith.constant 0 : i32
    return %c0_i32, %c0_i32_0 : i32, i32
  }
  func.func @transform_2(%arg0: i32) -> (i32, i32, i32) {
    %c0_i32 = arith.constant 0 : i32
    %c0_i32_0 = arith.constant 0 : i32
    %c0_i32_1 = arith.constant 0 : i32
    %c0_i32_2 = arith.constant 0 : i32
    return %c0_i32, %c0_i32_0, %c0_i32_1 : i32, i32, i32
  }
  func.func @transform_3(%arg0: i32) -> (i32, i32) {
    %c0_i32 = arith.constant 0 : i32
    %c0_i32_0 = arith.constant 0 : i32
    %c0_i32_1 = arith.constant 0 : i32
    return %c0_i32, %c0_i32_0 : i32, i32
  }
  func.func @transform_4(%arg0: i32) -> (i32, i32, i32) {
    %c0_i32 = arith.constant 0 : i32
    %c0_i32_0 = arith.constant 0 : i32
    %c0_i32_1 = arith.constant 0 : i32
    %c0_i32_2 = arith.constant 0 : i32
    return %c0_i32, %c0_i32_0, %c0_i32_1 : i32, i32, i32
  }
  func.func @transform_5(%arg0: i32) -> (i32, i32) {
    %c0_i32 = arith.constant 0 : i32
    %c0_i32_0 = arith.constant 0 : i32
    %c0_i32_1 = arith.constant 0 : i32
    return %c0_i32, %c0_i32_0 : i32, i32
  }
  func.func @transform_6(%arg0: i32) -> (i32, i32) {
    %c0_i32 = arith.constant 0 : i32
    %c0_i32_0 = arith.constant 0 : i32
    %c0_i32_1 = arith.constant 0 : i32
    return %c0_i32, %c0_i32_0 : i32, i32
  }
  func.func @transform_7(%arg0: i32) -> (i32, i32) {
    %c0_i32 = arith.constant 0 : i32
    %c0_i32_0 = arith.constant 0 : i32
    %c0_i32_1 = arith.constant 0 : i32
    return %c0_i32, %c0_i32_0 : i32, i32
  }
  func.func @transform_8(%arg0: i32) -> (i32, i32) {
    %c0_i32 = arith.constant 0 : i32
    %c0_i32_0 = arith.constant 0 : i32
    %c0_i32_1 = arith.constant 0 : i32
    return %c0_i32, %c0_i32_0 : i32, i32
  }
  func.func @transform_9(%arg0: i32) -> (i32, i32) {
    %c0_i32 = arith.constant 0 : i32
    %c0_i32_0 = arith.constant 0 : i32
    %c0_i32_1 = arith.constant 0 : i32
    return %c0_i32, %c0_i32_0 : i32, i32
  }
  func.func @transform_10(%arg0: i32) -> (i32, i32, i32) {
    %c0_i32 = arith.constant 0 : i32
    %c0_i32_0 = arith.constant 0 : i32
    %c0_i32_1 = arith.constant 0 : i32
    return %arg0, %c0_i32, %c0_i32_0 : i32, i32, i32
  }
}

</mosaic_0001>

<llo_original>
// kernel: rfcab_forward.1
$region0: #{rfcab_forward.1}
  #allocation0 [shape = 'u32[]', space=smem, size = 0x4, offset = 0x4, fixed_abs, tag = 'smem constant byte address 0x4 - core index']
  #allocation1 [shape = 'u32[144,128]{1,0:T(1,128)}', space=vmem, size = 0x12000, scoped, tag = 'internal scratch']
  %s0 = inlined_call_operand.vmem [shape: f32[4,16,256], index: 0, kind: input, shape index: {}]
  %s1 = inlined_call_operand.vmem [shape: f32[4,256], index: 1, kind: input, shape index: {}]
  %s2 = inlined_call_operand.vmem [shape: bf16[9,16,16], index: 2, kind: input, shape index: {}]
  %s3 = inlined_call_operand.vmem [shape: f32[16,1], index: 3, kind: input, shape index: {}]
  %s4 = inlined_call_operand.vmem [shape: bf16[9,16,16], index: 4, kind: input, shape index: {}]
  %s5 = inlined_call_operand.vmem [shape: f32[16,1], index: 5, kind: input, shape index: {}]
  %s6 = inlined_call_operand.vmem [shape: bf16[4,16], index: 6, kind: input, shape index: {}]
  %s7 = inlined_call_operand.vmem [shape: f32[4,1], index: 7, kind: input, shape index: {}]
  %s8 = inlined_call_operand.vmem [shape: bf16[16,4], index: 8, kind: input, shape index: {}]
  %s9 = inlined_call_operand.vmem [shape: f32[16,1], index: 9, kind: input, shape index: {}]
  %s10 = inlined_call_operand.vmem [shape: f32[4,16,256], index: 10, kind: output, shape index: {}]
  %s11 = sld [smem:[#allocation0]]
  $region73: #{rfcab_forward.1} parent=0
    _
  %s13 = ssub.s32 1, %s11
  %s14 = scalar_select 0, %s13, %s11
  loop: start=0, step=1, limit=4
  $region2: #{rfcab_forward.1} parent=0 // loop_pre_header
    _
  $region3: #{rfcab_forward.1} parent=0 // loop_header
    %s16 = sphi 0, %s20
    %p17 = scmp.ge.s32.totalorder %s16, 4
    %s26 = sphi 0, %s28
    %s29 = sphi 0, %s26
    %s30 = sphi 0, %s29
    %s46 = sphi 0, %s30
    %s50 = sphi 0, %s50
    %s52 = sphi 0, %s50
    %s53 = sphi 0, %s52
    %s67 = sphi 0, %s53
    %s71 = sphi 0, %s71
    %s73 = sphi 0, %s71
    %s74 = sphi 0, %s73
    %s88 = sphi 0, %s74
    %s92 = sphi 0, %s92
    %s94 = sphi 0, %s92
    %s95 = sphi 0, %s94
    %s109 = sphi 0, %s95
    %s113 = sphi 0, %s113
    %s115 = sphi 0, %s113
    %s116 = sphi 0, %s115
    %s130 = sphi 0, %s116
    %s134 = sphi 0, %s134
    %s136 = sphi 0, %s134
    %s137 = sphi 0, %s136
    %s151 = sphi 0, %s137
    %s155 = sphi 0, %s155
    %s157 = sphi 0, %s155
    %s158 = sphi 0, %s157
    %s172 = sphi 0, %s158
    %s176 = sphi 0, %s176
    %s178 = sphi 0, %s176
    %s179 = sphi 0, %s178
    %s193 = sphi 0, %s179
    %s197 = sphi 0, %s197
    %s199 = sphi 0, %s197
    %s200 = sphi 0, %s199
    %s214 = sphi 0, %s200
    %s218 = sphi 0, %s218
    %s220 = sphi 0, %s218
    %s221 = sphi 0, %s220
    %s235 = sphi 0, %s221
    %s241 = sphi 0, %s243
    %s244 = sphi 0, %s241
    %s245 = sphi 0, %s244
    %s261 = sphi 0, %s245
  $region4: #{rfcab_forward.1} parent=0 // loop_header_branch
    %19 = sbr.rel (%p17) target = $region8
  $region5: #{rfcab_forward.1} parent=0 // loop_body
    %s21 = ssub.s32 %s16, 1
    %s22 = ssub.s32 %s16, 2
    %s23 = sadd.s32 %s16, 1
    %s24 = ssub.s32 %s16, %s23
    %p25 = scmp.eq.s32.totalorder %s24, 0
    %s27 = sadd.s32 %s26, 1
    %s28 = scalar_select %p25, %s26, %s27
    %p31 = pneg %p25
    %p32 = scmp.eq.s32.totalorder %s16, 1
    %p33 = por %p31, %p32
    %p34 = scmp.ne.s32.totalorder %s26, %s29
    %p35 = scmp.eq.s32.totalorder %s16, 0
    %p36 = por %p34, %p35
    %p37 = scmp.ne.s32.totalorder %s26, %s29
    %p38 = scmp.eq.s32.totalorder %s21, 1
    %p39 = por %p37, %p38
    %p40 = scmp.ne.s32.totalorder %s29, %s30
    %p41 = scmp.eq.s32.totalorder %s21, 0
    %p42 = por %p40, %p41
    %p43 = scmp.ne.s32.totalorder %s29, %s30
    %p44 = scmp.eq.s32.totalorder %s22, 1
    %p45 = por %p43, %p44
    %p47 = scmp.ne.s32.totalorder %s30, %s46
    %p48 = scmp.eq.s32.totalorder %s22, 0
    %p49 = por %p47, %p48
    %s51 = sadd.s32 %s50, 1
    %p54 = scmp.eq.s32.totalorder %s16, 1
    %p55 = scmp.ne.s32.totalorder %s50, %s52
    %p56 = scmp.eq.s32.totalorder %s16, 0
    %p57 = por %p55, %p56
    %p58 = scmp.ne.s32.totalorder %s50, %s52
    %p59 = scmp.eq.s32.totalorder %s21, 1
    %p60 = por %p58, %p59
    %p61 = scmp.ne.s32.totalorder %s52, %s53
    %p62 = scmp.eq.s32.totalorder %s21, 0
    %p63 = por %p61, %p62
    %p64 = scmp.ne.s32.totalorder %s52, %s53
    %p65 = scmp.eq.s32.totalorder %s22, 1
    %p66 = por %p64, %p65
    %p68 = scmp.ne.s32.totalorder %s53, %s67
    %p69 = scmp.eq.s32.totalorder %s22, 0
    %p70 = por %p68, %p69
    %s72 = sadd.s32 %s71, 1
    %p75 = scmp.eq.s32.totalorder %s16, 1
    %p76 = scmp.ne.s32.totalorder %s71, %s73
    %p77 = scmp.eq.s32.totalorder %s16, 0
    %p78 = por %p76, %p77
    %p79 = scmp.ne.s32.totalorder %s71, %s73
    %p80 = scmp.eq.s32.totalorder %s21, 1
    %p81 = por %p79, %p80
    %p82 = scmp.ne.s32.totalorder %s73, %s74
    %p83 = scmp.eq.s32.totalorder %s21, 0
    %p84 = por %p82, %p83
    %p85 = scmp.ne.s32.totalorder %s73, %s74
    %p86 = scmp.eq.s32.totalorder %s22, 1
    %p87 = por %p85, %p86
    %p89 = scmp.ne.s32.totalorder %s74, %s88
    %p90 = scmp.eq.s32.totalorder %s22, 0
    %p91 = por %p89, %p90
    %s93 = sadd.s32 %s92, 1
    %p96 = scmp.eq.s32.totalorder %s16, 1
    %p97 = scmp.ne.s32.totalorder %s92, %s94
    %p98 = scmp.eq.s32.totalorder %s16, 0
    %p99 = por %p97, %p98
    %p100 = scmp.ne.s32.totalorder %s92, %s94
    %p101 = scmp.eq.s32.totalorder %s21, 1
    %p102 = por %p100, %p101
    %p103 = scmp.ne.s32.totalorder %s94, %s95
    %p104 = scmp.eq.s32.totalorder %s21, 0
    %p105 = por %p103, %p104
    %p106 = scmp.ne.s32.totalorder %s94, %s95
    %p107 = scmp.eq.s32.totalorder %s22, 1
    %p108 = por %p106, %p107
    %p110 = scmp.ne.s32.totalorder %s95, %s109
    %p111 = scmp.eq.s32.totalorder %s22, 0
    %p112 = por %p110, %p111
    %s114 = sadd.s32 %s113, 1
    %p117 = scmp.eq.s32.totalorder %s16, 1
    %p118 = scmp.ne.s32.totalorder %s113, %s115
    %p119 = scmp.eq.s32.totalorder %s16, 0
    %p120 = por %p118, %p119
    %p121 = scmp.ne.s32.totalorder %s113, %s115
    %p122 = scmp.eq.s32.totalorder %s21, 1
    %p123 = por %p121, %p122
    %p124 = scmp.ne.s32.totalorder %s115, %s116
    %p125 = scmp.eq.s32.totalorder %s21, 0
    %p126 = por %p124, %p125
    %p127 = scmp.ne.s32.totalorder %s115, %s116
    %p128 = scmp.eq.s32.totalorder %s22, 1
    %p129 = por %p127, %p128
    %p131 = scmp.ne.s32.totalorder %s116, %s130
    %p132 = scmp.eq.s32.totalorder %s22, 0
    %p133 = por %p131, %p132
    %s135 = sadd.s32 %s134, 1
    %p138 = scmp.eq.s32.totalorder %s16, 1
    %p139 = scmp.ne.s32.totalorder %s134, %s136
    %p140 = scmp.eq.s32.totalorder %s16, 0
    %p141 = por %p139, %p140
    %p142 = scmp.ne.s32.totalorder %s134, %s136
    %p143 = scmp.eq.s32.totalorder %s21, 1
    %p144 = por %p142, %p143
    %p145 = scmp.ne.s32.totalorder %s136, %s137
    %p146 = scmp.eq.s32.totalorder %s21, 0
    %p147 = por %p145, %p146
    %p148 = scmp.ne.s32.totalorder %s136, %s137
    %p149 = scmp.eq.s32.totalorder %s22, 1
    %p150 = por %p148, %p149
    %p152 = scmp.ne.s32.totalorder %s137, %s151
    %p153 = scmp.eq.s32.totalorder %s22, 0
    %p154 = por %p152, %p153
    %s156 = sadd.s32 %s155, 1
    %p159 = scmp.eq.s32.totalorder %s16, 1
    %p160 = scmp.ne.s32.totalorder %s155, %s157
    %p161 = scmp.eq.s32.totalorder %s16, 0
    %p162 = por %p160, %p161
    %p163 = scmp.ne.s32.totalorder %s155, %s157
    %p164 = scmp.eq.s32.totalorder %s21, 1
    %p165 = por %p163, %p164
    %p166 = scmp.ne.s32.totalorder %s157, %s158
    %p167 = scmp.eq.s32.totalorder %s21, 0
    %p168 = por %p166, %p167
    %p169 = scmp.ne.s32.totalorder %s157, %s158
    %p170 = scmp.eq.s32.totalorder %s22, 1
    %p171 = por %p169, %p170
    %p173 = scmp.ne.s32.totalorder %s158, %s172
    %p174 = scmp.eq.s32.totalorder %s22, 0
    %p175 = por %p173, %p174
    %s177 = sadd.s32 %s176, 1
    %p180 = scmp.eq.s32.totalorder %s16, 1
    %p181 = scmp.ne.s32.totalorder %s176, %s178
    %p182 = scmp.eq.s32.totalorder %s16, 0
    %p183 = por %p181, %p182
    %p184 = scmp.ne.s32.totalorder %s176, %s178
    %p185 = scmp.eq.s32.totalorder %s21, 1
    %p186 = por %p184, %p185
    %p187 = scmp.ne.s32.totalorder %s178, %s179
    %p188 = scmp.eq.s32.totalorder %s21, 0
    %p189 = por %p187, %p188
    %p190 = scmp.ne.s32.totalorder %s178, %s179
    %p191 = scmp.eq.s32.totalorder %s22, 1
    %p192 = por %p190, %p191
    %p194 = scmp.ne.s32.totalorder %s179, %s193
    %p195 = scmp.eq.s32.totalorder %s22, 0
    %p196 = por %p194, %p195
    %s198 = sadd.s32 %s197, 1
    %p201 = scmp.eq.s32.totalorder %s16, 1
    %p202 = scmp.ne.s32.totalorder %s197, %s199
    %p203 = scmp.eq.s32.totalorder %s16, 0
    %p204 = por %p202, %p203
    %p205 = scmp.ne.s32.totalorder %s197, %s199
    %p206 = scmp.eq.s32.totalorder %s21, 1
    %p207 = por %p205, %p206
    %p208 = scmp.ne.s32.totalorder %s199, %s200
    %p209 = scmp.eq.s32.totalorder %s21, 0
    %p210 = por %p208, %p209
    %p211 = scmp.ne.s32.totalorder %s199, %s200
    %p212 = scmp.eq.s32.totalorder %s22, 1
    %p213 = por %p211, %p212
    %p215 = scmp.ne.s32.totalorder %s200, %s214
    %p216 = scmp.eq.s32.totalorder %s22, 0
    %p217 = por %p215, %p216
    %s219 = sadd.s32 %s218, 1
    %p222 = scmp.eq.s32.totalorder %s16, 1
    %p223 = scmp.ne.s32.totalorder %s218, %s220
    %p224 = scmp.eq.s32.totalorder %s16, 0
    %p225 = por %p223, %p224
    %p226 = scmp.ne.s32.totalorder %s218, %s220
    %p227 = scmp.eq.s32.totalorder %s21, 1
    %p228 = por %p226, %p227
    %p229 = scmp.ne.s32.totalorder %s220, %s221
    %p230 = scmp.eq.s32.totalorder %s21, 0
    %p231 = por %p229, %p230
    %p232 = scmp.ne.s32.totalorder %s220, %s221
    %p233 = scmp.eq.s32.totalorder %s22, 1
    %p234 = por %p232, %p233
    %p236 = scmp.ne.s32.totalorder %s221, %s235
    %p237 = scmp.eq.s32.totalorder %s22, 0
    %p238 = por %p236, %p237
    %s239 = ssub.s32 %s16, %s23
    %p240 = scmp.eq.s32.totalorder %s239, 0
    %s242 = sadd.s32 %s241, 1
    %s243 = scalar_select %p240, %s241, %s242
    %p246 = pneg %p240
    %p247 = scmp.eq.s32.totalorder %s16, 1
    %p248 = por %p246, %p247
    %p249 = scmp.ne.s32.totalorder %s241, %s244
    %p250 = scmp.eq.s32.totalorder %s16, 0
    %p251 = por %p249, %p250
    %p252 = scmp.ne.s32.totalorder %s241, %s244
    %p253 = scmp.eq.s32.totalorder %s21, 1
    %p254 = por %p252, %p253
    %p255 = scmp.ne.s32.totalorder %s244, %s245
    %p256 = scmp.eq.s32.totalorder %s21, 0
    %p257 = por %p255, %p256
    %p258 = scmp.ne.s32.totalorder %s244, %s245
    %p259 = scmp.eq.s32.totalorder %s22, 1
    %p260 = por %p258, %p259
    %p262 = scmp.ne.s32.totalorder %s245, %s261
    %p263 = scmp.eq.s32.totalorder %s22, 0
    %p264 = por %p262, %p263
    %p265 = scmp.le.s32.totalorder 1, %s16
    %p266 = scmp.lt.s32.totalorder %s16, 3
    %p267 = pnand %p265, %p266
    %p268 = pneg %p267
    // Predicated region
    $region9: #{rfcab_forward.1} parent=5 // pred_check
      _
    $region10: #{rfcab_forward.1} parent=5 // pred_check_branch
      %270 = sbr.rel (%p267) target = $region12
    $region11: #{rfcab_forward.1} parent=5 // pred_region
      %s271 = ssub.s32 %s16, 1
      // Predicated region
      $region13: #{rfcab_forward.1} parent=11 // pred_check
        %p272 = pneg %p63
      $region14: #{rfcab_forward.1} parent=11 // pred_check_branch
        %274 = sbr.rel (%p272) target = $region16
      $region15: #{rfcab_forward.1} parent=11 // pred_region
        _
      $region16: #{rfcab_forward.1} parent=11 // pred_fallthru
        _
      // Predicated region
      $region17: #{rfcab_forward.1} parent=11 // pred_check
        %p275 = pneg %p84
      $region18: #{rfcab_forward.1} parent=11 // pred_check_branch
        %277 = sbr.rel (%p275) target = $region20
      $region19: #{rfcab_forward.1} parent=11 // pred_region
        _
      $region20: #{rfcab_forward.1} parent=11 // pred_fallthru
        _
      // Predicated region
      $region21: #{rfcab_forward.1} parent=11 // pred_check
        %p278 = pneg %p105
      $region22: #{rfcab_forward.1} parent=11 // pred_check_branch
        %280 = sbr.rel (%p278) target = $region24
      $region23: #{rfcab_forward.1} parent=11 // pred_region
        _
      $region24: #{rfcab_forward.1} parent=11 // pred_fallthru
        _
      // Predicated region
      $region25: #{rfcab_forward.1} parent=11 // pred_check
        %p281 = pneg %p126
      $region26: #{rfcab_forward.1} parent=11 // pred_check_branch
        %283 = sbr.rel (%p281) target = $region28
      $region27: #{rfcab_forward.1} parent=11 // pred_region
        _
      $region28: #{rfcab_forward.1} parent=11 // pred_fallthru
        _
      // Predicated region
      $region29: #{rfcab_forward.1} parent=11 // pred_check
        %p284 = pneg %p147
      $region30: #{rfcab_forward.1} parent=11 // pred_check_branch
        %286 = sbr.rel (%p284) target = $region32
      $region31: #{rfcab_forward.1} parent=11 // pred_region
        _
      $region32: #{rfcab_forward.1} parent=11 // pred_fallthru
        _
      // Predicated region
      $region33: #{rfcab_forward.1} parent=11 // pred_check
        %p287 = pneg %p168
      $region34: #{rfcab_forward.1} parent=11 // pred_check_branch
        %289 = sbr.rel (%p287) target = $region36
      $region35: #{rfcab_forward.1} parent=11 // pred_region
        _
      $region36: #{rfcab_forward.1} parent=11 // pred_fallthru
        _
      // Predicated region
      $region37: #{rfcab_forward.1} parent=11 // pred_check
        %p290 = pneg %p189
      $region38: #{rfcab_forward.1} parent=11 // pred_check_branch
        %292 = sbr.rel (%p290) target = $region40
      $region39: #{rfcab_forward.1} parent=11 // pred_region
        _
      $region40: #{rfcab_forward.1} parent=11 // pred_fallthru
        _
      // Predicated region
      $region41: #{rfcab_forward.1} parent=11 // pred_check
        %p293 = pneg %p210
      $region42: #{rfcab_forward.1} parent=11 // pred_check_branch
        %295 = sbr.rel (%p293) target = $region44
      $region43: #{rfcab_forward.1} parent=11 // pred_region
        _
      $region44: #{rfcab_forward.1} parent=11 // pred_fallthru
        _
      // Predicated region
      $region45: #{rfcab_forward.1} parent=11 // pred_check
        %p296 = pneg %p231
      $region46: #{rfcab_forward.1} parent=11 // pred_check_branch
        %298 = sbr.rel (%p296) target = $region48
      $region47: #{rfcab_forward.1} parent=11 // pred_region
        _
      $region48: #{rfcab_forward.1} parent=11 // pred_fallthru
        _
    $region12: #{rfcab_forward.1} parent=5 // pred_fallthru
      _
    %p299 = scmp.lt.s32.totalorder %s16, 2
    // Predicated region
    $region49: #{rfcab_forward.1} parent=5 // pred_check
      %p300 = pneg %p299
    $region50: #{rfcab_forward.1} parent=5 // pred_check_branch
      %302 = sbr.rel (%p300) target = $region52
    $region51: #{rfcab_forward.1} parent=5 // pred_region
      // Predicated region
      $region53: #{rfcab_forward.1} parent=51 // pred_check
        %p303 = pneg %p36
      $region54: #{rfcab_forward.1} parent=51 // pred_check_branch
        %305 = sbr.rel (%p303) target = $region56
      $region55: #{rfcab_forward.1} parent=51 // pred_region
        %s306 = smul.u32 2, %s16
        %p307 = scmp.lt.s32.totalorder %s306, 3
        %s308 = scalar_select %p307, %s306, 3
        %s309 = smul.addr %s308, 4
        %s310 = smul.addr %s309, 8
        %s311 = scalar_lea.vmem %s0, %s310
        %s312 = smul.u32 2, %s16
      $region56: #{rfcab_forward.1} parent=51 // pred_fallthru
        _
    $region52: #{rfcab_forward.1} parent=5 // pred_fallthru
      _
    %p313 = scmp.le.s32.totalorder 1, %s16
    %p314 = scmp.lt.s32.totalorder %s16, 3
    %p315 = pnand %p313, %p314
    %p316 = pneg %p315
    // Predicated region
    $region57: #{rfcab_forward.1} parent=5 // pred_check
      _
    $region58: #{rfcab_forward.1} parent=5 // pred_check_branch
      %318 = sbr.rel (%p315) target = $region60
    $region59: #{rfcab_forward.1} parent=5 // pred_region
      %s319 = ssub.s32 %s16, 1
      %s320 = smul.u32 2, %s21
      %p321 = scmp.lt.s32.totalorder %s320, 3
      %s322 = scalar_select %p321, %s320, 3
      %s323 = smul.addr %s322, 4
      %s324 = smul.addr %s323, 8
      %s325 = scalar_lea.vmem %s0, %s324
      %p326 = pneg %p42
      %p327 = pneg %p39
      %p328 = pneg %p63
      %p329 = pneg %p60
      %p330 = pneg %p84
      %p331 = pneg %p81
      %p332 = pneg %p105
      %p333 = pneg %p102
      %p334 = pneg %p126
      %p335 = pneg %p123
      %p336 = pneg %p147
      %p337 = pneg %p144
      %p338 = pneg %p168
      %p339 = pneg %p165
      %p340 = pneg %p189
      %p341 = pneg %p186
      %p342 = pneg %p210
      %p343 = pneg %p207
      %p344 = pneg %p231
      %p345 = pneg %p228
      %p346 = pneg %p257
      %p347 = pneg %p254
      %s348 = smul.u32 2, %s21
      %p349 = scmp.lt.s32.totalorder %s348, 3
      %s350 = scalar_select %p349, %s348, 3
      %s351 = smul.addr %s350, 4
      %s352 = smul.addr %s351, 8
      %s353 = scalar_lea.vmem %s10, %s352
      %s354 = smul.u32 2, %s21
      %p355 = scmp.lt.s32.totalorder %s354, 3
      %s356 = scalar_select %p355, %s354, 3
      %s357 = smul.addr %s356, 4
      %s358 = smul.addr %s357, 8
      %s359 = scalar_lea.vmem %s0, %s358
      %s360 = smul.u32 2, %s21
      %s361 = smul.u32 2, %s21
      %p362 = scmp.lt.s32.totalorder %s361, 3
      %s363 = scalar_select %p362, %s361, 3
      %s364 = smul.addr %s363, 4
      %s365 = smul.addr %s364, 8
      %s366 = scalar_lea.vmem %s10, %s365
      %s367 = smul.u32 2, %s21
      %v369 = vld [vmem:[%s1] sm:$0xff]
      %v370 = vld [vmem:[%s359] sm:$0xff]
      %v371 = vld [vmem:[%s359 + $0x8] sm:$0xff]
      %v372 = vld [vmem:[%s359 + $0x10] sm:$0xff]
      %v373 = vld [vmem:[%s359 + $0x18] sm:$0xff]
      %374 = vrot.lane.b32.xlu0 %v370, 1
      %v375 = vpop.permute.xlu0 %374
      %376 = vrot.lane.b32.xlu0 %v372, 1
      %v377 = vpop.permute.xlu0 %376
      %378 = vrot.lane.b32.xlu0 %v371, 1
      %v379 = vpop.permute.xlu0 %378
      %380 = vrot.lane.b32.xlu0 %v373, 1
      %v381 = vpop.permute.xlu0 %380
      %v382 = vlaneseq
      %v383 = vand.u32 %v382, 127
      %vm384 = vcmp.lt.s32.totalorder %v383, 1
      %v385 = vsel %vm384, %v375, %v379
      %v386 = vsel %vm384, %v377, %v381
      %v387 = vsel %vm384, %v379, %v375
      %v388 = vsel %vm384, %v381, %v377
      %v390 = vlaneseq
      %v391 = vshrl.u32 %v390, 7
      %v392 = vsub.s32 0, %v391
      %v393 = vrot.slane %v369, %v392
      %v394 = vlaneseq
      %v395 = vshrl.u32 %v394, 7
      %v396 = vsub.s32 4, %v395
      %v397 = vrot.slane %v369, %v396
      %v400 = vlaneseq
      %v401 = vshrl.u32 %v400, 7
      %v402 = vsub.s32 0, %v401
      %v403 = vrot.slane %v393, %v402
      %v404 = vlaneseq
      %v405 = vshrl.u32 %v404, 7
      %v406 = vsub.s32 0, %v405
      %v407 = vrot.slane %v397, %v406
      %v408 = vmul.f32 %v403, %v387
      %v409 = vmul.f32 %v407, %v385
      %v410 = vmul.f32 %v403, %v388
      %v411 = vmul.f32 %v407, %v386
      %412 = vrot.lane.b32.xlu0 %v370, 127
      %v413 = vpop.permute.xlu0 %412
      %414 = vrot.lane.b32.xlu0 %v372, 127
      %v415 = vpop.permute.xlu0 %414
      %416 = vrot.lane.b32.xlu0 %v371, 127
      %v417 = vpop.permute.xlu0 %416
      %418 = vrot.lane.b32.xlu0 %v373, 127
      %v419 = vpop.permute.xlu0 %418
      %vm420 = vcmp.lt.s32.totalorder %v383, 127
      %v421 = vsel %vm420, %v413, %v417
      %v422 = vsel %vm420, %v415, %v419
      %v423 = vsel %vm420, %v417, %v413
      %v424 = vsel %vm420, %v419, %v415
      %v425 = vlaneseq
      %v426 = vshrl.u32 %v425, 7
      %v427 = vsub.s32 1, %v426
      %v428 = vrot.slane %v369, %v427
      %v429 = vlaneseq
      %v430 = vshrl.u32 %v429, 7
      %v431 = vsub.s32 5, %v430
      %v432 = vrot.slane %v369, %v431
      %v435 = vlaneseq
      %v436 = vshrl.u32 %v435, 7
      %v437 = vsub.s32 1, %v436
      %v438 = vrot.slane %v428, %v437
      %v439 = vlaneseq
      %v440 = vshrl.u32 %v439, 7
      %v441 = vsub.s32 1, %v440
      %v442 = vrot.slane %v432, %v441
      %v443 = vmul.f32 %v438, %v421
      %v444 = vmul.f32 %v442, %v423
      %v445 = vmul.f32 %v438, %v422
      %v446 = vmul.f32 %v442, %v424
      %s447 = scalar_lea.vmem %s2, 24
      %v448 = vld [vmem:[%s447] sm:$0xf]
      %v449 = vld [vmem:[%s447 + $0x4] sm:$0xf]
      %v450 = vpack.c.bf16 %v410, %v408
      %v451 = vpack.c.bf16 %v411, %v409
      %s452 = scalar_lea.vmem %s2, 32
      %v453 = vld [vmem:[%s452] sm:$0xf]
      %v454 = vld [vmem:[%s452 + $0x4] sm:$0xf]
      %v455 = vpack.c.bf16 %v372, %v370
      %v456 = vpack.c.bf16 %v373, %v371
      %v459 = vunpack.c.l.b16 %v453
      %v460 = vunpack.c.l.b16 %v454
      %v461 = vpack.c.b16 %v460, %v459
      %vm462 = vcmask 130048
      %v464 = vsel %vm462, %v461, 0
      %466 = vmatprep.subr.bf16.mxu0 %v456
      %467 = vmatpush1.bf16.msra.mxu0 %v455
      %468 = vmatprep.subr.bf16.mxu0 0
      %469 = vmatpush1.bf16.msra.mxu0 0
      %470 = vmatprep.subr.bf16.mxu0 0
      %471 = vmatpush1.bf16.msra.mxu0 0
      %472 = vmatprep.subr.bf16.mxu0 0
      %473 = vmatpush1.bf16.msra.mxu0 0
      %474 = vmatprep.subr.bf16.mxu0 0
      %475 = vmatpush1.bf16.msra.mxu0 0
      %476 = vmatprep.subr.bf16.mxu0 0
      %477 = vmatpush1.bf16.msra.mxu0 0
      %478 = vmatprep.subr.bf16.mxu0 0
      %479 = vmatpush1.bf16.msra.mxu0 0
      %480 = vmatprep.subr.bf16.mxu0 0
      %481 = vmatpush1.bf16.msra.mxu0 0
      %482 = vmatprep.subr.bf16.mxu0 0
      %483 = vmatpush1.bf16.msra.mxu0 0
      %484 = vmatprep.subr.bf16.mxu0 0
      %485 = vmatpush1.bf16.msra.mxu0 0
      %486 = vmatprep.subr.bf16.mxu0 0
      %487 = vmatpush1.bf16.msra.mxu0 0
      %488 = vmatprep.subr.bf16.mxu0 0
      %489 = vmatpush1.bf16.msra.mxu0 0
      %490 = vmatprep.subr.bf16.mxu0 0
      %491 = vmatpush1.bf16.msra.mxu0 0
      %492 = vmatprep.subr.bf16.mxu0 0
      %493 = vmatpush1.bf16.msra.mxu0 0
      %494 = vmatprep.subr.bf16.mxu0 0
      %495 = vmatpush1.bf16.msra.mxu0 0
      %496 = vmatprep.subr.bf16.mxu0 0
      %497 = vmatpush1.bf16.msra.mxu0 0
      %498 = vmatprep.mubr.bf16.mxu0 0
      %499 = vmatmul.mubr.bf16.gmra.mrb[0].mxu0 %v464
      %v500 = vpop.f32.mrb[0].mxu0
      %v501 = vadd.f32 0.0, %v500
      %v502 = vpop.f32.mrb[0].mxu0
      %v503 = vadd.f32 0.0, %v502
      %v504 = vpop.f32.mrb[0].mxu0
      %v505 = vadd.f32 0.0, %v504
      %v506 = vpop.f32.mrb[0].mxu0
      %v507 = vadd.f32 0.0, %v506
      %508 = vdwg.mxu0
      %v511 = vunpack.c.l.b16 %v448
      %v512 = vunpack.c.l.b16 %v449
      %v513 = vpack.c.b16 %v512, %v511
      %v515 = vsel %vm462, %v513, 0
      %517 = vmatprep.subr.bf16.mxu0 %v451
      %518 = vmatpush1.bf16.msra.mxu0 %v450
      %519 = vmatprep.subr.bf16.mxu0 0
      %520 = vmatpush1.bf16.msra.mxu0 0
      %521 = vmatprep.subr.bf16.mxu0 0
      %522 = vmatpush1.bf16.msra.mxu0 0
      %523 = vmatprep.subr.bf16.mxu0 0
      %524 = vmatpush1.bf16.msra.mxu0 0
      %525 = vmatprep.subr.bf16.mxu0 0
      %526 = vmatpush1.bf16.msra.mxu0 0
      %527 = vmatprep.subr.bf16.mxu0 0
      %528 = vmatpush1.bf16.msra.mxu0 0
      %529 = vmatprep.subr.bf16.mxu0 0
      %530 = vmatpush1.bf16.msra.mxu0 0
      %531 = vmatprep.subr.bf16.mxu0 0
      %532 = vmatpush1.bf16.msra.mxu0 0
      %533 = vmatprep.subr.bf16.mxu0 0
      %534 = vmatpush1.bf16.msra.mxu0 0
      %535 = vmatprep.subr.bf16.mxu0 0
      %536 = vmatpush1.bf16.msra.mxu0 0
      %537 = vmatprep.subr.bf16.mxu0 0
      %538 = vmatpush1.bf16.msra.mxu0 0
      %539 = vmatprep.subr.bf16.mxu0 0
      %540 = vmatpush1.bf16.msra.mxu0 0
      %541 = vmatprep.subr.bf16.mxu0 0
      %542 = vmatpush1.bf16.msra.mxu0 0
      %543 = vmatprep.subr.bf16.mxu0 0
      %544 = vmatpush1.bf16.msra.mxu0 0
      %545 = vmatprep.subr.bf16.mxu0 0
      %546 = vmatpush1.bf16.msra.mxu0 0
      %547 = vmatprep.subr.bf16.mxu0 0
      %548 = vmatpush1.bf16.msra.mxu0 0
      %549 = vmatprep.mubr.bf16.mxu0 0
      %550 = vmatmul.mubr.bf16.gmra.mrb[0].mxu0 %v515
      %v551 = vpop.f32.mrb[0].mxu0
      %v552 = vadd.f32 %v501, %v551
      %v553 = vpop.f32.mrb[0].mxu0
      %v554 = vadd.f32 %v503, %v553
      %v555 = vpop.f32.mrb[0].mxu0
      %v556 = vadd.f32 %v505, %v555
      %v557 = vpop.f32.mrb[0].mxu0
      %v558 = vadd.f32 %v507, %v557
      %559 = vdwg.mxu0
      %s560 = scalar_lea.vmem %s2, 40
      %v561 = vld [vmem:[%s560] sm:$0xf]
      %v562 = vld [vmem:[%s560 + $0x4] sm:$0xf]
      %v563 = vpack.c.bf16 %v445, %v443
      %v564 = vpack.c.bf16 %v446, %v444
      %v567 = vunpack.c.l.b16 %v561
      %v568 = vunpack.c.l.b16 %v562
      %v569 = vpack.c.b16 %v568, %v567
      %v571 = vsel %vm462, %v569, 0
      %573 = vmatprep.subr.bf16.mxu0 %v564
      %574 = vmatpush1.bf16.msra.mxu0 %v563
      %575 = vmatprep.subr.bf16.mxu0 0
      %576 = vmatpush1.bf16.msra.mxu0 0
      %577 = vmatprep.subr.bf16.mxu0 0
      %578 = vmatpush1.bf16.msra.mxu0 0
      %579 = vmatprep.subr.bf16.mxu0 0
      %580 = vmatpush1.bf16.msra.mxu0 0
      %581 = vmatprep.subr.bf16.mxu0 0
      %582 = vmatpush1.bf16.msra.mxu0 0
      %583 = vmatprep.subr.bf16.mxu0 0
      %584 = vmatpush1.bf16.msra.mxu0 0
      %585 = vmatprep.subr.bf16.mxu0 0
      %586 = vmatpush1.bf16.msra.mxu0 0
      %587 = vmatprep.subr.bf16.mxu0 0
      %588 = vmatpush1.bf16.msra.mxu0 0
      %589 = vmatprep.subr.bf16.mxu0 0
      %590 = vmatpush1.bf16.msra.mxu0 0
      %591 = vmatprep.subr.bf16.mxu0 0
      %592 = vmatpush1.bf16.msra.mxu0 0
      %593 = vmatprep.subr.bf16.mxu0 0
      %594 = vmatpush1.bf16.msra.mxu0 0
      %595 = vmatprep.subr.bf16.mxu0 0
      %596 = vmatpush1.bf16.msra.mxu0 0
      %597 = vmatprep.subr.bf16.mxu0 0
      %598 = vmatpush1.bf16.msra.mxu0 0
      %599 = vmatprep.subr.bf16.mxu0 0
      %600 = vmatpush1.bf16.msra.mxu0 0
      %601 = vmatprep.subr.bf16.mxu0 0
      %602 = vmatpush1.bf16.msra.mxu0 0
      %603 = vmatprep.subr.bf16.mxu0 0
      %604 = vmatpush1.bf16.msra.mxu0 0
      %605 = vmatprep.mubr.bf16.mxu0 0
      %606 = vmatmul.mubr.bf16.gmra.mrb[0].mxu0 %v571
      %v607 = vpop.f32.mrb[0].mxu0
      %v608 = vadd.f32 0.0, %v607
      %v609 = vpop.f32.mrb[0].mxu0
      %v610 = vadd.f32 0.0, %v609
      %v611 = vpop.f32.mrb[0].mxu0
      %v612 = vadd.f32 0.0, %v611
      %v613 = vpop.f32.mrb[0].mxu0
      %v614 = vadd.f32 0.0, %v613
      %615 = vdwg.mxu0
      %v616 = vadd.f32 %v552, %v608
      %v617 = vadd.f32 %v554, %v610
      %v618 = vadd.f32 %v556, %v612
      %v619 = vadd.f32 %v558, %v614
      %620 = vrot.lane.b32.xlu0 %v408, 16
      %v621 = vpop.permute.xlu0 %620
      %622 = vrot.lane.b32.xlu0 %v410, 16
      %v623 = vpop.permute.xlu0 %622
      %624 = vrot.lane.b32.xlu0 %v409, 16
      %v625 = vpop.permute.xlu0 %624
      %626 = vrot.lane.b32.xlu0 %v411, 16
      %v627 = vpop.permute.xlu0 %626
      %vm628 = vcmp.lt.s32.totalorder %v383, 16
      %v629 = vsel %vm628, %v621, %v625
      %v630 = vsel %vm628, %v623, %v627
      %v631 = vsel %vm628, %v625, %v621
      %v632 = vsel %vm628, %v627, %v623
      %v633 = vld [vmem:[%s2] sm:$0xf]
      %v634 = vld [vmem:[%s2 + $0x4] sm:$0xf]
      %v635 = vpack.c.bf16 %v632, %v631
      %v636 = vpack.c.bf16 %v630, %v629
      %637 = vrot.lane.b32.xlu0 %v370, 16
      %v638 = vpop.permute.xlu0 %637
      %639 = vrot.lane.b32.xlu0 %v372, 16
      %v640 = vpop.permute.xlu0 %639
      %641 = vrot.lane.b32.xlu0 %v371, 16
      %v642 = vpop.permute.xlu0 %641
      %643 = vrot.lane.b32.xlu0 %v373, 16
      %v644 = vpop.permute.xlu0 %643
      %v645 = vsel %vm628, %v638, %v642
      %v646 = vsel %vm628, %v640, %v644
      %v647 = vsel %vm628, %v642, %v638
      %v648 = vsel %vm628, %v644, %v640
      %s649 = scalar_lea.vmem %s2, 8
      %v650 = vld [vmem:[%s649] sm:$0xf]
      %v651 = vld [vmem:[%s649 + $0x4] sm:$0xf]
      %v652 = vpack.c.bf16 %v648, %v647
      %v653 = vpack.c.bf16 %v646, %v645
      %v656 = vunpack.c.l.b16 %v650
      %v657 = vunpack.c.l.b16 %v651
      %v658 = vpack.c.b16 %v657, %v656
      %v660 = vsel %vm462, %v658, 0
      %662 = vmatprep.subr.bf16.mxu0 %v653
      %663 = vmatpush1.bf16.msra.mxu0 %v652
      %664 = vmatprep.subr.bf16.mxu0 0
      %665 = vmatpush1.bf16.msra.mxu0 0
      %666 = vmatprep.subr.bf16.mxu0 0
      %667 = vmatpush1.bf16.msra.mxu0 0
      %668 = vmatprep.subr.bf16.mxu0 0
      %669 = vmatpush1.bf16.msra.mxu0 0
      %670 = vmatprep.subr.bf16.mxu0 0
      %671 = vmatpush1.bf16.msra.mxu0 0
      %672 = vmatprep.subr.bf16.mxu0 0
      %673 = vmatpush1.bf16.msra.mxu0 0
      %674 = vmatprep.subr.bf16.mxu0 0
      %675 = vmatpush1.bf16.msra.mxu0 0
      %676 = vmatprep.subr.bf16.mxu0 0
      %677 = vmatpush1.bf16.msra.mxu0 0
      %678 = vmatprep.subr.bf16.mxu0 0
      %679 = vmatpush1.bf16.msra.mxu0 0
      %680 = vmatprep.subr.bf16.mxu0 0
      %681 = vmatpush1.bf16.msra.mxu0 0
      %682 = vmatprep.subr.bf16.mxu0 0
      %683 = vmatpush1.bf16.msra.mxu0 0
      %684 = vmatprep.subr.bf16.mxu0 0
      %685 = vmatpush1.bf16.msra.mxu0 0
      %686 = vmatprep.subr.bf16.mxu0 0
      %687 = vmatpush1.bf16.msra.mxu0 0
      %688 = vmatprep.subr.bf16.mxu0 0
      %689 = vmatpush1.bf16.msra.mxu0 0
      %690 = vmatprep.subr.bf16.mxu0 0
      %691 = vmatpush1.bf16.msra.mxu0 0
      %692 = vmatprep.subr.bf16.mxu0 0
      %693 = vmatpush1.bf16.msra.mxu0 0
      %694 = vmatprep.mubr.bf16.mxu0 0
      %695 = vmatmul.mubr.bf16.gmra.mrb[0].mxu0 %v660
      %v696 = vpop.f32.mrb[0].mxu0
      %v697 = vadd.f32 0.0, %v696
      %v698 = vpop.f32.mrb[0].mxu0
      %v699 = vadd.f32 0.0, %v698
      %v700 = vpop.f32.mrb[0].mxu0
      %v701 = vadd.f32 0.0, %v700
      %v702 = vpop.f32.mrb[0].mxu0
      %v703 = vadd.f32 0.0, %v702
      %704 = vdwg.mxu0
      %v707 = vunpack.c.l.b16 %v633
      %v708 = vunpack.c.l.b16 %v634
      %v709 = vpack.c.b16 %v708, %v707
      %v711 = vsel %vm462, %v709, 0
      %713 = vmatprep.subr.bf16.mxu0 %v636
      %714 = vmatpush1.bf16.msra.mxu0 %v635
      %715 = vmatprep.subr.bf16.mxu0 0
      %716 = vmatpush1.bf16.msra.mxu0 0
      %717 = vmatprep.subr.bf16.mxu0 0
      %718 = vmatpush1.bf16.msra.mxu0 0
      %719 = vmatprep.subr.bf16.mxu0 0
      %720 = vmatpush1.bf16.msra.mxu0 0
      %721 = vmatprep.subr.bf16.mxu0 0
      %722 = vmatpush1.bf16.msra.mxu0 0
      %723 = vmatprep.subr.bf16.mxu0 0
      %724 = vmatpush1.bf16.msra.mxu0 0
      %725 = vmatprep.subr.bf16.mxu0 0
      %726 = vmatpush1.bf16.msra.mxu0 0
      %727 = vmatprep.subr.bf16.mxu0 0
      %728 = vmatpush1.bf16.msra.mxu0 0
      %729 = vmatprep.subr.bf16.mxu0 0
      %730 = vmatpush1.bf16.msra.mxu0 0
      %731 = vmatprep.subr.bf16.mxu0 0
      %732 = vmatpush1.bf16.msra.mxu0 0
      %733 = vmatprep.subr.bf16.mxu0 0
      %734 = vmatpush1.bf16.msra.mxu0 0
      %735 = vmatprep.subr.bf16.mxu0 0
      %736 = vmatpush1.bf16.msra.mxu0 0
      %737 = vmatprep.subr.bf16.mxu0 0
      %738 = vmatpush1.bf16.msra.mxu0 0
      %739 = vmatprep.subr.bf16.mxu0 0
      %740 = vmatpush1.bf16.msra.mxu0 0
      %741 = vmatprep.subr.bf16.mxu0 0
      %742 = vmatpush1.bf16.msra.mxu0 0
      %743 = vmatprep.subr.bf16.mxu0 0
      %744 = vmatpush1.bf16.msra.mxu0 0
      %745 = vmatprep.mubr.bf16.mxu0 0
      %746 = vmatmul.mubr.bf16.gmra.mrb[0].mxu0 %v711
      %v747 = vpop.f32.mrb[0].mxu0
      %v748 = vadd.f32 %v697, %v747
      %v749 = vpop.f32.mrb[0].mxu0
      %v750 = vadd.f32 %v699, %v749
      %v751 = vpop.f32.mrb[0].mxu0
      %v752 = vadd.f32 %v701, %v751
      %v753 = vpop.f32.mrb[0].mxu0
      %v754 = vadd.f32 %v703, %v753
      %755 = vdwg.mxu0
      %756 = vrot.lane.b32.xlu0 %v443, 16
      %v757 = vpop.permute.xlu0 %756
      %758 = vrot.lane.b32.xlu0 %v445, 16
      %v759 = vpop.permute.xlu0 %758
      %760 = vrot.lane.b32.xlu0 %v444, 16
      %v761 = vpop.permute.xlu0 %760
      %762 = vrot.lane.b32.xlu0 %v446, 16
      %v763 = vpop.permute.xlu0 %762
      %v764 = vsel %vm628, %v757, %v761
      %v765 = vsel %vm628, %v759, %v763
      %v766 = vsel %vm628, %v761, %v757
      %v767 = vsel %vm628, %v763, %v759
      %s768 = scalar_lea.vmem %s2, 16
      %v769 = vld [vmem:[%s768] sm:$0xf]
      %v770 = vld [vmem:[%s768 + $0x4] sm:$0xf]
      %v771 = vpack.c.bf16 %v767, %v766
      %v772 = vpack.c.bf16 %v765, %v764
      %v775 = vunpack.c.l.b16 %v769
      %v776 = vunpack.c.l.b16 %v770
      %v777 = vpack.c.b16 %v776, %v775
      %v779 = vsel %vm462, %v777, 0
      %781 = vmatprep.subr.bf16.mxu0 %v772
      %782 = vmatpush1.bf16.msra.mxu0 %v771
      %783 = vmatprep.subr.bf16.mxu0 0
      %784 = vmatpush1.bf16.msra.mxu0 0
      %785 = vmatprep.subr.bf16.mxu0 0
      %786 = vmatpush1.bf16.msra.mxu0 0
      %787 = vmatprep.subr.bf16.mxu0 0
      %788 = vmatpush1.bf16.msra.mxu0 0
      %789 = vmatprep.subr.bf16.mxu0 0
      %790 = vmatpush1.bf16.msra.mxu0 0
      %791 = vmatprep.subr.bf16.mxu0 0
      %792 = vmatpush1.bf16.msra.mxu0 0
      %793 = vmatprep.subr.bf16.mxu0 0
      %794 = vmatpush1.bf16.msra.mxu0 0
      %795 = vmatprep.subr.bf16.mxu0 0
      %796 = vmatpush1.bf16.msra.mxu0 0
      %797 = vmatprep.subr.bf16.mxu0 0
      %798 = vmatpush1.bf16.msra.mxu0 0
      %799 = vmatprep.subr.bf16.mxu0 0
      %800 = vmatpush1.bf16.msra.mxu0 0
      %801 = vmatprep.subr.bf16.mxu0 0
      %802 = vmatpush1.bf16.msra.mxu0 0
      %803 = vmatprep.subr.bf16.mxu0 0
      %804 = vmatpush1.bf16.msra.mxu0 0
      %805 = vmatprep.subr.bf16.mxu0 0
      %806 = vmatpush1.bf16.msra.mxu0 0
      %807 = vmatprep.subr.bf16.mxu0 0
      %808 = vmatpush1.bf16.msra.mxu0 0
      %809 = vmatprep.subr.bf16.mxu0 0
      %810 = vmatpush1.bf16.msra.mxu0 0
      %811 = vmatprep.subr.bf16.mxu0 0
      %812 = vmatpush1.bf16.msra.mxu0 0
      %813 = vmatprep.mubr.bf16.mxu0 0
      %814 = vmatmul.mubr.bf16.gmra.mrb[0].mxu0 %v779
      %v815 = vpop.f32.mrb[0].mxu0
      %v816 = vadd.f32 0.0, %v815
      %v817 = vpop.f32.mrb[0].mxu0
      %v818 = vadd.f32 0.0, %v817
      %v819 = vpop.f32.mrb[0].mxu0
      %v820 = vadd.f32 0.0, %v819
      %v821 = vpop.f32.mrb[0].mxu0
      %v822 = vadd.f32 0.0, %v821
      %823 = vdwg.mxu0
      %v824 = vadd.f32 %v748, %v816
      %v825 = vadd.f32 %v750, %v818
      %v826 = vadd.f32 %v752, %v820
      %v827 = vadd.f32 %v754, %v822
      %v828 = vlaneseq
      %v829 = vshrl.u32 %v828, 7
      %v830 = vsub.s32 2, %v829
      %v831 = vrot.slane %v369, %v830
      %v832 = vlaneseq
      %v833 = vshrl.u32 %v832, 7
      %v834 = vsub.s32 6, %v833
      %v835 = vrot.slane %v369, %v834
      %v838 = vlaneseq
      %v839 = vshrl.u32 %v838, 7
      %v840 = vsub.s32 2, %v839
      %v841 = vrot.slane %v831, %v840
      %v842 = vlaneseq
      %v843 = vshrl.u32 %v842, 7
      %v844 = vsub.s32 2, %v843
      %v845 = vrot.slane %v835, %v844
      %v846 = vmul.f32 %v841, %v824
      %v847 = vmul.f32 %v845, %v825
      %v848 = vmul.f32 %v841, %v826
      %v849 = vmul.f32 %v845, %v827
      %v850 = vadd.f32 %v616, %v846
      %v851 = vadd.f32 %v617, %v847
      %v852 = vadd.f32 %v618, %v848
      %v853 = vadd.f32 %v619, %v849
      %854 = vrot.lane.b32.xlu0 %v408, 112
      %v855 = vpop.permute.xlu0 %854
      %856 = vrot.lane.b32.xlu0 %v410, 112
      %v857 = vpop.permute.xlu0 %856
      %858 = vrot.lane.b32.xlu0 %v409, 112
      %v859 = vpop.permute.xlu0 %858
      %860 = vrot.lane.b32.xlu0 %v411, 112
      %v861 = vpop.permute.xlu0 %860
      %vm862 = vcmp.lt.s32.totalorder %v383, 112
      %v863 = vsel %vm862, %v855, %v859
      %v864 = vsel %vm862, %v857, %v861
      %v865 = vsel %vm862, %v859, %v855
      %v866 = vsel %vm862, %v861, %v857
      %s867 = scalar_lea.vmem %s2, 48
      %v868 = vld [vmem:[%s867] sm:$0xf]
      %v869 = vld [vmem:[%s867 + $0x4] sm:$0xf]
      %v870 = vpack.c.bf16 %v864, %v863
      %v871 = vpack.c.bf16 %v866, %v865
      %872 = vrot.lane.b32.xlu0 %v370, 112
      %v873 = vpop.permute.xlu0 %872
      %874 = vrot.lane.b32.xlu0 %v372, 112
      %v875 = vpop.permute.xlu0 %874
      %876 = vrot.lane.b32.xlu0 %v371, 112
      %v877 = vpop.permute.xlu0 %876
      %878 = vrot.lane.b32.xlu0 %v373, 112
      %v879 = vpop.permute.xlu0 %878
      %v880 = vsel %vm862, %v873, %v877
      %v881 = vsel %vm862, %v875, %v879
      %v882 = vsel %vm862, %v877, %v873
      %v883 = vsel %vm862, %v879, %v875
      %s884 = scalar_lea.vmem %s2, 56
      %v885 = vld [vmem:[%s884] sm:$0xf]
      %v886 = vld [vmem:[%s884 + $0x4] sm:$0xf]
      %v887 = vpack.c.bf16 %v881, %v880
      %v888 = vpack.c.bf16 %v883, %v882
      %v891 = vunpack.c.l.b16 %v885
      %v892 = vunpack.c.l.b16 %v886
      %v893 = vpack.c.b16 %v892, %v891
      %v895 = vsel %vm462, %v893, 0
      %897 = vmatprep.subr.bf16.mxu0 %v888
      %898 = vmatpush1.bf16.msra.mxu0 %v887
      %899 = vmatprep.subr.bf16.mxu0 0
      %900 = vmatpush1.bf16.msra.mxu0 0
      %901 = vmatprep.subr.bf16.mxu0 0
      %902 = vmatpush1.bf16.msra.mxu0 0
      %903 = vmatprep.subr.bf16.mxu0 0
      %904 = vmatpush1.bf16.msra.mxu0 0
      %905 = vmatprep.subr.bf16.mxu0 0
      %906 = vmatpush1.bf16.msra.mxu0 0
      %907 = vmatprep.subr.bf16.mxu0 0
      %908 = vmatpush1.bf16.msra.mxu0 0
      %909 = vmatprep.subr.bf16.mxu0 0
      %910 = vmatpush1.bf16.msra.mxu0 0
      %911 = vmatprep.subr.bf16.mxu0 0
      %912 = vmatpush1.bf16.msra.mxu0 0
      %913 = vmatprep.subr.bf16.mxu0 0
      %914 = vmatpush1.bf16.msra.mxu0 0
      %915 = vmatprep.subr.bf16.mxu0 0
      %916 = vmatpush1.bf16.msra.mxu0 0
      %917 = vmatprep.subr.bf16.mxu0 0
      %918 = vmatpush1.bf16.msra.mxu0 0
      %919 = vmatprep.subr.bf16.mxu0 0
      %920 = vmatpush1.bf16.msra.mxu0 0
      %921 = vmatprep.subr.bf16.mxu0 0
      %922 = vmatpush1.bf16.msra.mxu0 0
      %923 = vmatprep.subr.bf16.mxu0 0
      %924 = vmatpush1.bf16.msra.mxu0 0
      %925 = vmatprep.subr.bf16.mxu0 0
      %926 = vmatpush1.bf16.msra.mxu0 0
      %927 = vmatprep.subr.bf16.mxu0 0
      %928 = vmatpush1.bf16.msra.mxu0 0
      %929 = vmatprep.mubr.bf16.mxu0 0
      %930 = vmatmul.mubr.bf16.gmra.mrb[0].mxu0 %v895
      %v931 = vpop.f32.mrb[0].mxu0
      %v932 = vadd.f32 0.0, %v931
      %v933 = vpop.f32.mrb[0].mxu0
      %v934 = vadd.f32 0.0, %v933
      %v935 = vpop.f32.mrb[0].mxu0
      %v936 = vadd.f32 0.0, %v935
      %v937 = vpop.f32.mrb[0].mxu0
      %v938 = vadd.f32 0.0, %v937
      %939 = vdwg.mxu0
      %v942 = vunpack.c.l.b16 %v868
      %v943 = vunpack.c.l.b16 %v869
      %v944 = vpack.c.b16 %v943, %v942
      %v946 = vsel %vm462, %v944, 0
      %948 = vmatprep.subr.bf16.mxu0 %v871
      %949 = vmatpush1.bf16.msra.mxu0 %v870
      %950 = vmatprep.subr.bf16.mxu0 0
      %951 = vmatpush1.bf16.msra.mxu0 0
      %952 = vmatprep.subr.bf16.mxu0 0
      %953 = vmatpush1.bf16.msra.mxu0 0
      %954 = vmatprep.subr.bf16.mxu0 0
      %955 = vmatpush1.bf16.msra.mxu0 0
      %956 = vmatprep.subr.bf16.mxu0 0
      %957 = vmatpush1.bf16.msra.mxu0 0
      %958 = vmatprep.subr.bf16.mxu0 0
      %959 = vmatpush1.bf16.msra.mxu0 0
      %960 = vmatprep.subr.bf16.mxu0 0
      %961 = vmatpush1.bf16.msra.mxu0 0
      %962 = vmatprep.subr.bf16.mxu0 0
      %963 = vmatpush1.bf16.msra.mxu0 0
      %964 = vmatprep.subr.bf16.mxu0 0
      %965 = vmatpush1.bf16.msra.mxu0 0
      %966 = vmatprep.subr.bf16.mxu0 0
      %967 = vmatpush1.bf16.msra.mxu0 0
      %968 = vmatprep.subr.bf16.mxu0 0
      %969 = vmatpush1.bf16.msra.mxu0 0
      %970 = vmatprep.subr.bf16.mxu0 0
      %971 = vmatpush1.bf16.msra.mxu0 0
      %972 = vmatprep.subr.bf16.mxu0 0
      %973 = vmatpush1.bf16.msra.mxu0 0
      %974 = vmatprep.subr.bf16.mxu0 0
      %975 = vmatpush1.bf16.msra.mxu0 0
      %976 = vmatprep.subr.bf16.mxu0 0
      %977 = vmatpush1.bf16.msra.mxu0 0
      %978 = vmatprep.subr.bf16.mxu0 0
      %979 = vmatpush1.bf16.msra.mxu0 0
      %980 = vmatprep.mubr.bf16.mxu0 0
      %981 = vmatmul.mubr.bf16.gmra.mrb[0].mxu0 %v946
      %v982 = vpop.f32.mrb[0].mxu0
      %v983 = vadd.f32 %v932, %v982
      %v984 = vpop.f32.mrb[0].mxu0
      %v985 = vadd.f32 %v934, %v984
      %v986 = vpop.f32.mrb[0].mxu0
      %v987 = vadd.f32 %v936, %v986
      %v988 = vpop.f32.mrb[0].mxu0
      %v989 = vadd.f32 %v938, %v988
      %990 = vdwg.mxu0
      %991 = vrot.lane.b32.xlu0 %v443, 112
      %v992 = vpop.permute.xlu0 %991
      %993 = vrot.lane.b32.xlu0 %v445, 112
      %v994 = vpop.permute.xlu0 %993
      %995 = vrot.lane.b32.xlu0 %v444, 112
      %v996 = vpop.permute.xlu0 %995
      %997 = vrot.lane.b32.xlu0 %v446, 112
      %v998 = vpop.permute.xlu0 %997
      %v999 = vsel %vm862, %v992, %v996
      %v1000 = vsel %vm862, %v994, %v998
      %v1001 = vsel %vm862, %v996, %v992
      %v1002 = vsel %vm862, %v998, %v994
      %s1003 = scalar_lea.vmem %s2, 64
      %v1004 = vld [vmem:[%s1003] sm:$0xf]
      %v1005 = vld [vmem:[%s1003 + $0x4] sm:$0xf]
      %v1006 = vpack.c.bf16 %v1000, %v999
      %v1007 = vpack.c.bf16 %v1002, %v1001
      %v1010 = vunpack.c.l.b16 %v1004
      %v1011 = vunpack.c.l.b16 %v1005
      %v1012 = vpack.c.b16 %v1011, %v1010
      %v1014 = vsel %vm462, %v1012, 0
      %1016 = vmatprep.subr.bf16.mxu0 %v1007
      %1017 = vmatpush1.bf16.msra.mxu0 %v1006
      %1018 = vmatprep.subr.bf16.mxu0 0
      %1019 = vmatpush1.bf16.msra.mxu0 0
      %1020 = vmatprep.subr.bf16.mxu0 0
      %1021 = vmatpush1.bf16.msra.mxu0 0
      %1022 = vmatprep.subr.bf16.mxu0 0
      %1023 = vmatpush1.bf16.msra.mxu0 0
      %1024 = vmatprep.subr.bf16.mxu0 0
      %1025 = vmatpush1.bf16.msra.mxu0 0
      %1026 = vmatprep.subr.bf16.mxu0 0
      %1027 = vmatpush1.bf16.msra.mxu0 0
      %1028 = vmatprep.subr.bf16.mxu0 0
      %1029 = vmatpush1.bf16.msra.mxu0 0
      %1030 = vmatprep.subr.bf16.mxu0 0
      %1031 = vmatpush1.bf16.msra.mxu0 0
      %1032 = vmatprep.subr.bf16.mxu0 0
      %1033 = vmatpush1.bf16.msra.mxu0 0
      %1034 = vmatprep.subr.bf16.mxu0 0
      %1035 = vmatpush1.bf16.msra.mxu0 0
      %1036 = vmatprep.subr.bf16.mxu0 0
      %1037 = vmatpush1.bf16.msra.mxu0 0
      %1038 = vmatprep.subr.bf16.mxu0 0
      %1039 = vmatpush1.bf16.msra.mxu0 0
      %1040 = vmatprep.subr.bf16.mxu0 0
      %1041 = vmatpush1.bf16.msra.mxu0 0
      %1042 = vmatprep.subr.bf16.mxu0 0
      %1043 = vmatpush1.bf16.msra.mxu0 0
      %1044 = vmatprep.subr.bf16.mxu0 0
      %1045 = vmatpush1.bf16.msra.mxu0 0
      %1046 = vmatprep.subr.bf16.mxu0 0
      %1047 = vmatpush1.bf16.msra.mxu0 0
      %1048 = vmatprep.mubr.bf16.mxu0 0
      %1049 = vmatmul.mubr.bf16.gmra.mrb[0].mxu0 %v1014
      %v1050 = vpop.f32.mrb[0].mxu0
      %v1051 = vadd.f32 0.0, %v1050
      %v1052 = vpop.f32.mrb[0].mxu0
      %v1053 = vadd.f32 0.0, %v1052
      %v1054 = vpop.f32.mrb[0].mxu0
      %v1055 = vadd.f32 0.0, %v1054
      %v1056 = vpop.f32.mrb[0].mxu0
      %v1057 = vadd.f32 0.0, %v1056
      %1058 = vdwg.mxu0
      %v1059 = vadd.f32 %v983, %v1051
      %v1060 = vadd.f32 %v985, %v1053
      %v1061 = vadd.f32 %v987, %v1055
      %v1062 = vadd.f32 %v989, %v1057
      %v1063 = vlaneseq
      %v1064 = vshrl.u32 %v1063, 7
      %v1065 = vsub.s32 3, %v1064
      %v1066 = vrot.slane %v369, %v1065
      %v1067 = vlaneseq
      %v1068 = vshrl.u32 %v1067, 7
      %v1069 = vsub.s32 7, %v1068
      %v1070 = vrot.slane %v369, %v1069
      %v1073 = vlaneseq
      %v1074 = vshrl.u32 %v1073, 7
      %v1075 = vsub.s32 3, %v1074
      %v1076 = vrot.slane %v1066, %v1075
      %v1077 = vlaneseq
      %v1078 = vshrl.u32 %v1077, 7
      %v1079 = vsub.s32 3, %v1078
      %v1080 = vrot.slane %v1070, %v1079
      %v1081 = vmul.f32 %v1076, %v1059
      %v1082 = vmul.f32 %v1080, %v1060
      %v1083 = vmul.f32 %v1076, %v1061
      %v1084 = vmul.f32 %v1080, %v1062
      %v1085 = vadd.f32 %v850, %v1081
      %v1086 = vadd.f32 %v851, %v1082
      %v1087 = vadd.f32 %v852, %v1083
      %v1088 = vadd.f32 %v853, %v1084
      %v1089 = vld [vmem:[%s3] sm:$0xff]
      %v1090 = vld [vmem:[%s3 + $0x8] sm:$0xff]
      %1092 = vset.pattern.permute.xlu0 0
      %1093 = vperm.xlu0 %1092, %v1089
      %v1094 = vpop.permute.xlu0 %1093
      %1097 = vset.pattern.permute.xlu0 0
      %1098 = vperm.xlu0 %1097, %v1090
      %v1099 = vpop.permute.xlu0 %1098
      %v1101 = vadd.f32 %v1085, %v1094
      %v1102 = vadd.f32 %v1086, %v1094
      %v1103 = vadd.f32 %v1087, %v1099
      %v1104 = vadd.f32 %v1088, %v1099
      %v1105 = vmax.f32 %v1101, 0.0
      %v1106 = vmax.f32 %v1102, 0.0
      %v1107 = vmax.f32 %v1103, 0.0
      %v1108 = vmax.f32 %v1104, 0.0
      %1109 = vrot.lane.b32.xlu0 %v1105, 1
      %v1110 = vpop.permute.xlu0 %1109
      %1111 = vrot.lane.b32.xlu0 %v1107, 1
      %v1112 = vpop.permute.xlu0 %1111
      %1113 = vrot.lane.b32.xlu0 %v1106, 1
      %v1114 = vpop.permute.xlu0 %1113
      %1115 = vrot.lane.b32.xlu0 %v1108, 1
      %v1116 = vpop.permute.xlu0 %1115
      %v1117 = vsel %vm384, %v1110, %v1114
      %v1118 = vsel %vm384, %v1112, %v1116
      %v1119 = vsel %vm384, %v1114, %v1110
      %v1120 = vsel %vm384, %v1116, %v1112
      %v1121 = vmul.f32 %v403, %v1119
      %v1122 = vmul.f32 %v407, %v1117
      %v1123 = vmul.f32 %v403, %v1120
      %v1124 = vmul.f32 %v407, %v1118
      %1125 = vrot.lane.b32.xlu0 %v1105, 127
      %v1126 = vpop.permute.xlu0 %1125
      %1127 = vrot.lane.b32.xlu0 %v1107, 127
      %v1128 = vpop.permute.xlu0 %1127
      %1129 = vrot.lane.b32.xlu0 %v1106, 127
      %v1130 = vpop.permute.xlu0 %1129
      %1131 = vrot.lane.b32.xlu0 %v1108, 127
      %v1132 = vpop.permute.xlu0 %1131
      %v1133 = vsel %vm420, %v1126, %v1130
      %v1134 = vsel %vm420, %v1128, %v1132
      %v1135 = vsel %vm420, %v1130, %v1126
      %v1136 = vsel %vm420, %v1132, %v1128
      %v1137 = vmul.f32 %v438, %v1133
      %v1138 = vmul.f32 %v442, %v1135
      %v1139 = vmul.f32 %v438, %v1134
      %v1140 = vmul.f32 %v442, %v1136
      %s1141 = scalar_lea.vmem %s4, 24
      %v1142 = vld [vmem:[%s1141] sm:$0xf]
      %v1143 = vld [vmem:[%s1141 + $0x4] sm:$0xf]
      %v1144 = vpack.c.bf16 %v1123, %v1121
      %v1145 = vpack.c.bf16 %v1124, %v1122
      %s1146 = scalar_lea.vmem %s4, 32
      %v1147 = vld [vmem:[%s1146] sm:$0xf]
      %v1148 = vld [vmem:[%s1146 + $0x4] sm:$0xf]
      %v1149 = vpack.c.bf16 %v1107, %v1105
      %v1150 = vpack.c.bf16 %v1108, %v1106
      %v1153 = vunpack.c.l.b16 %v1147
      %v1154 = vunpack.c.l.b16 %v1148
      %v1155 = vpack.c.b16 %v1154, %v1153
      %v1157 = vsel %vm462, %v1155, 0
      %1159 = vmatprep.subr.bf16.mxu0 %v1150
      %1160 = vmatpush1.bf16.msra.mxu0 %v1149
      %1161 = vmatprep.subr.bf16.mxu0 0
      %1162 = vmatpush1.bf16.msra.mxu0 0
      %1163 = vmatprep.subr.bf16.mxu0 0
      %1164 = vmatpush1.bf16.msra.mxu0 0
      %1165 = vmatprep.subr.bf16.mxu0 0
      %1166 = vmatpush1.bf16.msra.mxu0 0
      %1167 = vmatprep.subr.bf16.mxu0 0
      %1168 = vmatpush1.bf16.msra.mxu0 0
      %1169 = vmatprep.subr.bf16.mxu0 0
      %1170 = vmatpush1.bf16.msra.mxu0 0
      %1171 = vmatprep.subr.bf16.mxu0 0
      %1172 = vmatpush1.bf16.msra.mxu0 0
      %1173 = vmatprep.subr.bf16.mxu0 0
      %1174 = vmatpush1.bf16.msra.mxu0 0
      %1175 = vmatprep.subr.bf16.mxu0 0
      %1176 = vmatpush1.bf16.msra.mxu0 0
      %1177 = vmatprep.subr.bf16.mxu0 0
      %1178 = vmatpush1.bf16.msra.mxu0 0
      %1179 = vmatprep.subr.bf16.mxu0 0
      %1180 = vmatpush1.bf16.msra.mxu0 0
      %1181 = vmatprep.subr.bf16.mxu0 0
      %1182 = vmatpush1.bf16.msra.mxu0 0
      %1183 = vmatprep.subr.bf16.mxu0 0
      %1184 = vmatpush1.bf16.msra.mxu0 0
      %1185 = vmatprep.subr.bf16.mxu0 0
      %1186 = vmatpush1.bf16.msra.mxu0 0
      %1187 = vmatprep.subr.bf16.mxu0 0
      %1188 = vmatpush1.bf16.msra.mxu0 0
      %1189 = vmatprep.subr.bf16.mxu0 0
      %1190 = vmatpush1.bf16.msra.mxu0 0
      %1191 = vmatprep.mubr.bf16.mxu0 0
      %1192 = vmatmul.mubr.bf16.gmra.mrb[0].mxu0 %v1157
      %v1193 = vpop.f32.mrb[0].mxu0
      %v1194 = vadd.f32 0.0, %v1193
      %v1195 = vpop.f32.mrb[0].mxu0
      %v1196 = vadd.f32 0.0, %v1195
      %v1197 = vpop.f32.mrb[0].mxu0
      %v1198 = vadd.f32 0.0, %v1197
      %v1199 = vpop.f32.mrb[0].mxu0
      %v1200 = vadd.f32 0.0, %v1199
      %1201 = vdwg.mxu0
      %v1204 = vunpack.c.l.b16 %v1142
      %v1205 = vunpack.c.l.b16 %v1143
      %v1206 = vpack.c.b16 %v1205, %v1204
      %v1208 = vsel %vm462, %v1206, 0
      %1210 = vmatprep.subr.bf16.mxu0 %v1145
      %1211 = vmatpush1.bf16.msra.mxu0 %v1144
      %1212 = vmatprep.subr.bf16.mxu0 0
      %1213 = vmatpush1.bf16.msra.mxu0 0
      %1214 = vmatprep.subr.bf16.mxu0 0
      %1215 = vmatpush1.bf16.msra.mxu0 0
      %1216 = vmatprep.subr.bf16.mxu0 0
      %1217 = vmatpush1.bf16.msra.mxu0 0
      %1218 = vmatprep.subr.bf16.mxu0 0
      %1219 = vmatpush1.bf16.msra.mxu0 0
      %1220 = vmatprep.subr.bf16.mxu0 0
      %1221 = vmatpush1.bf16.msra.mxu0 0
      %1222 = vmatprep.subr.bf16.mxu0 0
      %1223 = vmatpush1.bf16.msra.mxu0 0
      %1224 = vmatprep.subr.bf16.mxu0 0
      %1225 = vmatpush1.bf16.msra.mxu0 0
      %1226 = vmatprep.subr.bf16.mxu0 0
      %1227 = vmatpush1.bf16.msra.mxu0 0
      %1228 = vmatprep.subr.bf16.mxu0 0
      %1229 = vmatpush1.bf16.msra.mxu0 0
      %1230 = vmatprep.subr.bf16.mxu0 0
      %1231 = vmatpush1.bf16.msra.mxu0 0
      %1232 = vmatprep.subr.bf16.mxu0 0
      %1233 = vmatpush1.bf16.msra.mxu0 0
      %1234 = vmatprep.subr.bf16.mxu0 0
      %1235 = vmatpush1.bf16.msra.mxu0 0
      %1236 = vmatprep.subr.bf16.mxu0 0
      %1237 = vmatpush1.bf16.msra.mxu0 0
      %1238 = vmatprep.subr.bf16.mxu0 0
      %1239 = vmatpush1.bf16.msra.mxu0 0
      %1240 = vmatprep.subr.bf16.mxu0 0
      %1241 = vmatpush1.bf16.msra.mxu0 0
      %1242 = vmatprep.mubr.bf16.mxu0 0
      %1243 = vmatmul.mubr.bf16.gmra.mrb[0].mxu0 %v1208
      %v1244 = vpop.f32.mrb[0].mxu0
      %v1245 = vadd.f32 %v1194, %v1244
      %v1246 = vpop.f32.mrb[0].mxu0
      %v1247 = vadd.f32 %v1196, %v1246
      %v1248 = vpop.f32.mrb[0].mxu0
      %v1249 = vadd.f32 %v1198, %v1248
      %v1250 = vpop.f32.mrb[0].mxu0
      %v1251 = vadd.f32 %v1200, %v1250
      %1252 = vdwg.mxu0
      %s1253 = scalar_lea.vmem %s4, 40
      %v1254 = vld [vmem:[%s1253] sm:$0xf]
      %v1255 = vld [vmem:[%s1253 + $0x4] sm:$0xf]
      %v1256 = vpack.c.bf16 %v1139, %v1137
      %v1257 = vpack.c.bf16 %v1140, %v1138
      %v1260 = vunpack.c.l.b16 %v1254
      %v1261 = vunpack.c.l.b16 %v1255
      %v1262 = vpack.c.b16 %v1261, %v1260
      %v1264 = vsel %vm462, %v1262, 0
      %1266 = vmatprep.subr.bf16.mxu0 %v1257
      %1267 = vmatpush1.bf16.msra.mxu0 %v1256
      %1268 = vmatprep.subr.bf16.mxu0 0
      %1269 = vmatpush1.bf16.msra.mxu0 0
      %1270 = vmatprep.subr.bf16.mxu0 0
      %1271 = vmatpush1.bf16.msra.mxu0 0
      %1272 = vmatprep.subr.bf16.mxu0 0
      %1273 = vmatpush1.bf16.msra.mxu0 0
      %1274 = vmatprep.subr.bf16.mxu0 0
      %1275 = vmatpush1.bf16.msra.mxu0 0
      %1276 = vmatprep.subr.bf16.mxu0 0
      %1277 = vmatpush1.bf16.msra.mxu0 0
      %1278 = vmatprep.subr.bf16.mxu0 0
      %1279 = vmatpush1.bf16.msra.mxu0 0
      %1280 = vmatprep.subr.bf16.mxu0 0
      %1281 = vmatpush1.bf16.msra.mxu0 0
      %1282 = vmatprep.subr.bf16.mxu0 0
      %1283 = vmatpush1.bf16.msra.mxu0 0
      %1284 = vmatprep.subr.bf16.mxu0 0
      %1285 = vmatpush1.bf16.msra.mxu0 0
      %1286 = vmatprep.subr.bf16.mxu0 0
      %1287 = vmatpush1.bf16.msra.mxu0 0
      %1288 = vmatprep.subr.bf16.mxu0 0
      %1289 = vmatpush1.bf16.msra.mxu0 0
      %1290 = vmatprep.subr.bf16.mxu0 0
      %1291 = vmatpush1.bf16.msra.mxu0 0
      %1292 = vmatprep.subr.bf16.mxu0 0
      %1293 = vmatpush1.bf16.msra.mxu0 0
      %1294 = vmatprep.subr.bf16.mxu0 0
      %1295 = vmatpush1.bf16.msra.mxu0 0
      %1296 = vmatprep.subr.bf16.mxu0 0
      %1297 = vmatpush1.bf16.msra.mxu0 0
      %1298 = vmatprep.mubr.bf16.mxu0 0
      %1299 = vmatmul.mubr.bf16.gmra.mrb[0].mxu0 %v1264
      %v1300 = vpop.f32.mrb[0].mxu0
      %v1301 = vadd.f32 0.0, %v1300
      %v1302 = vpop.f32.mrb[0].mxu0
      %v1303 = vadd.f32 0.0, %v1302
      %v1304 = vpop.f32.mrb[0].mxu0
      %v1305 = vadd.f32 0.0, %v1304
      %v1306 = vpop.f32.mrb[0].mxu0
      %v1307 = vadd.f32 0.0, %v1306
      %1308 = vdwg.mxu0
      %v1309 = vadd.f32 %v1245, %v1301
      %v1310 = vadd.f32 %v1247, %v1303
      %v1311 = vadd.f32 %v1249, %v1305
      %v1312 = vadd.f32 %v1251, %v1307
      %1313 = vrot.lane.b32.xlu0 %v1121, 16
      %v1314 = vpop.permute.xlu0 %1313
      %1315 = vrot.lane.b32.xlu0 %v1123, 16
      %v1316 = vpop.permute.xlu0 %1315
      %1317 = vrot.lane.b32.xlu0 %v1122, 16
      %v1318 = vpop.permute.xlu0 %1317
      %1319 = vrot.lane.b32.xlu0 %v1124, 16
      %v1320 = vpop.permute.xlu0 %1319
      %v1321 = vsel %vm628, %v1314, %v1318
      %v1322 = vsel %vm628, %v1316, %v1320
      %v1323 = vsel %vm628, %v1318, %v1314
      %v1324 = vsel %vm628, %v1320, %v1316
      %v1325 = vld [vmem:[%s4] sm:$0xf]
      %v1326 = vld [vmem:[%s4 + $0x4] sm:$0xf]
      %v1327 = vpack.c.bf16 %v1324, %v1323
      %v1328 = vpack.c.bf16 %v1322, %v1321
      %1329 = vrot.lane.b32.xlu0 %v1105, 16
      %v1330 = vpop.permute.xlu0 %1329
      %1331 = vrot.lane.b32.xlu0 %v1107, 16
      %v1332 = vpop.permute.xlu0 %1331
      %1333 = vrot.lane.b32.xlu0 %v1106, 16
      %v1334 = vpop.permute.xlu0 %1333
      %1335 = vrot.lane.b32.xlu0 %v1108, 16
      %v1336 = vpop.permute.xlu0 %1335
      %v1337 = vsel %vm628, %v1330, %v1334
      %v1338 = vsel %vm628, %v1332, %v1336
      %v1339 = vsel %vm628, %v1334, %v1330
      %v1340 = vsel %vm628, %v1336, %v1332
      %s1341 = scalar_lea.vmem %s4, 8
      %v1342 = vld [vmem:[%s1341] sm:$0xf]
      %v1343 = vld [vmem:[%s1341 + $0x4] sm:$0xf]
      %v1344 = vpack.c.bf16 %v1340, %v1339
      %v1345 = vpack.c.bf16 %v1338, %v1337
      %v1348 = vunpack.c.l.b16 %v1342
      %v1349 = vunpack.c.l.b16 %v1343
      %v1350 = vpack.c.b16 %v1349, %v1348
      %v1352 = vsel %vm462, %v1350, 0
      %1354 = vmatprep.subr.bf16.mxu0 %v1345
      %1355 = vmatpush1.bf16.msra.mxu0 %v1344
      %1356 = vmatprep.subr.bf16.mxu0 0
      %1357 = vmatpush1.bf16.msra.mxu0 0
      %1358 = vmatprep.subr.bf16.mxu0 0
      %1359 = vmatpush1.bf16.msra.mxu0 0
      %1360 = vmatprep.subr.bf16.mxu0 0
      %1361 = vmatpush1.bf16.msra.mxu0 0
      %1362 = vmatprep.subr.bf16.mxu0 0
      %1363 = vmatpush1.bf16.msra.mxu0 0
      %1364 = vmatprep.subr.bf16.mxu0 0
      %1365 = vmatpush1.bf16.msra.mxu0 0
      %1366 = vmatprep.subr.bf16.mxu0 0
      %1367 = vmatpush1.bf16.msra.mxu0 0
      %1368 = vmatprep.subr.bf16.mxu0 0
      %1369 = vmatpush1.bf16.msra.mxu0 0
      %1370 = vmatprep.subr.bf16.mxu0 0
      %1371 = vmatpush1.bf16.msra.mxu0 0
      %1372 = vmatprep.subr.bf16.mxu0 0
      %1373 = vmatpush1.bf16.msra.mxu0 0
      %1374 = vmatprep.subr.bf16.mxu0 0
      %1375 = vmatpush1.bf16.msra.mxu0 0
      %1376 = vmatprep.subr.bf16.mxu0 0
      %1377 = vmatpush1.bf16.msra.mxu0 0
      %1378 = vmatprep.subr.bf16.mxu0 0
      %1379 = vmatpush1.bf16.msra.mxu0 0
      %1380 = vmatprep.subr.bf16.mxu0 0
      %1381 = vmatpush1.bf16.msra.mxu0 0
      %1382 = vmatprep.subr.bf16.mxu0 0
      %1383 = vmatpush1.bf16.msra.mxu0 0
      %1384 = vmatprep.subr.bf16.mxu0 0
      %1385 = vmatpush1.bf16.msra.mxu0 0
      %1386 = vmatprep.mubr.bf16.mxu0 0
      %1387 = vmatmul.mubr.bf16.gmra.mrb[0].mxu0 %v1352
      %v1388 = vpop.f32.mrb[0].mxu0
      %v1389 = vadd.f32 0.0, %v1388
      %v1390 = vpop.f32.mrb[0].mxu0
      %v1391 = vadd.f32 0.0, %v1390
      %v1392 = vpop.f32.mrb[0].mxu0
      %v1393 = vadd.f32 0.0, %v1392
      %v1394 = vpop.f32.mrb[0].mxu0
      %v1395 = vadd.f32 0.0, %v1394
      %1396 = vdwg.mxu0
      %v1399 = vunpack.c.l.b16 %v1325
      %v1400 = vunpack.c.l.b16 %v1326
      %v1401 = vpack.c.b16 %v1400, %v1399
      %v1403 = vsel %vm462, %v1401, 0
      %1405 = vmatprep.subr.bf16.mxu0 %v1328
      %1406 = vmatpush1.bf16.msra.mxu0 %v1327
      %1407 = vmatprep.subr.bf16.mxu0 0
      %1408 = vmatpush1.bf16.msra.mxu0 0
      %1409 = vmatprep.subr.bf16.mxu0 0
      %1410 = vmatpush1.bf16.msra.mxu0 0
      %1411 = vmatprep.subr.bf16.mxu0 0
      %1412 = vmatpush1.bf16.msra.mxu0 0
      %1413 = vmatprep.subr.bf16.mxu0 0
      %1414 = vmatpush1.bf16.msra.mxu0 0
      %1415 = vmatprep.subr.bf16.mxu0 0
      %1416 = vmatpush1.bf16.msra.mxu0 0
      %1417 = vmatprep.subr.bf16.mxu0 0
      %1418 = vmatpush1.bf16.msra.mxu0 0
      %1419 = vmatprep.subr.bf16.mxu0 0
      %1420 = vmatpush1.bf16.msra.mxu0 0
      %1421 = vmatprep.subr.bf16.mxu0 0
      %1422 = vmatpush1.bf16.msra.mxu0 0
      %1423 = vmatprep.subr.bf16.mxu0 0
      %1424 = vmatpush1.bf16.msra.mxu0 0
      %1425 = vmatprep.subr.bf16.mxu0 0
      %1426 = vmatpush1.bf16.msra.mxu0 0
      %1427 = vmatprep.subr.bf16.mxu0 0
      %1428 = vmatpush1.bf16.msra.mxu0 0
      %1429 = vmatprep.subr.bf16.mxu0 0
      %1430 = vmatpush1.bf16.msra.mxu0 0
      %1431 = vmatprep.subr.bf16.mxu0 0
      %1432 = vmatpush1.bf16.msra.mxu0 0
      %1433 = vmatprep.subr.bf16.mxu0 0
      %1434 = vmatpush1.bf16.msra.mxu0 0
      %1435 = vmatprep.subr.bf16.mxu0 0
      %1436 = vmatpush1.bf16.msra.mxu0 0
      %1437 = vmatprep.mubr.bf16.mxu0 0
      %1438 = vmatmul.mubr.bf16.gmra.mrb[0].mxu0 %v1403
      %v1439 = vpop.f32.mrb[0].mxu0
      %v1440 = vadd.f32 %v1389, %v1439
      %v1441 = vpop.f32.mrb[0].mxu0
      %v1442 = vadd.f32 %v1391, %v1441
      %v1443 = vpop.f32.mrb[0].mxu0
      %v1444 = vadd.f32 %v1393, %v1443
      %v1445 = vpop.f32.mrb[0].mxu0
      %v1446 = vadd.f32 %v1395, %v1445
      %1447 = vdwg.mxu0
      %1448 = vrot.lane.b32.xlu0 %v1137, 16
      %v1449 = vpop.permute.xlu0 %1448
      %1450 = vrot.lane.b32.xlu0 %v1139, 16
      %v1451 = vpop.permute.xlu0 %1450
      %1452 = vrot.lane.b32.xlu0 %v1138, 16
      %v1453 = vpop.permute.xlu0 %1452
      %1454 = vrot.lane.b32.xlu0 %v1140, 16
      %v1455 = vpop.permute.xlu0 %1454
      %v1456 = vsel %vm628, %v1449, %v1453
      %v1457 = vsel %vm628, %v1451, %v1455
      %v1458 = vsel %vm628, %v1453, %v1449
      %v1459 = vsel %vm628, %v1455, %v1451
      %s1460 = scalar_lea.vmem %s4, 16
      %v1461 = vld [vmem:[%s1460] sm:$0xf]
      %v1462 = vld [vmem:[%s1460 + $0x4] sm:$0xf]
      %v1463 = vpack.c.bf16 %v1459, %v1458
      %v1464 = vpack.c.bf16 %v1457, %v1456
      %v1467 = vunpack.c.l.b16 %v1461
      %v1468 = vunpack.c.l.b16 %v1462
      %v1469 = vpack.c.b16 %v1468, %v1467
      %v1471 = vsel %vm462, %v1469, 0
      %1473 = vmatprep.subr.bf16.mxu0 %v1464
      %1474 = vmatpush1.bf16.msra.mxu0 %v1463
      %1475 = vmatprep.subr.bf16.mxu0 0
      %1476 = vmatpush1.bf16.msra.mxu0 0
      %1477 = vmatprep.subr.bf16.mxu0 0
      %1478 = vmatpush1.bf16.msra.mxu0 0
      %1479 = vmatprep.subr.bf16.mxu0 0
      %1480 = vmatpush1.bf16.msra.mxu0 0
      %1481 = vmatprep.subr.bf16.mxu0 0
      %1482 = vmatpush1.bf16.msra.mxu0 0
      %1483 = vmatprep.subr.bf16.mxu0 0
      %1484 = vmatpush1.bf16.msra.mxu0 0
      %1485 = vmatprep.subr.bf16.mxu0 0
      %1486 = vmatpush1.bf16.msra.mxu0 0
      %1487 = vmatprep.subr.bf16.mxu0 0
      %1488 = vmatpush1.bf16.msra.mxu0 0
      %1489 = vmatprep.subr.bf16.mxu0 0
      %1490 = vmatpush1.bf16.msra.mxu0 0
      %1491 = vmatprep.subr.bf16.mxu0 0
      %1492 = vmatpush1.bf16.msra.mxu0 0
      %1493 = vmatprep.subr.bf16.mxu0 0
      %1494 = vmatpush1.bf16.msra.mxu0 0
      %1495 = vmatprep.subr.bf16.mxu0 0
      %1496 = vmatpush1.bf16.msra.mxu0 0
      %1497 = vmatprep.subr.bf16.mxu0 0
      %1498 = vmatpush1.bf16.msra.mxu0 0
      %1499 = vmatprep.subr.bf16.mxu0 0
      %1500 = vmatpush1.bf16.msra.mxu0 0
      %1501 = vmatprep.subr.bf16.mxu0 0
      %1502 = vmatpush1.bf16.msra.mxu0 0
      %1503 = vmatprep.subr.bf16.mxu0 0
      %1504 = vmatpush1.bf16.msra.mxu0 0
      %1505 = vmatprep.mubr.bf16.mxu0 0
      %1506 = vmatmul.mubr.bf16.gmra.mrb[0].mxu0 %v1471
      %v1507 = vpop.f32.mrb[0].mxu0
      %v1508 = vadd.f32 0.0, %v1507
      %v1509 = vpop.f32.mrb[0].mxu0
      %v1510 = vadd.f32 0.0, %v1509
      %v1511 = vpop.f32.mrb[0].mxu0
      %v1512 = vadd.f32 0.0, %v1511
      %v1513 = vpop.f32.mrb[0].mxu0
      %v1514 = vadd.f32 0.0, %v1513
      %1515 = vdwg.mxu0
      %v1516 = vadd.f32 %v1440, %v1508
      %v1517 = vadd.f32 %v1442, %v1510
      %v1518 = vadd.f32 %v1444, %v1512
      %v1519 = vadd.f32 %v1446, %v1514
      %v1520 = vmul.f32 %v841, %v1516
      %v1521 = vmul.f32 %v845, %v1517
      %v1522 = vmul.f32 %v841, %v1518
      %v1523 = vmul.f32 %v845, %v1519
      %v1524 = vadd.f32 %v1309, %v1520
      %v1525 = vadd.f32 %v1310, %v1521
      %v1526 = vadd.f32 %v1311, %v1522
      %v1527 = vadd.f32 %v1312, %v1523
      %1528 = vrot.lane.b32.xlu0 %v1121, 112
      %v1529 = vpop.permute.xlu0 %1528
      %1530 = vrot.lane.b32.xlu0 %v1123, 112
      %v1531 = vpop.permute.xlu0 %1530
      %1532 = vrot.lane.b32.xlu0 %v1122, 112
      %v1533 = vpop.permute.xlu0 %1532
      %1534 = vrot.lane.b32.xlu0 %v1124, 112
      %v1535 = vpop.permute.xlu0 %1534
      %v1536 = vsel %vm862, %v1529, %v1533
      %v1537 = vsel %vm862, %v1531, %v1535
      %v1538 = vsel %vm862, %v1533, %v1529
      %v1539 = vsel %vm862, %v1535, %v1531
      %s1540 = scalar_lea.vmem %s4, 48
      %v1541 = vld [vmem:[%s1540] sm:$0xf]
      %v1542 = vld [vmem:[%s1540 + $0x4] sm:$0xf]
      %v1543 = vpack.c.bf16 %v1537, %v1536
      %v1544 = vpack.c.bf16 %v1539, %v1538
      %1545 = vrot.lane.b32.xlu0 %v1105, 112
      %v1546 = vpop.permute.xlu0 %1545
      %1547 = vrot.lane.b32.xlu0 %v1107, 112
      %v1548 = vpop.permute.xlu0 %1547
      %1549 = vrot.lane.b32.xlu0 %v1106, 112
      %v1550 = vpop.permute.xlu0 %1549
      %1551 = vrot.lane.b32.xlu0 %v1108, 112
      %v1552 = vpop.permute.xlu0 %1551
      %v1553 = vsel %vm862, %v1546, %v1550
      %v1554 = vsel %vm862, %v1548, %v1552
      %v1555 = vsel %vm862, %v1550, %v1546
      %v1556 = vsel %vm862, %v1552, %v1548
      %s1557 = scalar_lea.vmem %s4, 56
      %v1558 = vld [vmem:[%s1557] sm:$0xf]
      %v1559 = vld [vmem:[%s1557 + $0x4] sm:$0xf]
      %v1560 = vpack.c.bf16 %v1554, %v1553
      %v1561 = vpack.c.bf16 %v1556, %v1555
      %v1564 = vunpack.c.l.b16 %v1558
      %v1565 = vunpack.c.l.b16 %v1559
      %v1566 = vpack.c.b16 %v1565, %v1564
      %v1568 = vsel %vm462, %v1566, 0
      %1570 = vmatprep.subr.bf16.mxu0 %v1561
      %1571 = vmatpush1.bf16.msra.mxu0 %v1560
      %1572 = vmatprep.subr.bf16.mxu0 0
      %1573 = vmatpush1.bf16.msra.mxu0 0
      %1574 = vmatprep.subr.bf16.mxu0 0
      %1575 = vmatpush1.bf16.msra.mxu0 0
      %1576 = vmatprep.subr.bf16.mxu0 0
      %1577 = vmatpush1.bf16.msra.mxu0 0
      %1578 = vmatprep.subr.bf16.mxu0 0
      %1579 = vmatpush1.bf16.msra.mxu0 0
      %1580 = vmatprep.subr.bf16.mxu0 0
      %1581 = vmatpush1.bf16.msra.mxu0 0
      %1582 = vmatprep.subr.bf16.mxu0 0
      %1583 = vmatpush1.bf16.msra.mxu0 0
      %1584 = vmatprep.subr.bf16.mxu0 0
      %1585 = vmatpush1.bf16.msra.mxu0 0
      %1586 = vmatprep.subr.bf16.mxu0 0
      %1587 = vmatpush1.bf16.msra.mxu0 0
      %1588 = vmatprep.subr.bf16.mxu0 0
      %1589 = vmatpush1.bf16.msra.mxu0 0
      %1590 = vmatprep.subr.bf16.mxu0 0
      %1591 = vmatpush1.bf16.msra.mxu0 0
      %1592 = vmatprep.subr.bf16.mxu0 0
      %1593 = vmatpush1.bf16.msra.mxu0 0
      %1594 = vmatprep.subr.bf16.mxu0 0
      %1595 = vmatpush1.bf16.msra.mxu0 0
      %1596 = vmatprep.subr.bf16.mxu0 0
      %1597 = vmatpush1.bf16.msra.mxu0 0
      %1598 = vmatprep.subr.bf16.mxu0 0
      %1599 = vmatpush1.bf16.msra.mxu0 0
      %1600 = vmatprep.subr.bf16.mxu0 0
      %1601 = vmatpush1.bf16.msra.mxu0 0
      %1602 = vmatprep.mubr.bf16.mxu0 0
      %1603 = vmatmul.mubr.bf16.gmra.mrb[0].mxu0 %v1568
      %v1604 = vpop.f32.mrb[0].mxu0
      %v1605 = vadd.f32 0.0, %v1604
      %v1606 = vpop.f32.mrb[0].mxu0
      %v1607 = vadd.f32 0.0, %v1606
      %v1608 = vpop.f32.mrb[0].mxu0
      %v1609 = vadd.f32 0.0, %v1608
      %v1610 = vpop.f32.mrb[0].mxu0
      %v1611 = vadd.f32 0.0, %v1610
      %1612 = vdwg.mxu0
      %v1615 = vunpack.c.l.b16 %v1541
      %v1616 = vunpack.c.l.b16 %v1542
      %v1617 = vpack.c.b16 %v1616, %v1615
      %v1619 = vsel %vm462, %v1617, 0
      %1621 = vmatprep.subr.bf16.mxu0 %v1544
      %1622 = vmatpush1.bf16.msra.mxu0 %v1543
      %1623 = vmatprep.subr.bf16.mxu0 0
      %1624 = vmatpush1.bf16.msra.mxu0 0
      %1625 = vmatprep.subr.bf16.mxu0 0
      %1626 = vmatpush1.bf16.msra.mxu0 0
      %1627 = vmatprep.subr.bf16.mxu0 0
      %1628 = vmatpush1.bf16.msra.mxu0 0
      %1629 = vmatprep.subr.bf16.mxu0 0
      %1630 = vmatpush1.bf16.msra.mxu0 0
      %1631 = vmatprep.subr.bf16.mxu0 0
      %1632 = vmatpush1.bf16.msra.mxu0 0
      %1633 = vmatprep.subr.bf16.mxu0 0
      %1634 = vmatpush1.bf16.msra.mxu0 0
      %1635 = vmatprep.subr.bf16.mxu0 0
      %1636 = vmatpush1.bf16.msra.mxu0 0
      %1637 = vmatprep.subr.bf16.mxu0 0
      %1638 = vmatpush1.bf16.msra.mxu0 0
      %1639 = vmatprep.subr.bf16.mxu0 0
      %1640 = vmatpush1.bf16.msra.mxu0 0
      %1641 = vmatprep.subr.bf16.mxu0 0
      %1642 = vmatpush1.bf16.msra.mxu0 0
      %1643 = vmatprep.subr.bf16.mxu0 0
      %1644 = vmatpush1.bf16.msra.mxu0 0
      %1645 = vmatprep.subr.bf16.mxu0 0
      %1646 = vmatpush1.bf16.msra.mxu0 0
      %1647 = vmatprep.subr.bf16.mxu0 0
      %1648 = vmatpush1.bf16.msra.mxu0 0
      %1649 = vmatprep.subr.bf16.mxu0 0
      %1650 = vmatpush1.bf16.msra.mxu0 0
      %1651 = vmatprep.subr.bf16.mxu0 0
      %1652 = vmatpush1.bf16.msra.mxu0 0
      %1653 = vmatprep.mubr.bf16.mxu0 0
      %1654 = vmatmul.mubr.bf16.gmra.mrb[0].mxu0 %v1619
      %v1655 = vpop.f32.mrb[0].mxu0
      %v1656 = vadd.f32 %v1605, %v1655
      %v1657 = vpop.f32.mrb[0].mxu0
      %v1658 = vadd.f32 %v1607, %v1657
      %v1659 = vpop.f32.mrb[0].mxu0
      %v1660 = vadd.f32 %v1609, %v1659
      %v1661 = vpop.f32.mrb[0].mxu0
      %v1662 = vadd.f32 %v1611, %v1661
      %1663 = vdwg.mxu0
      %1664 = vrot.lane.b32.xlu0 %v1137, 112
      %v1665 = vpop.permute.xlu0 %1664
      %1666 = vrot.lane.b32.xlu0 %v1139, 112
      %v1667 = vpop.permute.xlu0 %1666
      %1668 = vrot.lane.b32.xlu0 %v1138, 112
      %v1669 = vpop.permute.xlu0 %1668
      %1670 = vrot.lane.b32.xlu0 %v1140, 112
      %v1671 = vpop.permute.xlu0 %1670
      %v1672 = vsel %vm862, %v1665, %v1669
      %v1673 = vsel %vm862, %v1667, %v1671
      %v1674 = vsel %vm862, %v1669, %v1665
      %v1675 = vsel %vm862, %v1671, %v1667
      %s1676 = scalar_lea.vmem %s4, 64
      %v1677 = vld [vmem:[%s1676] sm:$0xf]
      %v1678 = vld [vmem:[%s1676 + $0x4] sm:$0xf]
      %v1679 = vpack.c.bf16 %v1673, %v1672
      %v1680 = vpack.c.bf16 %v1675, %v1674
      %v1683 = vunpack.c.l.b16 %v1677
      %v1684 = vunpack.c.l.b16 %v1678
      %v1685 = vpack.c.b16 %v1684, %v1683
      %v1687 = vsel %vm462, %v1685, 0
      %1689 = vmatprep.subr.bf16.mxu0 %v1680
      %1690 = vmatpush1.bf16.msra.mxu0 %v1679
      %1691 = vmatprep.subr.bf16.mxu0 0
      %1692 = vmatpush1.bf16.msra.mxu0 0
      %1693 = vmatprep.subr.bf16.mxu0 0
      %1694 = vmatpush1.bf16.msra.mxu0 0
      %1695 = vmatprep.subr.bf16.mxu0 0
      %1696 = vmatpush1.bf16.msra.mxu0 0
      %1697 = vmatprep.subr.bf16.mxu0 0
      %1698 = vmatpush1.bf16.msra.mxu0 0
      %1699 = vmatprep.subr.bf16.mxu0 0
      %1700 = vmatpush1.bf16.msra.mxu0 0
      %1701 = vmatprep.subr.bf16.mxu0 0
      %1702 = vmatpush1.bf16.msra.mxu0 0
      %1703 = vmatprep.subr.bf16.mxu0 0
      %1704 = vmatpush1.bf16.msra.mxu0 0
      %1705 = vmatprep.subr.bf16.mxu0 0
      %1706 = vmatpush1.bf16.msra.mxu0 0
      %1707 = vmatprep.subr.bf16.mxu0 0
      %1708 = vmatpush1.bf16.msra.mxu0 0
      %1709 = vmatprep.subr.bf16.mxu0 0
      %1710 = vmatpush1.bf16.msra.mxu0 0
      %1711 = vmatprep.subr.bf16.mxu0 0
      %1712 = vmatpush1.bf16.msra.mxu0 0
      %1713 = vmatprep.subr.bf16.mxu0 0
      %1714 = vmatpush1.bf16.msra.mxu0 0
      %1715 = vmatprep.subr.bf16.mxu0 0
      %1716 = vmatpush1.bf16.msra.mxu0 0
      %1717 = vmatprep.subr.bf16.mxu0 0
      %1718 = vmatpush1.bf16.msra.mxu0 0
      %1719 = vmatprep.subr.bf16.mxu0 0
      %1720 = vmatpush1.bf16.msra.mxu0 0
      %1721 = vmatprep.mubr.bf16.mxu0 0
      %1722 = vmatmul.mubr.bf16.gmra.mrb[0].mxu0 %v1687
      %v1723 = vpop.f32.mrb[0].mxu0
      %v1724 = vadd.f32 0.0, %v1723
      %v1725 = vpop.f32.mrb[0].mxu0
      %v1726 = vadd.f32 0.0, %v1725
      %v1727 = vpop.f32.mrb[0].mxu0
      %v1728 = vadd.f32 0.0, %v1727
      %v1729 = vpop.f32.mrb[0].mxu0
      %v1730 = vadd.f32 0.0, %v1729
      %1731 = vdwg.mxu0
      %v1732 = vadd.f32 %v1656, %v1724
      %v1733 = vadd.f32 %v1658, %v1726
      %v1734 = vadd.f32 %v1660, %v1728
      %v1735 = vadd.f32 %v1662, %v1730
      %v1736 = vmul.f32 %v1076, %v1732
      %v1737 = vmul.f32 %v1080, %v1733
      %v1738 = vmul.f32 %v1076, %v1734
      %v1739 = vmul.f32 %v1080, %v1735
      %v1740 = vadd.f32 %v1524, %v1736
      %v1741 = vadd.f32 %v1525, %v1737
      %v1742 = vadd.f32 %v1526, %v1738
      %v1743 = vadd.f32 %v1527, %v1739
      %v1744 = vld [vmem:[%s5] sm:$0xff]
      %v1745 = vld [vmem:[%s5 + $0x8] sm:$0xff]
      %1747 = vset.pattern.permute.xlu0 0
      %1748 = vperm.xlu0 %1747, %v1744
      %v1749 = vpop.permute.xlu0 %1748
      %1752 = vset.pattern.permute.xlu0 0
      %1753 = vperm.xlu0 %1752, %v1745
      %v1754 = vpop.permute.xlu0 %1753
      %v1756 = vadd.f32 %v1740, %v1749
      %v1757 = vadd.f32 %v1741, %v1749
      %v1758 = vadd.f32 %v1742, %v1754
      %v1759 = vadd.f32 %v1743, %v1754
      %v1760 = vadd.f32 %v1756, %v1757
      %1761 = vadd.xlane.f32.xlu0 %v1760
      %v1762 = vpop.xlane.xlu0 %1761
      %v1763 = vadd.f32 %v1758, %v1759
      %1764 = vadd.xlane.f32.xlu0 %v1763
      %v1765 = vpop.xlane.xlu0 %1764
      %v1766 = vmul.f32 %v1762, 0.00390625
      %v1767 = vmul.f32 %v1765, 0.00390625
      %v1768 = vld [vmem:[%s6] sm:$0x3]
      %v1769 = vpack.c.bf16 %v1767, %v1766
      %v1770 = vld [vmem:[%s7] sm:$0xf]
      %v1772 = vsel %vm462, %v1768, 0
      %1774 = vmatprep.subr.bf16.mxu0 0
      %1775 = vmatpush1.bf16.msra.mxu0 %v1769
      %1776 = vmatprep.subr.bf16.mxu0 0
      %1777 = vmatpush1.bf16.msra.mxu0 0
      %1778 = vmatprep.subr.bf16.mxu0 0
      %1779 = vmatpush1.bf16.msra.mxu0 0
      %1780 = vmatprep.subr.bf16.mxu0 0
      %1781 = vmatpush1.bf16.msra.mxu0 0
      %1782 = vmatprep.subr.bf16.mxu0 0
      %1783 = vmatpush1.bf16.msra.mxu0 0
      %1784 = vmatprep.subr.bf16.mxu0 0
      %1785 = vmatpush1.bf16.msra.mxu0 0
      %1786 = vmatprep.subr.bf16.mxu0 0
      %1787 = vmatpush1.bf16.msra.mxu0 0
      %1788 = vmatprep.subr.bf16.mxu0 0
      %1789 = vmatpush1.bf16.msra.mxu0 0
      %1790 = vmatprep.subr.bf16.mxu0 0
      %1791 = vmatpush1.bf16.msra.mxu0 0
      %1792 = vmatprep.subr.bf16.mxu0 0
      %1793 = vmatpush1.bf16.msra.mxu0 0
      %1794 = vmatprep.subr.bf16.mxu0 0
      %1795 = vmatpush1.bf16.msra.mxu0 0
      %1796 = vmatprep.subr.bf16.mxu0 0
      %1797 = vmatpush1.bf16.msra.mxu0 0
      %1798 = vmatprep.subr.bf16.mxu0 0
      %1799 = vmatpush1.bf16.msra.mxu0 0
      %1800 = vmatprep.subr.bf16.mxu0 0
      %1801 = vmatpush1.bf16.msra.mxu0 0
      %1802 = vmatprep.subr.bf16.mxu0 0
      %1803 = vmatpush1.bf16.msra.mxu0 0
      %1804 = vmatprep.subr.bf16.mxu0 0
      %1805 = vmatpush1.bf16.msra.mxu0 0
      %1806 = vmatprep.mubr.bf16.mxu0 0
      %1807 = vmatmul.mubr.bf16.gmra.mrb[0].mxu0 %v1772
      %v1808 = vpop.f32.mrb[0].mxu0
      %v1809 = vadd.f32 %v1770, %v1808
      %v1810 = vpop.f32.mrb[0].mxu0
      %v1811 = vpop.f32.mrb[0].mxu0
      %v1812 = vpop.f32.mrb[0].mxu0
      %1813 = vdwg.mxu0
      %v1814 = vmax.f32 %v1809, 0.0
      %v1815 = vld [vmem:[%s8] sm:$0xf]
      %v1816 = vld [vmem:[%s8 + $0x4] sm:$0xf]
      %v1817 = vpack.c.bf16 %v1814, %v1814
      %v1818 = vld [vmem:[%s9] sm:$0xff]
      %v1819 = vld [vmem:[%s9 + $0x8] sm:$0xff]
      %v1822 = vunpack.c.l.b16 %v1815
      %v1823 = vunpack.c.l.b16 %v1816
      %v1824 = vpack.c.b16 %v1823, %v1822
      %vm1825 = vcmask 31744
      %v1827 = vsel %vm1825, %v1824, 0
      %vm1829 = vcmask 1041408
      %v1831 = vsel %vm1829, %v1817, 0
      %1833 = vmatprep.subr.bf16.mxu0 0
      %1834 = vmatpush1.bf16.msra.mxu0 %v1831
      %1835 = vmatprep.subr.bf16.mxu0 0
      %1836 = vmatpush1.bf16.msra.mxu0 0
      %1837 = vmatprep.subr.bf16.mxu0 0
      %1838 = vmatpush1.bf16.msra.mxu0 0
      %1839 = vmatprep.subr.bf16.mxu0 0
      %1840 = vmatpush1.bf16.msra.mxu0 0
      %1841 = vmatprep.subr.bf16.mxu0 0
      %1842 = vmatpush1.bf16.msra.mxu0 0
      %1843 = vmatprep.subr.bf16.mxu0 0
      %1844 = vmatpush1.bf16.msra.mxu0 0
      %1845 = vmatprep.subr.bf16.mxu0 0
      %1846 = vmatpush1.bf16.msra.mxu0 0
      %1847 = vmatprep.subr.bf16.mxu0 0
      %1848 = vmatpush1.bf16.msra.mxu0 0
      %1849 = vmatprep.subr.bf16.mxu0 0
      %1850 = vmatpush1.bf16.msra.mxu0 0
      %1851 = vmatprep.subr.bf16.mxu0 0
      %1852 = vmatpush1.bf16.msra.mxu0 0
      %1853 = vmatprep.subr.bf16.mxu0 0
      %1854 = vmatpush1.bf16.msra.mxu0 0
      %1855 = vmatprep.subr.bf16.mxu0 0
      %1856 = vmatpush1.bf16.msra.mxu0 0
      %1857 = vmatprep.subr.bf16.mxu0 0
      %1858 = vmatpush1.bf16.msra.mxu0 0
      %1859 = vmatprep.subr.bf16.mxu0 0
      %1860 = vmatpush1.bf16.msra.mxu0 0
      %1861 = vmatprep.subr.bf16.mxu0 0
      %1862 = vmatpush1.bf16.msra.mxu0 0
      %1863 = vmatprep.subr.bf16.mxu0 0
      %1864 = vmatpush1.bf16.msra.mxu0 0
      %1865 = vmatprep.mubr.bf16.mxu0 0
      %1866 = vmatmul.mubr.bf16.gmra.mrb[0].mxu0 %v1827
      %v1867 = vpop.f32.mrb[0].mxu0
      %v1868 = vadd.f32 %v1818, %v1867
      %v1869 = vpop.f32.mrb[0].mxu0
      %v1870 = vpop.f32.mrb[0].mxu0
      %v1871 = vadd.f32 %v1819, %v1870
      %v1872 = vpop.f32.mrb[0].mxu0
      %1873 = vdwg.mxu0
      %v1874 = vxor.u32 %v1868, 2147483648
      %v1875 = vxor.u32 %v1871, 2147483648
      %v1876 = vmul.f32 %v1874, 1.442695
      %v1877 = vpow.pop %v1876
      %v1878 = vmul.f32 %v1875, 1.442695
      %v1879 = vpow.pop %v1878
      %v1880 = vadd.f32 %v1877, 1.0
      %v1881 = vadd.f32 %v1879, 1.0
      %v1882 = vrcp.pop %v1880
      %v1883 = vmul.f32 1.0, %v1882
      %v1884 = vrcp.pop %v1881
      %v1885 = vmul.f32 1.0, %v1884
      %1887 = vset.pattern.permute.xlu0 0
      %1888 = vperm.xlu0 %1887, %v1883
      %v1889 = vpop.permute.xlu0 %1888
      %1892 = vset.pattern.permute.xlu0 0
      %1893 = vperm.xlu0 %1892, %v1885
      %v1894 = vpop.permute.xlu0 %1893
      %v1896 = vmul.f32 %v1756, %v1889
      %v1897 = vmul.f32 %v1757, %v1889
      %v1898 = vmul.f32 %v1758, %v1894
      %v1899 = vmul.f32 %v1759, %v1894
      %v1900 = vadd.f32 %v1896, %v370
      %v1901 = vadd.f32 %v1897, %v371
      %v1902 = vadd.f32 %v1898, %v372
      %v1903 = vadd.f32 %v1899, %v373
      %1904 = vst [vmem:[%s366] sm:$0xff] %v1900
      %1905 = vst [vmem:[%s366 + $0x8] sm:$0xff] %v1901
      %1906 = vst [vmem:[%s366 + $0x10] sm:$0xff] %v1902
      %1907 = vst [vmem:[%s366 + $0x18] sm:$0xff] %v1903
      %s1908 = scalar_lea.vmem %s359, 32
      %v1909 = vld [vmem:[%s1908] sm:$0xff]
      %v1910 = vld [vmem:[%s1908 + $0x8] sm:$0xff]
      %v1911 = vld [vmem:[%s1908 + $0x10] sm:$0xff]
      %v1912 = vld [vmem:[%s1908 + $0x18] sm:$0xff]
      %1913 = vrot.lane.b32.xlu0 %v1909, 1
      %v1914 = vpop.permute.xlu0 %1913
      %1915 = vrot.lane.b32.xlu0 %v1911, 1
      %v1916 = vpop.permute.xlu0 %1915
      %1917 = vrot.lane.b32.xlu0 %v1910, 1
      %v1918 = vpop.permute.xlu0 %1917
      %1919 = vrot.lane.b32.xlu0 %v1912, 1
      %v1920 = vpop.permute.xlu0 %1919
      %v1921 = vsel %vm384, %v1914, %v1918
      %v1922 = vsel %vm384, %v1916, %v1920
      %v1923 = vsel %vm384, %v1918, %v1914
      %v1924 = vsel %vm384, %v1920, %v1916
      %v1925 = vmul.f32 %v403, %v1923
      %v1926 = vmul.f32 %v407, %v1921
      %v1927 = vmul.f32 %v403, %v1924
      %v1928 = vmul.f32 %v407, %v1922
      %1929 = vrot.lane.b32.xlu0 %v1909, 127
      %v1930 = vpop.permute.xlu0 %1929
      %1931 = vrot.lane.b32.xlu0 %v1911, 127
      %v1932 = vpop.permute.xlu0 %1931
      %1933 = vrot.lane.b32.xlu0 %v1910, 127
      %v1934 = vpop.permute.xlu0 %1933
      %1935 = vrot.lane.b32.xlu0 %v1912, 127
      %v1936 = vpop.permute.xlu0 %1935
      %v1937 = vsel %vm420, %v1930, %v1934
      %v1938 = vsel %vm420, %v1932, %v1936
      %v1939 = vsel %vm420, %v1934, %v1930
      %v1940 = vsel %vm420, %v1936, %v1932
      %v1941 = vmul.f32 %v438, %v1937
      %v1942 = vmul.f32 %v442, %v1939
      %v1943 = vmul.f32 %v438, %v1938
      %v1944 = vmul.f32 %v442, %v1940
      %v1945 = vld [vmem:[%s447] sm:$0xf]
      %v1946 = vld [vmem:[%s447 + $0x4] sm:$0xf]
      %v1947 = vpack.c.bf16 %v1927, %v1925
      %v1948 = vpack.c.bf16 %v1928, %v1926
      %v1949 = vld [vmem:[%s452] sm:$0xf]
      %v1950 = vld [vmem:[%s452 + $0x4] sm:$0xf]
      %v1951 = vpack.c.bf16 %v1911, %v1909
      %v1952 = vpack.c.bf16 %v1912, %v1910
      %v1955 = vunpack.c.l.b16 %v1949
      %v1956 = vunpack.c.l.b16 %v1950
      %v1957 = vpack.c.b16 %v1956, %v1955
      %v1959 = vsel %vm462, %v1957, 0
      %1961 = vmatprep.subr.bf16.mxu0 %v1952
      %1962 = vmatpush1.bf16.msra.mxu0 %v1951
      %1963 = vmatprep.subr.bf16.mxu0 0
      %1964 = vmatpush1.bf16.msra.mxu0 0
      %1965 = vmatprep.subr.bf16.mxu0 0
      %1966 = vmatpush1.bf16.msra.mxu0 0
      %1967 = vmatprep.subr.bf16.mxu0 0
      %1968 = vmatpush1.bf16.msra.mxu0 0
      %1969 = vmatprep.subr.bf16.mxu0 0
      %1970 = vmatpush1.bf16.msra.mxu0 0
      %1971 = vmatprep.subr.bf16.mxu0 0
      %1972 = vmatpush1.bf16.msra.mxu0 0
      %1973 = vmatprep.subr.bf16.mxu0 0
      %1974 = vmatpush1.bf16.msra.mxu0 0
      %1975 = vmatprep.subr.bf16.mxu0 0
      %1976 = vmatpush1.bf16.msra.mxu0 0
      %1977 = vmatprep.subr.bf16.mxu0 0
      %1978 = vmatpush1.bf16.msra.mxu0 0
      %1979 = vmatprep.subr.bf16.mxu0 0
      %1980 = vmatpush1.bf16.msra.mxu0 0
      %1981 = vmatprep.subr.bf16.mxu0 0
      %1982 = vmatpush1.bf16.msra.mxu0 0
      %1983 = vmatprep.subr.bf16.mxu0 0
      %1984 = vmatpush1.bf16.msra.mxu0 0
      %1985 = vmatprep.subr.bf16.mxu0 0
      %1986 = vmatpush1.bf16.msra.mxu0 0
      %1987 = vmatprep.subr.bf16.mxu0 0
      %1988 = vmatpush1.bf16.msra.mxu0 0
      %1989 = vmatprep.subr.bf16.mxu0 0
      %1990 = vmatpush1.bf16.msra.mxu0 0
      %1991 = vmatprep.subr.bf16.mxu0 0
      %1992 = vmatpush1.bf16.msra.mxu0 0
      %1993 = vmatprep.mubr.bf16.mxu0 0
      %1994 = vmatmul.mubr.bf16.gmra.mrb[0].mxu0 %v1959
      %v1995 = vpop.f32.mrb[0].mxu0
      %v1996 = vadd.f32 0.0, %v1995
      %v1997 = vpop.f32.mrb[0].mxu0
      %v1998 = vadd.f32 0.0, %v1997
      %v1999 = vpop.f32.mrb[0].mxu0
      %v2000 = vadd.f32 0.0, %v1999
      %v2001 = vpop.f32.mrb[0].mxu0
      %v2002 = vadd.f32 0.0, %v2001
      %2003 = vdwg.mxu0
      %v2006 = vunpack.c.l.b16 %v1945
      %v2007 = vunpack.c.l.b16 %v1946
      %v2008 = vpack.c.b16 %v2007, %v2006
      %v2010 = vsel %vm462, %v2008, 0
      %2012 = vmatprep.subr.bf16.mxu0 %v1948
      %2013 = vmatpush1.bf16.msra.mxu0 %v1947
      %2014 = vmatprep.subr.bf16.mxu0 0
      %2015 = vmatpush1.bf16.msra.mxu0 0
      %2016 = vmatprep.subr.bf16.mxu0 0
      %2017 = vmatpush1.bf16.msra.mxu0 0
      %2018 = vmatprep.subr.bf16.mxu0 0
      %2019 = vmatpush1.bf16.msra.mxu0 0
      %2020 = vmatprep.subr.bf16.mxu0 0
      %2021 = vmatpush1.bf16.msra.mxu0 0
      %2022 = vmatprep.subr.bf16.mxu0 0
      %2023 = vmatpush1.bf16.msra.mxu0 0
      %2024 = vmatprep.subr.bf16.mxu0 0
      %2025 = vmatpush1.bf16.msra.mxu0 0
      %2026 = vmatprep.subr.bf16.mxu0 0
      %2027 = vmatpush1.bf16.msra.mxu0 0
      %2028 = vmatprep.subr.bf16.mxu0 0
      %2029 = vmatpush1.bf16.msra.mxu0 0
      %2030 = vmatprep.subr.bf16.mxu0 0
      %2031 = vmatpush1.bf16.msra.mxu0 0
      %2032 = vmatprep.subr.bf16.mxu0 0
      %2033 = vmatpush1.bf16.msra.mxu0 0
      %2034 = vmatprep.subr.bf16.mxu0 0
      %2035 = vmatpush1.bf16.msra.mxu0 0
      %2036 = vmatprep.subr.bf16.mxu0 0
      %2037 = vmatpush1.bf16.msra.mxu0 0
      %2038 = vmatprep.subr.bf16.mxu0 0
      %2039 = vmatpush1.bf16.msra.mxu0 0
      %2040 = vmatprep.subr.bf16.mxu0 0
      %2041 = vmatpush1.bf16.msra.mxu0 0
      %2042 = vmatprep.subr.bf16.mxu0 0
      %2043 = vmatpush1.bf16.msra.mxu0 0
      %2044 = vmatprep.mubr.bf16.mxu0 0
      %2045 = vmatmul.mubr.bf16.gmra.mrb[0].mxu0 %v2010
      %v2046 = vpop.f32.mrb[0].mxu0
      %v2047 = vadd.f32 %v1996, %v2046
      %v2048 = vpop.f32.mrb[0].mxu0
      %v2049 = vadd.f32 %v1998, %v2048
      %v2050 = vpop.f32.mrb[0].mxu0
      %v2051 = vadd.f32 %v2000, %v2050
      %v2052 = vpop.f32.mrb[0].mxu0
      %v2053 = vadd.f32 %v2002, %v2052
      %2054 = vdwg.mxu0
      %v2055 = vld [vmem:[%s560] sm:$0xf]
      %v2056 = vld [vmem:[%s560 + $0x4] sm:$0xf]
      %v2057 = vpack.c.bf16 %v1943, %v1941
      %v2058 = vpack.c.bf16 %v1944, %v1942
      %v2061 = vunpack.c.l.b16 %v2055
      %v2062 = vunpack.c.l.b16 %v2056
      %v2063 = vpack.c.b16 %v2062, %v2061
      %v2065 = vsel %vm462, %v2063, 0
      %2067 = vmatprep.subr.bf16.mxu0 %v2058
      %2068 = vmatpush1.bf16.msra.mxu0 %v2057
      %2069 = vmatprep.subr.bf16.mxu0 0
      %2070 = vmatpush1.bf16.msra.mxu0 0
      %2071 = vmatprep.subr.bf16.mxu0 0
      %2072 = vmatpush1.bf16.msra.mxu0 0
      %2073 = vmatprep.subr.bf16.mxu0 0
      %2074 = vmatpush1.bf16.msra.mxu0 0
      %2075 = vmatprep.subr.bf16.mxu0 0
      %2076 = vmatpush1.bf16.msra.mxu0 0
      %2077 = vmatprep.subr.bf16.mxu0 0
      %2078 = vmatpush1.bf16.msra.mxu0 0
      %2079 = vmatprep.subr.bf16.mxu0 0
      %2080 = vmatpush1.bf16.msra.mxu0 0
      %2081 = vmatprep.subr.bf16.mxu0 0
      %2082 = vmatpush1.bf16.msra.mxu0 0
      %2083 = vmatprep.subr.bf16.mxu0 0
      %2084 = vmatpush1.bf16.msra.mxu0 0
      %2085 = vmatprep.subr.bf16.mxu0 0
      %2086 = vmatpush1.bf16.msra.mxu0 0
      %2087 = vmatprep.subr.bf16.mxu0 0
      %2088 = vmatpush1.bf16.msra.mxu0 0
      %2089 = vmatprep.subr.bf16.mxu0 0
      %2090 = vmatpush1.bf16.msra.mxu0 0
      %2091 = vmatprep.subr.bf16.mxu0 0
      %2092 = vmatpush1.bf16.msra.mxu0 0
      %2093 = vmatprep.subr.bf16.mxu0 0
      %2094 = vmatpush1.bf16.msra.mxu0 0
      %2095 = vmatprep.subr.bf16.mxu0 0
      %2096 = vmatpush1.bf16.msra.mxu0 0
      %2097 = vmatprep.subr.bf16.mxu0 0
      %2098 = vmatpush1.bf16.msra.mxu0 0
      %2099 = vmatprep.mubr.bf16.mxu0 0
      %2100 = vmatmul.mubr.bf16.gmra.mrb[0].mxu0 %v2065
      %v2101 = vpop.f32.mrb[0].mxu0
      %v2102 = vadd.f32 0.0, %v2101
      %v2103 = vpop.f32.mrb[0].mxu0
      %v2104 = vadd.f32 0.0, %v2103
      %v2105 = vpop.f32.mrb[0].mxu0
      %v2106 = vadd.f32 0.0, %v2105
      %v2107 = vpop.f32.mrb[0].mxu0
      %v2108 = vadd.f32 0.0, %v2107
      %2109 = vdwg.mxu0
      %v2110 = vadd.f32 %v2047, %v2102
      %v2111 = vadd.f32 %v2049, %v2104
      %v2112 = vadd.f32 %v2051, %v2106
      %v2113 = vadd.f32 %v2053, %v2108
      %2114 = vrot.lane.b32.xlu0 %v1925, 16
      %v2115 = vpop.permute.xlu0 %2114
      %2116 = vrot.lane.b32.xlu0 %v1927, 16
      %v2117 = vpop.permute.xlu0 %2116
      %2118 = vrot.lane.b32.xlu0 %v1926, 16
      %v2119 = vpop.permute.xlu0 %2118
      %2120 = vrot.lane.b32.xlu0 %v1928, 16
      %v2121 = vpop.permute.xlu0 %2120
      %v2122 = vsel %vm628, %v2115, %v2119
      %v2123 = vsel %vm628, %v2117, %v2121
      %v2124 = vsel %vm628, %v2119, %v2115
      %v2125 = vsel %vm628, %v2121, %v2117
      %v2126 = vld [vmem:[%s2] sm:$0xf]
      %v2127 = vld [vmem:[%s2 + $0x4] sm:$0xf]
      %v2128 = vpack.c.bf16 %v2125, %v2124
      %v2129 = vpack.c.bf16 %v2123, %v2122
      %2130 = vrot.lane.b32.xlu0 %v1909, 16
      %v2131 = vpop.permute.xlu0 %2130
      %2132 = vrot.lane.b32.xlu0 %v1911, 16
      %v2133 = vpop.permute.xlu0 %2132
      %2134 = vrot.lane.b32.xlu0 %v1910, 16
      %v2135 = vpop.permute.xlu0 %2134
      %2136 = vrot.lane.b32.xlu0 %v1912, 16
      %v2137 = vpop.permute.xlu0 %2136
      %v2138 = vsel %vm628, %v2131, %v2135
      %v2139 = vsel %vm628, %v2133, %v2137
      %v2140 = vsel %vm628, %v2135, %v2131
      %v2141 = vsel %vm628, %v2137, %v2133
      %v2142 = vld [vmem:[%s649] sm:$0xf]
      %v2143 = vld [vmem:[%s649 + $0x4] sm:$0xf]
      %v2144 = vpack.c.bf16 %v2141, %v2140
      %v2145 = vpack.c.bf16 %v2139, %v2138
      %v2148 = vunpack.c.l.b16 %v2142
      %v2149 = vunpack.c.l.b16 %v2143
      %v2150 = vpack.c.b16 %v2149, %v2148
      %v2152 = vsel %vm462, %v2150, 0
      %2154 = vmatprep.subr.bf16.mxu0 %v2145
      %2155 = vmatpush1.bf16.msra.mxu0 %v2144
      %2156 = vmatprep.subr.bf16.mxu0 0
      %2157 = vmatpush1.bf16.msra.mxu0 0
      %2158 = vmatprep.subr.bf16.mxu0 0
      %2159 = vmatpush1.bf16.msra.mxu0 0
      %2160 = vmatprep.subr.bf16.mxu0 0
      %2161 = vmatpush1.bf16.msra.mxu0 0
      %2162 = vmatprep.subr.bf16.mxu0 0
      %2163 = vmatpush1.bf16.msra.mxu0 0
      %2164 = vmatprep.subr.bf16.mxu0 0
      %2165 = vmatpush1.bf16.msra.mxu0 0
      %2166 = vmatprep.subr.bf16.mxu0 0
      %2167 = vmatpush1.bf16.msra.mxu0 0
      %2168 = vmatprep.subr.bf16.mxu0 0
      %2169 = vmatpush1.bf16.msra.mxu0 0
      %2170 = vmatprep.subr.bf16.mxu0 0
      %2171 = vmatpush1.bf16.msra.mxu0 0
      %2172 = vmatprep.subr.bf16.mxu0 0
      %2173 = vmatpush1.bf16.msra.mxu0 0
      %2174 = vmatprep.subr.bf16.mxu0 0
      %2175 = vmatpush1.bf16.msra.mxu0 0
      %2176 = vmatprep.subr.bf16.mxu0 0
      %2177 = vmatpush1.bf16.msra.mxu0 0
      %2178 = vmatprep.subr.bf16.mxu0 0
      %2179 = vmatpush1.bf16.msra.mxu0 0
      %2180 = vmatprep.subr.bf16.mxu0 0
      %2181 = vmatpush1.bf16.msra.mxu0 0
      %2182 = vmatprep.subr.bf16.mxu0 0
      %2183 = vmatpush1.bf16.msra.mxu0 0
      %2184 = vmatprep.subr.bf16.mxu0 0
      %2185 = vmatpush1.bf16.msra.mxu0 0
      %2186 = vmatprep.mubr.bf16.mxu0 0
      %2187 = vmatmul.mubr.bf16.gmra.mrb[0].mxu0 %v2152
      %v2188 = vpop.f32.mrb[0].mxu0
      %v2189 = vadd.f32 0.0, %v2188
      %v2190 = vpop.f32.mrb[0].mxu0
      %v2191 = vadd.f32 0.0, %v2190
      %v2192 = vpop.f32.mrb[0].mxu0
      %v2193 = vadd.f32 0.0, %v2192
      %v2194 = vpop.f32.mrb[0].mxu0
      %v2195 = vadd.f32 0.0, %v2194
      %2196 = vdwg.mxu0
      %v2199 = vunpack.c.l.b16 %v2126
      %v2200 = vunpack.c.l.b16 %v2127
      %v2201 = vpack.c.b16 %v2200, %v2199
      %v2203 = vsel %vm462, %v2201, 0
      %2205 = vmatprep.subr.bf16.mxu0 %v2129
      %2206 = vmatpush1.bf16.msra.mxu0 %v2128
      %2207 = vmatprep.subr.bf16.mxu0 0
      %2208 = vmatpush1.bf16.msra.mxu0 0
      %2209 = vmatprep.subr.bf16.mxu0 0
      %2210 = vmatpush1.bf16.msra.mxu0 0
      %2211 = vmatprep.subr.bf16.mxu0 0
      %2212 = vmatpush1.bf16.msra.mxu0 0
      %2213 = vmatprep.subr.bf16.mxu0 0
      %2214 = vmatpush1.bf16.msra.mxu0 0
      %2215 = vmatprep.subr.bf16.mxu0 0
      %2216 = vmatpush1.bf16.msra.mxu0 0
      %2217 = vmatprep.subr.bf16.mxu0 0
      %2218 = vmatpush1.bf16.msra.mxu0 0
      %2219 = vmatprep.subr.bf16.mxu0 0
      %2220 = vmatpush1.bf16.msra.mxu0 0
      %2221 = vmatprep.subr.bf16.mxu0 0
      %2222 = vmatpush1.bf16.msra.mxu0 0
      %2223 = vmatprep.subr.bf16.mxu0 0
      %2224 = vmatpush1.bf16.msra.mxu0 0
      %2225 = vmatprep.subr.bf16.mxu0 0
      %2226 = vmatpush1.bf16.msra.mxu0 0
      %2227 = vmatprep.subr.bf16.mxu0 0
      %2228 = vmatpush1.bf16.msra.mxu0 0
      %2229 = vmatprep.subr.bf16.mxu0 0
      %2230 = vmatpush1.bf16.msra.mxu0 0
      %2231 = vmatprep.subr.bf16.mxu0 0
      %2232 = vmatpush1.bf16.msra.mxu0 0
      %2233 = vmatprep.subr.bf16.mxu0 0
      %2234 = vmatpush1.bf16.msra.mxu0 0
      %2235 = vmatprep.subr.bf16.mxu0 0
      %2236 = vmatpush1.bf16.msra.mxu0 0
      %2237 = vmatprep.mubr.bf16.mxu0 0
      %2238 = vmatmul.mubr.bf16.gmra.mrb[0].mxu0 %v2203
      %v2239 = vpop.f32.mrb[0].mxu0
      %v2240 = vadd.f32 %v2189, %v2239
      %v2241 = vpop.f32.mrb[0].mxu0
      %v2242 = vadd.f32 %v2191, %v2241
      %v2243 = vpop.f32.mrb[0].mxu0
      %v2244 = vadd.f32 %v2193, %v2243
      %v2245 = vpop.f32.mrb[0].mxu0
      %v2246 = vadd.f32 %v2195, %v2245
      %2247 = vdwg.mxu0
      %2248 = vrot.lane.b32.xlu0 %v1941, 16
      %v2249 = vpop.permute.xlu0 %2248
      %2250 = vrot.lane.b32.xlu0 %v1943, 16
      %v2251 = vpop.permute.xlu0 %2250
      %2252 = vrot.lane.b32.xlu0 %v1942, 16
      %v2253 = vpop.permute.xlu0 %2252
      %2254 = vrot.lane.b32.xlu0 %v1944, 16
      %v2255 = vpop.permute.xlu0 %2254
      %v2256 = vsel %vm628, %v2249, %v2253
      %v2257 = vsel %vm628, %v2251, %v2255
      %v2258 = vsel %vm628, %v2253, %v2249
      %v2259 = vsel %vm628, %v2255, %v2251
      %v2260 = vld [vmem:[%s768] sm:$0xf]
      %v2261 = vld [vmem:[%s768 + $0x4] sm:$0xf]
      %v2262 = vpack.c.bf16 %v2259, %v2258
      %v2263 = vpack.c.bf16 %v2257, %v2256
      %v2266 = vunpack.c.l.b16 %v2260
      %v2267 = vunpack.c.l.b16 %v2261
      %v2268 = vpack.c.b16 %v2267, %v2266
      %v2270 = vsel %vm462, %v2268, 0
      %2272 = vmatprep.subr.bf16.mxu0 %v2263
      %2273 = vmatpush1.bf16.msra.mxu0 %v2262
      %2274 = vmatprep.subr.bf16.mxu0 0
      %2275 = vmatpush1.bf16.msra.mxu0 0
      %2276 = vmatprep.subr.bf16.mxu0 0
      %2277 = vmatpush1.bf16.msra.mxu0 0
      %2278 = vmatprep.subr.bf16.mxu0 0
      %2279 = vmatpush1.bf16.msra.mxu0 0
      %2280 = vmatprep.subr.bf16.mxu0 0
      %2281 = vmatpush1.bf16.msra.mxu0 0
      %2282 = vmatprep.subr.bf16.mxu0 0
      %2283 = vmatpush1.bf16.msra.mxu0 0
      %2284 = vmatprep.subr.bf16.mxu0 0
      %2285 = vmatpush1.bf16.msra.mxu0 0
      %2286 = vmatprep.subr.bf16.mxu0 0
      %2287 = vmatpush1.bf16.msra.mxu0 0
      %2288 = vmatprep.subr.bf16.mxu0 0
      %2289 = vmatpush1.bf16.msra.mxu0 0
      %2290 = vmatprep.subr.bf16.mxu0 0
      %2291 = vmatpush1.bf16.msra.mxu0 0
      %2292 = vmatprep.subr.bf16.mxu0 0
      %2293 = vmatpush1.bf16.msra.mxu0 0
      %2294 = vmatprep.subr.bf16.mxu0 0
      %2295 = vmatpush1.bf16.msra.mxu0 0
      %2296 = vmatprep.subr.bf16.mxu0 0
      %2297 = vmatpush1.bf16.msra.mxu0 0
      %2298 = vmatprep.subr.bf16.mxu0 0
      %2299 = vmatpush1.bf16.msra.mxu0 0
      %2300 = vmatprep.subr.bf16.mxu0 0
      %2301 = vmatpush1.bf16.msra.mxu0 0
      %2302 = vmatprep.subr.bf16.mxu0 0
      %2303 = vmatpush1.bf16.msra.mxu0 0
      %2304 = vmatprep.mubr.bf16.mxu0 0
      %2305 = vmatmul.mubr.bf16.gmra.mrb[0].mxu0 %v2270
      %v2306 = vpop.f32.mrb[0].mxu0
      %v2307 = vadd.f32 0.0, %v2306
      %v2308 = vpop.f32.mrb[0].mxu0
      %v2309 = vadd.f32 0.0, %v2308
      %v2310 = vpop.f32.mrb[0].mxu0
      %v2311 = vadd.f32 0.0, %v2310
      %v2312 = vpop.f32.mrb[0].mxu0
      %v2313 = vadd.f32 0.0, %v2312
      %2314 = vdwg.mxu0
      %v2315 = vadd.f32 %v2240, %v2307
      %v2316 = vadd.f32 %v2242, %v2309
      %v2317 = vadd.f32 %v2244, %v2311
      %v2318 = vadd.f32 %v2246, %v2313
      %v2319 = vmul.f32 %v841, %v2315
      %v2320 = vmul.f32 %v845, %v2316
      %v2321 = vmul.f32 %v841, %v2317
      %v2322 = vmul.f32 %v845, %v2318
      %v2323 = vadd.f32 %v2110, %v2319
      %v2324 = vadd.f32 %v2111, %v2320
      %v2325 = vadd.f32 %v2112, %v2321
      %v2326 = vadd.f32 %v2113, %v2322
      %2327 = vrot.lane.b32.xlu0 %v1925, 112
      %v2328 = vpop.permute.xlu0 %2327
      %2329 = vrot.lane.b32.xlu0 %v1927, 112
      %v2330 = vpop.permute.xlu0 %2329
      %2331 = vrot.lane.b32.xlu0 %v1926, 112
      %v2332 = vpop.permute.xlu0 %2331
      %2333 = vrot.lane.b32.xlu0 %v1928, 112
      %v2334 = vpop.permute.xlu0 %2333
      %v2335 = vsel %vm862, %v2328, %v2332
      %v2336 = vsel %vm862, %v2330, %v2334
      %v2337 = vsel %vm862, %v2332, %v2328
      %v2338 = vsel %vm862, %v2334, %v2330
      %v2339 = vld [vmem:[%s867] sm:$0xf]
      %v2340 = vld [vmem:[%s867 + $0x4] sm:$0xf]
      %v2341 = vpack.c.bf16 %v2336, %v2335
      %v2342 = vpack.c.bf16 %v2338, %v2337
      %2343 = vrot.lane.b32.xlu0 %v1909, 112
      %v2344 = vpop.permute.xlu0 %2343
      %2345 = vrot.lane.b32.xlu0 %v1911, 112
      %v2346 = vpop.permute.xlu0 %2345
      %2347 = vrot.lane.b32.xlu0 %v1910, 112
      %v2348 = vpop.permute.xlu0 %2347
      %2349 = vrot.lane.b32.xlu0 %v1912, 112
      %v2350 = vpop.permute.xlu0 %2349
      %v2351 = vsel %vm862, %v2344, %v2348
      %v2352 = vsel %vm862, %v2346, %v2350
      %v2353 = vsel %vm862, %v2348, %v2344
      %v2354 = vsel %vm862, %v2350, %v2346
      %v2355 = vld [vmem:[%s884] sm:$0xf]
      %v2356 = vld [vmem:[%s884 + $0x4] sm:$0xf]
      %v2357 = vpack.c.bf16 %v2352, %v2351
      %v2358 = vpack.c.bf16 %v2354, %v2353
      %v2361 = vunpack.c.l.b16 %v2355
      %v2362 = vunpack.c.l.b16 %v2356
      %v2363 = vpack.c.b16 %v2362, %v2361
      %v2365 = vsel %vm462, %v2363, 0
      %2367 = vmatprep.subr.bf16.mxu0 %v2358
      %2368 = vmatpush1.bf16.msra.mxu0 %v2357
      %2369 = vmatprep.subr.bf16.mxu0 0
      %2370 = vmatpush1.bf16.msra.mxu0 0
      %2371 = vmatprep.subr.bf16.mxu0 0
      %2372 = vmatpush1.bf16.msra.mxu0 0
      %2373 = vmatprep.subr.bf16.mxu0 0
      %2374 = vmatpush1.bf16.msra.mxu0 0
      %2375 = vmatprep.subr.bf16.mxu0 0
      %2376 = vmatpush1.bf16.msra.mxu0 0
      %2377 = vmatprep.subr.bf16.mxu0 0
      %2378 = vmatpush1.bf16.msra.mxu0 0
      %2379 = vmatprep.subr.bf16.mxu0 0
      %2380 = vmatpush1.bf16.msra.mxu0 0
      %2381 = vmatprep.subr.bf16.mxu0 0
      %2382 = vmatpush1.bf16.msra.mxu0 0
      %2383 = vmatprep.subr.bf16.mxu0 0
      %2384 = vmatpush1.bf16.msra.mxu0 0
      %2385 = vmatprep.subr.bf16.mxu0 0
      %2386 = vmatpush1.bf16.msra.mxu0 0
      %2387 = vmatprep.subr.bf16.mxu0 0
      %2388 = vmatpush1.bf16.msra.mxu0 0
      %2389 = vmatprep.subr.bf16.mxu0 0
      %2390 = vmatpush1.bf16.msra.mxu0 0
      %2391 = vmatprep.subr.bf16.mxu0 0
      %2392 = vmatpush1.bf16.msra.mxu0 0
      %2393 = vmatprep.subr.bf16.mxu0 0
      %2394 = vmatpush1.bf16.msra.mxu0 0
      %2395 = vmatprep.subr.bf16.mxu0 0
      %2396 = vmatpush1.bf16.msra.mxu0 0
      %2397 = vmatprep.subr.bf16.mxu0 0
      %2398 = vmatpush1.bf16.msra.mxu0 0
      %2399 = vmatprep.mubr.bf16.mxu0 0
      %2400 = vmatmul.mubr.bf16.gmra.mrb[0].mxu0 %v2365
      %v2401 = vpop.f32.mrb[0].mxu0
      %v2402 = vadd.f32 0.0, %v2401
      %v2403 = vpop.f32.mrb[0].mxu0
      %v2404 = vadd.f32 0.0, %v2403
      %v2405 = vpop.f32.mrb[0].mxu0
      %v2406 = vadd.f32 0.0, %v2405
      %v2407 = vpop.f32.mrb[0].mxu0
      %v2408 = vadd.f32 0.0, %v2407
      %2409 = vdwg.mxu0
      %v2412 = vunpack.c.l.b16 %v2339
      %v2413 = vunpack.c.l.b16 %v2340
      %v2414 = vpack.c.b16 %v2413, %v2412
      %v2416 = vsel %vm462, %v2414, 0
      %2418 = vmatprep.subr.bf16.mxu0 %v2342
      %2419 = vmatpush1.bf16.msra.mxu0 %v2341
      %2420 = vmatprep.subr.bf16.mxu0 0
      %2421 = vmatpush1.bf16.msra.mxu0 0
      %2422 = vmatprep.subr.bf16.mxu0 0
      %2423 = vmatpush1.bf16.msra.mxu0 0
      %2424 = vmatprep.subr.bf16.mxu0 0
      %2425 = vmatpush1.bf16.msra.mxu0 0
      %2426 = vmatprep.subr.bf16.mxu0 0
      %2427 = vmatpush1.bf16.msra.mxu0 0
      %2428 = vmatprep.subr.bf16.mxu0 0
      %2429 = vmatpush1.bf16.msra.mxu0 0
      %2430 = vmatprep.subr.bf16.mxu0 0
      %2431 = vmatpush1.bf16.msra.mxu0 0
      %2432 = vmatprep.subr.bf16.mxu0 0
      %2433 = vmatpush1.bf16.msra.mxu0 0
      %2434 = vmatprep.subr.bf16.mxu0 0
      %2435 = vmatpush1.bf16.msra.mxu0 0
      %2436 = vmatprep.subr.bf16.mxu0 0
      %2437 = vmatpush1.bf16.msra.mxu0 0
      %2438 = vmatprep.subr.bf16.mxu0 0
      %2439 = vmatpush1.bf16.msra.mxu0 0
      %2440 = vmatprep.subr.bf16.mxu0 0
      %2441 = vmatpush1.bf16.msra.mxu0 0
      %2442 = vmatprep.subr.bf16.mxu0 0
      %2443 = vmatpush1.bf16.msra.mxu0 0
      %2444 = vmatprep.subr.bf16.mxu0 0
      %2445 = vmatpush1.bf16.msra.mxu0 0
      %2446 = vmatprep.subr.bf16.mxu0 0
      %2447 = vmatpush1.bf16.msra.mxu0 0
      %2448 = vmatprep.subr.bf16.mxu0 0
      %2449 = vmatpush1.bf16.msra.mxu0 0
      %2450 = vmatprep.mubr.bf16.mxu0 0
      %2451 = vmatmul.mubr.bf16.gmra.mrb[0].mxu0 %v2416
      %v2452 = vpop.f32.mrb[0].mxu0
      %v2453 = vadd.f32 %v2402, %v2452
      %v2454 = vpop.f32.mrb[0].mxu0
      %v2455 = vadd.f32 %v2404, %v2454
      %v2456 = vpop.f32.mrb[0].mxu0
      %v2457 = vadd.f32 %v2406, %v2456
      %v2458 = vpop.f32.mrb[0].mxu0
      %v2459 = vadd.f32 %v2408, %v2458
      %2460 = vdwg.mxu0
      %2461 = vrot.lane.b32.xlu0 %v1941, 112
      %v2462 = vpop.permute.xlu0 %2461
      %2463 = vrot.lane.b32.xlu0 %v1943, 112
      %v2464 = vpop.permute.xlu0 %2463
      %2465 = vrot.lane.b32.xlu0 %v1942, 112
      %v2466 = vpop.permute.xlu0 %2465
      %2467 = vrot.lane.b32.xlu0 %v1944, 112
      %v2468 = vpop.permute.xlu0 %2467
      %v2469 = vsel %vm862, %v2462, %v2466
      %v2470 = vsel %vm862, %v2464, %v2468
      %v2471 = vsel %vm862, %v2466, %v2462
      %v2472 = vsel %vm862, %v2468, %v2464
      %v2473 = vld [vmem:[%s1003] sm:$0xf]
      %v2474 = vld [vmem:[%s1003 + $0x4] sm:$0xf]
      %v2475 = vpack.c.bf16 %v2470, %v2469
      %v2476 = vpack.c.bf16 %v2472, %v2471
      %v2479 = vunpack.c.l.b16 %v2473
      %v2480 = vunpack.c.l.b16 %v2474
      %v2481 = vpack.c.b16 %v2480, %v2479
      %v2483 = vsel %vm462, %v2481, 0
      %2485 = vmatprep.subr.bf16.mxu0 %v2476
      %2486 = vmatpush1.bf16.msra.mxu0 %v2475
      %2487 = vmatprep.subr.bf16.mxu0 0
      %2488 = vmatpush1.bf16.msra.mxu0 0
      %2489 = vmatprep.subr.bf16.mxu0 0
      %2490 = vmatpush1.bf16.msra.mxu0 0
      %2491 = vmatprep.subr.bf16.mxu0 0
      %2492 = vmatpush1.bf16.msra.mxu0 0
      %2493 = vmatprep.subr.bf16.mxu0 0
      %2494 = vmatpush1.bf16.msra.mxu0 0
      %2495 = vmatprep.subr.bf16.mxu0 0
      %2496 = vmatpush1.bf16.msra.mxu0 0
      %2497 = vmatprep.subr.bf16.mxu0 0
      %2498 = vmatpush1.bf16.msra.mxu0 0
      %2499 = vmatprep.subr.bf16.mxu0 0
      %2500 = vmatpush1.bf16.msra.mxu0 0
      %2501 = vmatprep.subr.bf16.mxu0 0
      %2502 = vmatpush1.bf16.msra.mxu0 0
      %2503 = vmatprep.subr.bf16.mxu0 0
      %2504 = vmatpush1.bf16.msra.mxu0 0
      %2505 = vmatprep.subr.bf16.mxu0 0
      %2506 = vmatpush1.bf16.msra.mxu0 0
      %2507 = vmatprep.subr.bf16.mxu0 0
      %2508 = vmatpush1.bf16.msra.mxu0 0
      %2509 = vmatprep.subr.bf16.mxu0 0
      %2510 = vmatpush1.bf16.msra.mxu0 0
      %2511 = vmatprep.subr.bf16.mxu0 0
      %2512 = vmatpush1.bf16.msra.mxu0 0
      %2513 = vmatprep.subr.bf16.mxu0 0
      %2514 = vmatpush1.bf16.msra.mxu0 0
      %2515 = vmatprep.subr.bf16.mxu0 0
      %2516 = vmatpush1.bf16.msra.mxu0 0
      %2517 = vmatprep.mubr.bf16.mxu0 0
      %2518 = vmatmul.mubr.bf16.gmra.mrb[0].mxu0 %v2483
      %v2519 = vpop.f32.mrb[0].mxu0
      %v2520 = vadd.f32 0.0, %v2519
      %v2521 = vpop.f32.mrb[0].mxu0
      %v2522 = vadd.f32 0.0, %v2521
      %v2523 = vpop.f32.mrb[0].mxu0
      %v2524 = vadd.f32 0.0, %v2523
      %v2525 = vpop.f32.mrb[0].mxu0
      %v2526 = vadd.f32 0.0, %v2525
      %2527 = vdwg.mxu0
      %v2528 = vadd.f32 %v2453, %v2520
      %v2529 = vadd.f32 %v2455, %v2522
      %v2530 = vadd.f32 %v2457, %v2524
      %v2531 = vadd.f32 %v2459, %v2526
      %v2532 = vmul.f32 %v1076, %v2528
      %v2533 = vmul.f32 %v1080, %v2529
      %v2534 = vmul.f32 %v1076, %v2530
      %v2535 = vmul.f32 %v1080, %v2531
      %v2536 = vadd.f32 %v2323, %v2532
      %v2537 = vadd.f32 %v2324, %v2533
      %v2538 = vadd.f32 %v2325, %v2534
      %v2539 = vadd.f32 %v2326, %v2535
      %v2540 = vld [vmem:[%s3] sm:$0xff]
      %v2541 = vld [vmem:[%s3 + $0x8] sm:$0xff]
      %2543 = vset.pattern.permute.xlu0 0
      %2544 = vperm.xlu0 %2543, %v2540
      %v2545 = vpop.permute.xlu0 %2544
      %2548 = vset.pattern.permute.xlu0 0
      %2549 = vperm.xlu0 %2548, %v2541
      %v2550 = vpop.permute.xlu0 %2549
      %v2552 = vadd.f32 %v2536, %v2545
      %v2553 = vadd.f32 %v2537, %v2545
      %v2554 = vadd.f32 %v2538, %v2550
      %v2555 = vadd.f32 %v2539, %v2550
      %v2556 = vmax.f32 %v2552, 0.0
      %v2557 = vmax.f32 %v2553, 0.0
      %v2558 = vmax.f32 %v2554, 0.0
      %v2559 = vmax.f32 %v2555, 0.0
      %2560 = vrot.lane.b32.xlu0 %v2556, 1
      %v2561 = vpop.permute.xlu0 %2560
      %2562 = vrot.lane.b32.xlu0 %v2558, 1
      %v2563 = vpop.permute.xlu0 %2562
      %2564 = vrot.lane.b32.xlu0 %v2557, 1
      %v2565 = vpop.permute.xlu0 %2564
      %2566 = vrot.lane.b32.xlu0 %v2559, 1
      %v2567 = vpop.permute.xlu0 %2566
      %v2568 = vsel %vm384, %v2561, %v2565
      %v2569 = vsel %vm384, %v2563, %v2567
      %v2570 = vsel %vm384, %v2565, %v2561
      %v2571 = vsel %vm384, %v2567, %v2563
      %v2572 = vmul.f32 %v403, %v2570
      %v2573 = vmul.f32 %v407, %v2568
      %v2574 = vmul.f32 %v403, %v2571
      %v2575 = vmul.f32 %v407, %v2569
      %2576 = vrot.lane.b32.xlu0 %v2556, 127
      %v2577 = vpop.permute.xlu0 %2576
      %2578 = vrot.lane.b32.xlu0 %v2558, 127
      %v2579 = vpop.permute.xlu0 %2578
      %2580 = vrot.lane.b32.xlu0 %v2557, 127
      %v2581 = vpop.permute.xlu0 %2580
      %2582 = vrot.lane.b32.xlu0 %v2559, 127
      %v2583 = vpop.permute.xlu0 %2582
      %v2584 = vsel %vm420, %v2577, %v2581
      %v2585 = vsel %vm420, %v2579, %v2583
      %v2586 = vsel %vm420, %v2581, %v2577
      %v2587 = vsel %vm420, %v2583, %v2579
      %v2588 = vmul.f32 %v438, %v2584
      %v2589 = vmul.f32 %v442, %v2586
      %v2590 = vmul.f32 %v438, %v2585
      %v2591 = vmul.f32 %v442, %v2587
      %v2592 = vld [vmem:[%s1141] sm:$0xf]
      %v2593 = vld [vmem:[%s1141 + $0x4] sm:$0xf]
      %v2594 = vpack.c.bf16 %v2574, %v2572
      %v2595 = vpack.c.bf16 %v2575, %v2573
      %v2596 = vld [vmem:[%s1146] sm:$0xf]
      %v2597 = vld [vmem:[%s1146 + $0x4] sm:$0xf]
      %v2598 = vpack.c.bf16 %v2558, %v2556
      %v2599 = vpack.c.bf16 %v2559, %v2557
      %v2602 = vunpack.c.l.b16 %v2596
      %v2603 = vunpack.c.l.b16 %v2597
      %v2604 = vpack.c.b16 %v2603, %v2602
      %v2606 = vsel %vm462, %v2604, 0
      %2608 = vmatprep.subr.bf16.mxu0 %v2599
      %2609 = vmatpush1.bf16.msra.mxu0 %v2598
      %2610 = vmatprep.subr.bf16.mxu0 0
      %2611 = vmatpush1.bf16.msra.mxu0 0
      %2612 = vmatprep.subr.bf16.mxu0 0
      %2613 = vmatpush1.bf16.msra.mxu0 0
      %2614 = vmatprep.subr.bf16.mxu0 0
      %2615 = vmatpush1.bf16.msra.mxu0 0
      %2616 = vmatprep.subr.bf16.mxu0 0
      %2617 = vmatpush1.bf16.msra.mxu0 0
      %2618 = vmatprep.subr.bf16.mxu0 0
      %2619 = vmatpush1.bf16.msra.mxu0 0
      %2620 = vmatprep.subr.bf16.mxu0 0
      %2621 = vmatpush1.bf16.msra.mxu0 0
      %2622 = vmatprep.subr.bf16.mxu0 0
      %2623 = vmatpush1.bf16.msra.mxu0 0
      %2624 = vmatprep.subr.bf16.mxu0 0
      %2625 = vmatpush1.bf16.msra.mxu0 0
      %2626 = vmatprep.subr.bf16.mxu0 0
      %2627 = vmatpush1.bf16.msra.mxu0 0
      %2628 = vmatprep.subr.bf16.mxu0 0
      %2629 = vmatpush1.bf16.msra.mxu0 0
      %2630 = vmatprep.subr.bf16.mxu0 0
      %2631 = vmatpush1.bf16.msra.mxu0 0
      %2632 = vmatprep.subr.bf16.mxu0 0
      %2633 = vmatpush1.bf16.msra.mxu0 0
      %2634 = vmatprep.subr.bf16.mxu0 0
      %2635 = vmatpush1.bf16.msra.mxu0 0
      %2636 = vmatprep.subr.bf16.mxu0 0
      %2637 = vmatpush1.bf16.msra.mxu0 0
      %2638 = vmatprep.subr.bf16.mxu0 0
      %2639 = vmatpush1.bf16.msra.mxu0 0
      %2640 = vmatprep.mubr.bf16.mxu0 0
      %2641 = vmatmul.mubr.bf16.gmra.mrb[0].mxu0 %v2606
      %v2642 = vpop.f32.mrb[0].mxu0
      %v2643 = vadd.f32 0.0, %v2642
      %v2644 = vpop.f32.mrb[0].mxu0
      %v2645 = vadd.f32 0.0, %v2644
      %v2646 = vpop.f32.mrb[0].mxu0
      %v2647 = vadd.f32 0.0, %v2646
      %v2648 = vpop.f32.mrb[0].mxu0
      %v2649 = vadd.f32 0.0, %v2648
      %2650 = vdwg.mxu0
      %v2653 = vunpack.c.l.b16 %v2592
      %v2654 = vunpack.c.l.b16 %v2593
      %v2655 = vpack.c.b16 %v2654, %v2653
      %v2657 = vsel %vm462, %v2655, 0
      %2659 = vmatprep.subr.bf16.mxu0 %v2595
      %2660 = vmatpush1.bf16.msra.mxu0 %v2594
      %2661 = vmatprep.subr.bf16.mxu0 0
      %2662 = vmatpush1.bf16.msra.mxu0 0
      %2663 = vmatprep.subr.bf16.mxu0 0
      %2664 = vmatpush1.bf16.msra.mxu0 0
      %2665 = vmatprep.subr.bf16.mxu0 0
      %2666 = vmatpush1.bf16.msra.mxu0 0
      %2667 = vmatprep.subr.bf16.mxu0 0
      %2668 = vmatpush1.bf16.msra.mxu0 0
      %2669 = vmatprep.subr.bf16.mxu0 0
      %2670 = vmatpush1.bf16.msra.mxu0 0
      %2671 = vmatprep.subr.bf16.mxu0 0
      %2672 = vmatpush1.bf16.msra.mxu0 0
      %2673 = vmatprep.subr.bf16.mxu0 0
      %2674 = vmatpush1.bf16.msra.mxu0 0
      %2675 = vmatprep.subr.bf16.mxu0 0
      %2676 = vmatpush1.bf16.msra.mxu0 0
      %2677 = vmatprep.subr.bf16.mxu0 0
      %2678 = vmatpush1.bf16.msra.mxu0 0
      %2679 = vmatprep.subr.bf16.mxu0 0
      %2680 = vmatpush1.bf16.msra.mxu0 0
      %2681 = vmatprep.subr.bf16.mxu0 0
      %2682 = vmatpush1.bf16.msra.mxu0 0
      %2683 = vmatprep.subr.bf16.mxu0 0
      %2684 = vmatpush1.bf16.msra.mxu0 0
      %2685 = vmatprep.subr.bf16.mxu0 0
      %2686 = vmatpush1.bf16.msra.mxu0 0
      %2687 = vmatprep.subr.bf16.mxu0 0
      %2688 = vmatpush1.bf16.msra.mxu0 0
      %2689 = vmatprep.subr.bf16.mxu0 0
      %2690 = vmatpush1.bf16.msra.mxu0 0
      %2691 = vmatprep.mubr.bf16.mxu0 0
      %2692 = vmatmul.mubr.bf16.gmra.mrb[0].mxu0 %v2657
      %v2693 = vpop.f32.mrb[0].mxu0
      %v2694 = vadd.f32 %v2643, %v2693
      %v2695 = vpop.f32.mrb[0].mxu0
      %v2696 = vadd.f32 %v2645, %v2695
      %v2697 = vpop.f32.mrb[0].mxu0
      %v2698 = vadd.f32 %v2647, %v2697
      %v2699 = vpop.f32.mrb[0].mxu0
      %v2700 = vadd.f32 %v2649, %v2699
      %2701 = vdwg.mxu0
      %v2702 = vld [vmem:[%s1253] sm:$0xf]
      %v2703 = vld [vmem:[%s1253 + $0x4] sm:$0xf]
      %v2704 = vpack.c.bf16 %v2590, %v2588
      %v2705 = vpack.c.bf16 %v2591, %v2589
      %v2708 = vunpack.c.l.b16 %v2702
      %v2709 = vunpack.c.l.b16 %v2703
      %v2710 = vpack.c.b16 %v2709, %v2708
      %v2712 = vsel %vm462, %v2710, 0
      %2714 = vmatprep.subr.bf16.mxu0 %v2705
      %2715 = vmatpush1.bf16.msra.mxu0 %v2704
      %2716 = vmatprep.subr.bf16.mxu0 0
      %2717 = vmatpush1.bf16.msra.mxu0 0
      %2718 = vmatprep.subr.bf16.mxu0 0
      %2719 = vmatpush1.bf16.msra.mxu0 0
      %2720 = vmatprep.subr.bf16.mxu0 0
      %2721 = vmatpush1.bf16.msra.mxu0 0
      %2722 = vmatprep.subr.bf16.mxu0 0
      %2723 = vmatpush1.bf16.msra.mxu0 0
      %2724 = vmatprep.subr.bf16.mxu0 0
      %2725 = vmatpush1.bf16.msra.mxu0 0
      %2726 = vmatprep.subr.bf16.mxu0 0
      %2727 = vmatpush1.bf16.msra.mxu0 0
      %2728 = vmatprep.subr.bf16.mxu0 0
      %2729 = vmatpush1.bf16.msra.mxu0 0
      %2730 = vmatprep.subr.bf16.mxu0 0
      %2731 = vmatpush1.bf16.msra.mxu0 0
      %2732 = vmatprep.subr.bf16.mxu0 0
      %2733 = vmatpush1.bf16.msra.mxu0 0
      %2734 = vmatprep.subr.bf16.mxu0 0
      %2735 = vmatpush1.bf16.msra.mxu0 0
      %2736 = vmatprep.subr.bf16.mxu0 0
      %2737 = vmatpush1.bf16.msra.mxu0 0
      %2738 = vmatprep.subr.bf16.mxu0 0
      %2739 = vmatpush1.bf16.msra.mxu0 0
      %2740 = vmatprep.subr.bf16.mxu0 0
      %2741 = vmatpush1.bf16.msra.mxu0 0
      %2742 = vmatprep.subr.bf16.mxu0 0
      %2743 = vmatpush1.bf16.msra.mxu0 0
      %2744 = vmatprep.subr.bf16.mxu0 0
      %2745 = vmatpush1.bf16.msra.mxu0 0
      %2746 = vmatprep.mubr.bf16.mxu0 0
      %2747 = vmatmul.mubr.bf16.gmra.mrb[0].mxu0 %v2712
      %v2748 = vpop.f32.mrb[0].mxu0
      %v2749 = vadd.f32 0.0, %v2748
      %v2750 = vpop.f32.mrb[0].mxu0
      %v2751 = vadd.f32 0.0, %v2750
      %v2752 = vpop.f32.mrb[0].mxu0
      %v2753 = vadd.f32 0.0, %v2752
      %v2754 = vpop.f32.mrb[0].mxu0
      %v2755 = vadd.f32 0.0, %v2754
      %2756 = vdwg.mxu0
      %v2757 = vadd.f32 %v2694, %v2749
      %v2758 = vadd.f32 %v2696, %v2751
      %v2759 = vadd.f32 %v2698, %v2753
      %v2760 = vadd.f32 %v2700, %v2755
      %2761 = vrot.lane.b32.xlu0 %v2572, 16
      %v2762 = vpop.permute.xlu0 %2761
      %2763 = vrot.lane.b32.xlu0 %v2574, 16
      %v2764 = vpop.permute.xlu0 %2763
      %2765 = vrot.lane.b32.xlu0 %v2573, 16
      %v2766 = vpop.permute.xlu0 %2765
      %2767 = vrot.lane.b32.xlu0 %v2575, 16
      %v2768 = vpop.permute.xlu0 %2767
      %v2769 = vsel %vm628, %v2762, %v2766
      %v2770 = vsel %vm628, %v2764, %v2768
      %v2771 = vsel %vm628, %v2766, %v2762
      %v2772 = vsel %vm628, %v2768, %v2764
      %v2773 = vld [vmem:[%s4] sm:$0xf]
      %v2774 = vld [vmem:[%s4 + $0x4] sm:$0xf]
      %v2775 = vpack.c.bf16 %v2772, %v2771
      %v2776 = vpack.c.bf16 %v2770, %v2769
      %2777 = vrot.lane.b32.xlu0 %v2556, 16
      %v2778 = vpop.permute.xlu0 %2777
      %2779 = vrot.lane.b32.xlu0 %v2558, 16
      %v2780 = vpop.permute.xlu0 %2779
      %2781 = vrot.lane.b32.xlu0 %v2557, 16
      %v2782 = vpop.permute.xlu0 %2781
      %2783 = vrot.lane.b32.xlu0 %v2559, 16
      %v2784 = vpop.permute.xlu0 %2783
      %v2785 = vsel %vm628, %v2778, %v2782
      %v2786 = vsel %vm628, %v2780, %v2784
      %v2787 = vsel %vm628, %v2782, %v2778
      %v2788 = vsel %vm628, %v2784, %v2780
      %v2789 = vld [vmem:[%s1341] sm:$0xf]
      %v2790 = vld [vmem:[%s1341 + $0x4] sm:$0xf]
      %v2791 = vpack.c.bf16 %v2788, %v2787
      %v2792 = vpack.c.bf16 %v2786, %v2785
      %v2795 = vunpack.c.l.b16 %v2789
      %v2796 = vunpack.c.l.b16 %v2790
      %v2797 = vpack.c.b16 %v2796, %v2795
      %v2799 = vsel %vm462, %v2797, 0
      %2801 = vmatprep.subr.bf16.mxu0 %v2792
      %2802 = vmatpush1.bf16.msra.mxu0 %v2791
      %2803 = vmatprep.subr.bf16.mxu0 0
      %2804 = vmatpush1.bf16.msra.mxu0 0
      %2805 = vmatprep.subr.bf16.mxu0 0
      %2806 = vmatpush1.bf16.msra.mxu0 0
      %2807 = vmatprep.subr.bf16.mxu0 0
      %2808 = vmatpush1.bf16.msra.mxu0 0
      %2809 = vmatprep.subr.bf16.mxu0 0
      %2810 = vmatpush1.bf16.msra.mxu0 0
      %2811 = vmatprep.subr.bf16.mxu0 0
      %2812 = vmatpush1.bf16.msra.mxu0 0
      %2813 = vmatprep.subr.bf16.mxu0 0
      %2814 = vmatpush1.bf16.msra.mxu0 0
      %2815 = vmatprep.subr.bf16.mxu0 0
      %2816 = vmatpush1.bf16.msra.mxu0 0
      %2817 = vmatprep.subr.bf16.mxu0 0
      %2818 = vmatpush1.bf16.msra.mxu0 0
      %2819 = vmatprep.subr.bf16.mxu0 0
      %2820 = vmatpush1.bf16.msra.mxu0 0
      %2821 = vmatprep.subr.bf16.mxu0 0
      %2822 = vmatpush1.bf16.msra.mxu0 0
      %2823 = vmatprep.subr.bf16.mxu0 0
      %2824 = vmatpush1.bf16.msra.mxu0 0
      %2825 = vmatprep.subr.bf16.mxu0 0
      %2826 = vmatpush1.bf16.msra.mxu0 0
      %2827 = vmatprep.subr.bf16.mxu0 0
      %2828 = vmatpush1.bf16.msra.mxu0 0
      %2829 = vmatprep.subr.bf16.mxu0 0
      %2830 = vmatpush1.bf16.msra.mxu0 0
      %2831 = vmatprep.subr.bf16.mxu0 0
      %2832 = vmatpush1.bf16.msra.mxu0 0
      %2833 = vmatprep.mubr.bf16.mxu0 0
      %2834 = vmatmul.mubr.bf16.gmra.mrb[0].mxu0 %v2799
      %v2835 = vpop.f32.mrb[0].mxu0
      %v2836 = vadd.f32 0.0, %v2835
      %v2837 = vpop.f32.mrb[0].mxu0
      %v2838 = vadd.f32 0.0, %v2837
      %v2839 = vpop.f32.mrb[0].mxu0
      %v2840 = vadd.f32 0.0, %v2839
      %v2841 = vpop.f32.mrb[0].mxu0
      %v2842 = vadd.f32 0.0, %v2841
      %2843 = vdwg.mxu0
      %v2846 = vunpack.c.l.b16 %v2773
      %v2847 = vunpack.c.l.b16 %v2774
      %v2848 = vpack.c.b16 %v2847, %v2846
      %v2850 = vsel %vm462, %v2848, 0
      %2852 = vmatprep.subr.bf16.mxu0 %v2776
      %2853 = vmatpush1.bf16.msra.mxu0 %v2775
      %2854 = vmatprep.subr.bf16.mxu0 0
      %2855 = vmatpush1.bf16.msra.mxu0 0
      %2856 = vmatprep.subr.bf16.mxu0 0
      %2857 = vmatpush1.bf16.msra.mxu0 0
      %2858 = vmatprep.subr.bf16.mxu0 0
      %2859 = vmatpush1.bf16.msra.mxu0 0
      %2860 = vmatprep.subr.bf16.mxu0 0
      %2861 = vmatpush1.bf16.msra.mxu0 0
      %2862 = vmatprep.subr.bf16.mxu0 0
      %2863 = vmatpush1.bf16.msra.mxu0 0
      %2864 = vmatprep.subr.bf16.mxu0 0
      %2865 = vmatpush1.bf16.msra.mxu0 0
      %2866 = vmatprep.subr.bf16.mxu0 0
      %2867 = vmatpush1.bf16.msra.mxu0 0
      %2868 = vmatprep.subr.bf16.mxu0 0
      %2869 = vmatpush1.bf16.msra.mxu0 0
      %2870 = vmatprep.subr.bf16.mxu0 0
      %2871 = vmatpush1.bf16.msra.mxu0 0
      %2872 = vmatprep.subr.bf16.mxu0 0
      %2873 = vmatpush1.bf16.msra.mxu0 0
      %2874 = vmatprep.subr.bf16.mxu0 0
      %2875 = vmatpush1.bf16.msra.mxu0 0
      %2876 = vmatprep.subr.bf16.mxu0 0
      %2877 = vmatpush1.bf16.msra.mxu0 0
      %2878 = vmatprep.subr.bf16.mxu0 0
      %2879 = vmatpush1.bf16.msra.mxu0 0
      %2880 = vmatprep.subr.bf16.mxu0 0
      %2881 = vmatpush1.bf16.msra.mxu0 0
      %2882 = vmatprep.subr.bf16.mxu0 0
      %2883 = vmatpush1.bf16.msra.mxu0 0
      %2884 = vmatprep.mubr.bf16.mxu0 0
      %2885 = vmatmul.mubr.bf16.gmra.mrb[0].mxu0 %v2850
      %v2886 = vpop.f32.mrb[0].mxu0
      %v2887 = vadd.f32 %v2836, %v2886
      %v2888 = vpop.f32.mrb[0].mxu0
      %v2889 = vadd.f32 %v2838, %v2888
      %v2890 = vpop.f32.mrb[0].mxu0
      %v2891 = vadd.f32 %v2840, %v2890
      %v2892 = vpop.f32.mrb[0].mxu0
      %v2893 = vadd.f32 %v2842, %v2892
      %2894 = vdwg.mxu0
      %2895 = vrot.lane.b32.xlu0 %v2588, 16
      %v2896 = vpop.permute.xlu0 %2895
      %2897 = vrot.lane.b32.xlu0 %v2590, 16
      %v2898 = vpop.permute.xlu0 %2897
      %2899 = vrot.lane.b32.xlu0 %v2589, 16
      %v2900 = vpop.permute.xlu0 %2899
      %2901 = vrot.lane.b32.xlu0 %v2591, 16
      %v2902 = vpop.permute.xlu0 %2901
      %v2903 = vsel %vm628, %v2896, %v2900
      %v2904 = vsel %vm628, %v2898, %v2902
      %v2905 = vsel %vm628, %v2900, %v2896
      %v2906 = vsel %vm628, %v2902, %v2898
      %v2907 = vld [vmem:[%s1460] sm:$0xf]
      %v2908 = vld [vmem:[%s1460 + $0x4] sm:$0xf]
      %v2909 = vpack.c.bf16 %v2906, %v2905
      %v2910 = vpack.c.bf16 %v2904, %v2903
      %v2913 = vunpack.c.l.b16 %v2907
      %v2914 = vunpack.c.l.b16 %v2908
      %v2915 = vpack.c.b16 %v2914, %v2913
      %v2917 = vsel %vm462, %v2915, 0
      %2919 = vmatprep.subr.bf16.mxu0 %v2910
      %2920 = vmatpush1.bf16.msra.mxu0 %v2909
      %2921 = vmatprep.subr.bf16.mxu0 0
      %2922 = vmatpush1.bf16.msra.mxu0 0
      %2923 = vmatprep.subr.bf16.mxu0 0
      %2924 = vmatpush1.bf16.msra.mxu0 0
      %2925 = vmatprep.subr.bf16.mxu0 0
      %2926 = vmatpush1.bf16.msra.mxu0 0
      %2927 = vmatprep.subr.bf16.mxu0 0
      %2928 = vmatpush1.bf16.msra.mxu0 0
      %2929 = vmatprep.subr.bf16.mxu0 0
      %2930 = vmatpush1.bf16.msra.mxu0 0
      %2931 = vmatprep.subr.bf16.mxu0 0
      %2932 = vmatpush1.bf16.msra.mxu0 0
      %2933 = vmatprep.subr.bf16.mxu0 0
      %2934 = vmatpush1.bf16.msra.mxu0 0
      %2935 = vmatprep.subr.bf16.mxu0 0
      %2936 = vmatpush1.bf16.msra.mxu0 0
      %2937 = vmatprep.subr.bf16.mxu0 0
      %2938 = vmatpush1.bf16.msra.mxu0 0
      %2939 = vmatprep.subr.bf16.mxu0 0
      %2940 = vmatpush1.bf16.msra.mxu0 0
      %2941 = vmatprep.subr.bf16.mxu0 0
      %2942 = vmatpush1.bf16.msra.mxu0 0
      %2943 = vmatprep.subr.bf16.mxu0 0
      %2944 = vmatpush1.bf16.msra.mxu0 0
      %2945 = vmatprep.subr.bf16.mxu0 0
      %2946 = vmatpush1.bf16.msra.mxu0 0
      %2947 = vmatprep.subr.bf16.mxu0 0
      %2948 = vmatpush1.bf16.msra.mxu0 0
      %2949 = vmatprep.subr.bf16.mxu0 0
      %2950 = vmatpush1.bf16.msra.mxu0 0
      %2951 = vmatprep.mubr.bf16.mxu0 0
      %2952 = vmatmul.mubr.bf16.gmra.mrb[0].mxu0 %v2917
      %v2953 = vpop.f32.mrb[0].mxu0
      %v2954 = vadd.f32 0.0, %v2953
      %v2955 = vpop.f32.mrb[0].mxu0
      %v2956 = vadd.f32 0.0, %v2955
      %v2957 = vpop.f32.mrb[0].mxu0
      %v2958 = vadd.f32 0.0, %v2957
      %v2959 = vpop.f32.mrb[0].mxu0
      %v2960 = vadd.f32 0.0, %v2959
      %2961 = vdwg.mxu0
      %v2962 = vadd.f32 %v2887, %v2954
      %v2963 = vadd.f32 %v2889, %v2956
      %v2964 = vadd.f32 %v2891, %v2958
      %v2965 = vadd.f32 %v2893, %v2960
      %v2966 = vmul.f32 %v841, %v2962
      %v2967 = vmul.f32 %v845, %v2963
      %v2968 = vmul.f32 %v841, %v2964
      %v2969 = vmul.f32 %v845, %v2965
      %v2970 = vadd.f32 %v2757, %v2966
      %v2971 = vadd.f32 %v2758, %v2967
      %v2972 = vadd.f32 %v2759, %v2968
      %v2973 = vadd.f32 %v2760, %v2969
      %2974 = vrot.lane.b32.xlu0 %v2572, 112
      %v2975 = vpop.permute.xlu0 %2974
      %2976 = vrot.lane.b32.xlu0 %v2574, 112
      %v2977 = vpop.permute.xlu0 %2976
      %2978 = vrot.lane.b32.xlu0 %v2573, 112
      %v2979 = vpop.permute.xlu0 %2978
      %2980 = vrot.lane.b32.xlu0 %v2575, 112
      %v2981 = vpop.permute.xlu0 %2980
      %v2982 = vsel %vm862, %v2975, %v2979
      %v2983 = vsel %vm862, %v2977, %v2981
      %v2984 = vsel %vm862, %v2979, %v2975
      %v2985 = vsel %vm862, %v2981, %v2977
      %v2986 = vld [vmem:[%s1540] sm:$0xf]
      %v2987 = vld [vmem:[%s1540 + $0x4] sm:$0xf]
      %v2988 = vpack.c.bf16 %v2983, %v2982
      %v2989 = vpack.c.bf16 %v2985, %v2984
      %2990 = vrot.lane.b32.xlu0 %v2556, 112
      %v2991 = vpop.permute.xlu0 %2990
      %2992 = vrot.lane.b32.xlu0 %v2558, 112
      %v2993 = vpop.permute.xlu0 %2992
      %2994 = vrot.lane.b32.xlu0 %v2557, 112
      %v2995 = vpop.permute.xlu0 %2994
      %2996 = vrot.lane.b32.xlu0 %v2559, 112
      %v2997 = vpop.permute.xlu0 %2996
      %v2998 = vsel %vm862, %v2991, %v2995
      %v2999 = vsel %vm862, %v2993, %v2997
      %v3000 = vsel %vm862, %v2995, %v2991
      %v3001 = vsel %vm862, %v2997, %v2993
      %v3002 = vld [vmem:[%s1557] sm:$0xf]
      %v3003 = vld [vmem:[%s1557 + $0x4] sm:$0xf]
      %v3004 = vpack.c.bf16 %v2999, %v2998
      %v3005 = vpack.c.bf16 %v3001, %v3000
      %v3008 = vunpack.c.l.b16 %v3002
      %v3009 = vunpack.c.l.b16 %v3003
      %v3010 = vpack.c.b16 %v3009, %v3008
      %v3012 = vsel %vm462, %v3010, 0
      %3014 = vmatprep.subr.bf16.mxu0 %v3005
      %3015 = vmatpush1.bf16.msra.mxu0 %v3004
      %3016 = vmatprep.subr.bf16.mxu0 0
      %3017 = vmatpush1.bf16.msra.mxu0 0
      %3018 = vmatprep.subr.bf16.mxu0 0
      %3019 = vmatpush1.bf16.msra.mxu0 0
      %3020 = vmatprep.subr.bf16.mxu0 0
      %3021 = vmatpush1.bf16.msra.mxu0 0
      %3022 = vmatprep.subr.bf16.mxu0 0
      %3023 = vmatpush1.bf16.msra.mxu0 0
      %3024 = vmatprep.subr.bf16.mxu0 0
      %3025 = vmatpush1.bf16.msra.mxu0 0
      %3026 = vmatprep.subr.bf16.mxu0 0
      %3027 = vmatpush1.bf16.msra.mxu0 0
      %3028 = vmatprep.subr.bf16.mxu0 0
      %3029 = vmatpush1.bf16.msra.mxu0 0
      %3030 = vmatprep.subr.bf16.mxu0 0
      %3031 = vmatpush1.bf16.msra.mxu0 0
      %3032 = vmatprep.subr.bf16.mxu0 0
      %3033 = vmatpush1.bf16.msra.mxu0 0
      %3034 = vmatprep.subr.bf16.mxu0 0
      %3035 = vmatpush1.bf16.msra.mxu0 0
      %3036 = vmatprep.subr.bf16.mxu0 0
      %3037 = vmatpush1.bf16.msra.mxu0 0
      %3038 = vmatprep.subr.bf16.mxu0 0
      %3039 = vmatpush1.bf16.msra.mxu0 0
      %3040 = vmatprep.subr.bf16.mxu0 0
      %3041 = vmatpush1.bf16.msra.mxu0 0
      %3042 = vmatprep.subr.bf16.mxu0 0
      %3043 = vmatpush1.bf16.msra.mxu0 0
      %3044 = vmatprep.subr.bf16.mxu0 0
      %3045 = vmatpush1.bf16.msra.mxu0 0
      %3046 = vmatprep.mubr.bf16.mxu0 0
      %3047 = vmatmul.mubr.bf16.gmra.mrb[0].mxu0 %v3012
      %v3048 = vpop.f32.mrb[0].mxu0
      %v3049 = vadd.f32 0.0, %v3048
      %v3050 = vpop.f32.mrb[0].mxu0
      %v3051 = vadd.f32 0.0, %v3050
      %v3052 = vpop.f32.mrb[0].mxu0
      %v3053 = vadd.f32 0.0, %v3052
      %v3054 = vpop.f32.mrb[0].mxu0
      %v3055 = vadd.f32 0.0, %v3054
      %3056 = vdwg.mxu0
      %v3059 = vunpack.c.l.b16 %v2986
      %v3060 = vunpack.c.l.b16 %v2987
      %v3061 = vpack.c.b16 %v3060, %v3059
      %v3063 = vsel %vm462, %v3061, 0
      %3065 = vmatprep.subr.bf16.mxu0 %v2989
      %3066 = vmatpush1.bf16.msra.mxu0 %v2988
      %3067 = vmatprep.subr.bf16.mxu0 0
      %3068 = vmatpush1.bf16.msra.mxu0 0
      %3069 = vmatprep.subr.bf16.mxu0 0
      %3070 = vmatpush1.bf16.msra.mxu0 0
      %3071 = vmatprep.subr.bf16.mxu0 0
      %3072 = vmatpush1.bf16.msra.mxu0 0
      %3073 = vmatprep.subr.bf16.mxu0 0
      %3074 = vmatpush1.bf16.msra.mxu0 0
      %3075 = vmatprep.subr.bf16.mxu0 0
      %3076 = vmatpush1.bf16.msra.mxu0 0
      %3077 = vmatprep.subr.bf16.mxu0 0
      %3078 = vmatpush1.bf16.msra.mxu0 0
      %3079 = vmatprep.subr.bf16.mxu0 0
      %3080 = vmatpush1.bf16.msra.mxu0 0
      %3081 = vmatprep.subr.bf16.mxu0 0
      %3082 = vmatpush1.bf16.msra.mxu0 0
      %3083 = vmatprep.subr.bf16.mxu0 0
      %3084 = vmatpush1.bf16.msra.mxu0 0
      %3085 = vmatprep.subr.bf16.mxu0 0
      %3086 = vmatpush1.bf16.msra.mxu0 0
      %3087 = vmatprep.subr.bf16.mxu0 0
      %3088 = vmatpush1.bf16.msra.mxu0 0
      %3089 = vmatprep.subr.bf16.mxu0 0
      %3090 = vmatpush1.bf16.msra.mxu0 0
      %3091 = vmatprep.subr.bf16.mxu0 0
      %3092 = vmatpush1.bf16.msra.mxu0 0
      %3093 = vmatprep.subr.bf16.mxu0 0
      %3094 = vmatpush1.bf16.msra.mxu0 0
      %3095 = vmatprep.subr.bf16.mxu0 0
      %3096 = vmatpush1.bf16.msra.mxu0 0
      %3097 = vmatprep.mubr.bf16.mxu0 0
      %3098 = vmatmul.mubr.bf16.gmra.mrb[0].mxu0 %v3063
      %v3099 = vpop.f32.mrb[0].mxu0
      %v3100 = vadd.f32 %v3049, %v3099
      %v3101 = vpop.f32.mrb[0].mxu0
      %v3102 = vadd.f32 %v3051, %v3101
      %v3103 = vpop.f32.mrb[0].mxu0
      %v3104 = vadd.f32 %v3053, %v3103
      %v3105 = vpop.f32.mrb[0].mxu0
      %v3106 = vadd.f32 %v3055, %v3105
      %3107 = vdwg.mxu0
      %3108 = vrot.lane.b32.xlu0 %v2588, 112
      %v3109 = vpop.permute.xlu0 %3108
      %3110 = vrot.lane.b32.xlu0 %v2590, 112
      %v3111 = vpop.permute.xlu0 %3110
      %3112 = vrot.lane.b32.xlu0 %v2589, 112
      %v3113 = vpop.permute.xlu0 %3112
      %3114 = vrot.lane.b32.xlu0 %v2591, 112
      %v3115 = vpop.permute.xlu0 %3114
      %v3116 = vsel %vm862, %v3109, %v3113
      %v3117 = vsel %vm862, %v3111, %v3115
      %v3118 = vsel %vm862, %v3113, %v3109
      %v3119 = vsel %vm862, %v3115, %v3111
      %v3120 = vld [vmem:[%s1676] sm:$0xf]
      %v3121 = vld [vmem:[%s1676 + $0x4] sm:$0xf]
      %v3122 = vpack.c.bf16 %v3117, %v3116
      %v3123 = vpack.c.bf16 %v3119, %v3118
      %v3126 = vunpack.c.l.b16 %v3120
      %v3127 = vunpack.c.l.b16 %v3121
      %v3128 = vpack.c.b16 %v3127, %v3126
      %v3130 = vsel %vm462, %v3128, 0
      %3132 = vmatprep.subr.bf16.mxu0 %v3123
      %3133 = vmatpush1.bf16.msra.mxu0 %v3122
      %3134 = vmatprep.subr.bf16.mxu0 0
      %3135 = vmatpush1.bf16.msra.mxu0 0
      %3136 = vmatprep.subr.bf16.mxu0 0
      %3137 = vmatpush1.bf16.msra.mxu0 0
      %3138 = vmatprep.subr.bf16.mxu0 0
      %3139 = vmatpush1.bf16.msra.mxu0 0
      %3140 = vmatprep.subr.bf16.mxu0 0
      %3141 = vmatpush1.bf16.msra.mxu0 0
      %3142 = vmatprep.subr.bf16.mxu0 0
      %3143 = vmatpush1.bf16.msra.mxu0 0
      %3144 = vmatprep.subr.bf16.mxu0 0
      %3145 = vmatpush1.bf16.msra.mxu0 0
      %3146 = vmatprep.subr.bf16.mxu0 0
      %3147 = vmatpush1.bf16.msra.mxu0 0
      %3148 = vmatprep.subr.bf16.mxu0 0
      %3149 = vmatpush1.bf16.msra.mxu0 0
      %3150 = vmatprep.subr.bf16.mxu0 0
      %3151 = vmatpush1.bf16.msra.mxu0 0
      %3152 = vmatprep.subr.bf16.mxu0 0
      %3153 = vmatpush1.bf16.msra.mxu0 0
      %3154 = vmatprep.subr.bf16.mxu0 0
      %3155 = vmatpush1.bf16.msra.mxu0 0
      %3156 = vmatprep.subr.bf16.mxu0 0
      %3157 = vmatpush1.bf16.msra.mxu0 0
      %3158 = vmatprep.subr.bf16.mxu0 0
      %3159 = vmatpush1.bf16.msra.mxu0 0
      %3160 = vmatprep.subr.bf16.mxu0 0
      %3161 = vmatpush1.bf16.msra.mxu0 0
      %3162 = vmatprep.subr.bf16.mxu0 0
      %3163 = vmatpush1.bf16.msra.mxu0 0
      %3164 = vmatprep.mubr.bf16.mxu0 0
      %3165 = vmatmul.mubr.bf16.gmra.mrb[0].mxu0 %v3130
      %v3166 = vpop.f32.mrb[0].mxu0
      %v3167 = vadd.f32 0.0, %v3166
      %v3168 = vpop.f32.mrb[0].mxu0
      %v3169 = vadd.f32 0.0, %v3168
      %v3170 = vpop.f32.mrb[0].mxu0
      %v3171 = vadd.f32 0.0, %v3170
      %v3172 = vpop.f32.mrb[0].mxu0
      %v3173 = vadd.f32 0.0, %v3172
      %3174 = vdwg.mxu0
      %v3175 = vadd.f32 %v3100, %v3167
      %v3176 = vadd.f32 %v3102, %v3169
      %v3177 = vadd.f32 %v3104, %v3171
      %v3178 = vadd.f32 %v3106, %v3173
      %v3179 = vmul.f32 %v1076, %v3175
      %v3180 = vmul.f32 %v1080, %v3176
      %v3181 = vmul.f32 %v1076, %v3177
      %v3182 = vmul.f32 %v1080, %v3178
      %v3183 = vadd.f32 %v2970, %v3179
      %v3184 = vadd.f32 %v2971, %v3180
      %v3185 = vadd.f32 %v2972, %v3181
      %v3186 = vadd.f32 %v2973, %v3182
      %v3187 = vld [vmem:[%s5] sm:$0xff]
      %v3188 = vld [vmem:[%s5 + $0x8] sm:$0xff]
      %3190 = vset.pattern.permute.xlu0 0
      %3191 = vperm.xlu0 %3190, %v3187
      %v3192 = vpop.permute.xlu0 %3191
      %3195 = vset.pattern.permute.xlu0 0
      %3196 = vperm.xlu0 %3195, %v3188
      %v3197 = vpop.permute.xlu0 %3196
      %v3199 = vadd.f32 %v3183, %v3192
      %v3200 = vadd.f32 %v3184, %v3192
      %v3201 = vadd.f32 %v3185, %v3197
      %v3202 = vadd.f32 %v3186, %v3197
      %v3203 = vadd.f32 %v3199, %v3200
      %3204 = vadd.xlane.f32.xlu0 %v3203
      %v3205 = vpop.xlane.xlu0 %3204
      %v3206 = vadd.f32 %v3201, %v3202
      %3207 = vadd.xlane.f32.xlu0 %v3206
      %v3208 = vpop.xlane.xlu0 %3207
      %v3209 = vmul.f32 %v3205, 0.00390625
      %v3210 = vmul.f32 %v3208, 0.00390625
      %v3211 = vld [vmem:[%s6] sm:$0x3]
      %v3212 = vpack.c.bf16 %v3210, %v3209
      %v3213 = vld [vmem:[%s7] sm:$0xf]
      %v3215 = vsel %vm462, %v3211, 0
      %3217 = vmatprep.subr.bf16.mxu0 0
      %3218 = vmatpush1.bf16.msra.mxu0 %v3212
      %3219 = vmatprep.subr.bf16.mxu0 0
      %3220 = vmatpush1.bf16.msra.mxu0 0
      %3221 = vmatprep.subr.bf16.mxu0 0
      %3222 = vmatpush1.bf16.msra.mxu0 0
      %3223 = vmatprep.subr.bf16.mxu0 0
      %3224 = vmatpush1.bf16.msra.mxu0 0
      %3225 = vmatprep.subr.bf16.mxu0 0
      %3226 = vmatpush1.bf16.msra.mxu0 0
      %3227 = vmatprep.subr.bf16.mxu0 0
      %3228 = vmatpush1.bf16.msra.mxu0 0
      %3229 = vmatprep.subr.bf16.mxu0 0
      %3230 = vmatpush1.bf16.msra.mxu0 0
      %3231 = vmatprep.subr.bf16.mxu0 0
      %3232 = vmatpush1.bf16.msra.mxu0 0
      %3233 = vmatprep.subr.bf16.mxu0 0
      %3234 = vmatpush1.bf16.msra.mxu0 0
      %3235 = vmatprep.subr.bf16.mxu0 0
      %3236 = vmatpush1.bf16.msra.mxu0 0
      %3237 = vmatprep.subr.bf16.mxu0 0
      %3238 = vmatpush1.bf16.msra.mxu0 0
      %3239 = vmatprep.subr.bf16.mxu0 0
      %3240 = vmatpush1.bf16.msra.mxu0 0
      %3241 = vmatprep.subr.bf16.mxu0 0
      %3242 = vmatpush1.bf16.msra.mxu0 0
      %3243 = vmatprep.subr.bf16.mxu0 0
      %3244 = vmatpush1.bf16.msra.mxu0 0
      %3245 = vmatprep.subr.bf16.mxu0 0
      %3246 = vmatpush1.bf16.msra.mxu0 0
      %3247 = vmatprep.subr.bf16.mxu0 0
      %3248 = vmatpush1.bf16.msra.mxu0 0
      %3249 = vmatprep.mubr.bf16.mxu0 0
      %3250 = vmatmul.mubr.bf16.gmra.mrb[0].mxu0 %v3215
      %v3251 = vpop.f32.mrb[0].mxu0
      %v3252 = vadd.f32 %v3213, %v3251
      %v3253 = vpop.f32.mrb[0].mxu0
      %v3254 = vpop.f32.mrb[0].mxu0
      %v3255 = vpop.f32.mrb[0].mxu0
      %3256 = vdwg.mxu0
      %v3257 = vmax.f32 %v3252, 0.0
      %v3258 = vld [vmem:[%s8] sm:$0xf]
      %v3259 = vld [vmem:[%s8 + $0x4] sm:$0xf]
      %v3260 = vpack.c.bf16 %v3257, %v3257
      %v3261 = vld [vmem:[%s9] sm:$0xff]
      %v3262 = vld [vmem:[%s9 + $0x8] sm:$0xff]
      %v3265 = vunpack.c.l.b16 %v3258
      %v3266 = vunpack.c.l.b16 %v3259
      %v3267 = vpack.c.b16 %v3266, %v3265
      %v3269 = vsel %vm1825, %v3267, 0
      %v3272 = vsel %vm1829, %v3260, 0
      %3274 = vmatprep.subr.bf16.mxu0 0
      %3275 = vmatpush1.bf16.msra.mxu0 %v3272
      %3276 = vmatprep.subr.bf16.mxu0 0
      %3277 = vmatpush1.bf16.msra.mxu0 0
      %3278 = vmatprep.subr.bf16.mxu0 0
      %3279 = vmatpush1.bf16.msra.mxu0 0
      %3280 = vmatprep.subr.bf16.mxu0 0
      %3281 = vmatpush1.bf16.msra.mxu0 0
      %3282 = vmatprep.subr.bf16.mxu0 0
      %3283 = vmatpush1.bf16.msra.mxu0 0
      %3284 = vmatprep.subr.bf16.mxu0 0
      %3285 = vmatpush1.bf16.msra.mxu0 0
      %3286 = vmatprep.subr.bf16.mxu0 0
      %3287 = vmatpush1.bf16.msra.mxu0 0
      %3288 = vmatprep.subr.bf16.mxu0 0
      %3289 = vmatpush1.bf16.msra.mxu0 0
      %3290 = vmatprep.subr.bf16.mxu0 0
      %3291 = vmatpush1.bf16.msra.mxu0 0
      %3292 = vmatprep.subr.bf16.mxu0 0
      %3293 = vmatpush1.bf16.msra.mxu0 0
      %3294 = vmatprep.subr.bf16.mxu0 0
      %3295 = vmatpush1.bf16.msra.mxu0 0
      %3296 = vmatprep.subr.bf16.mxu0 0
      %3297 = vmatpush1.bf16.msra.mxu0 0
      %3298 = vmatprep.subr.bf16.mxu0 0
      %3299 = vmatpush1.bf16.msra.mxu0 0
      %3300 = vmatprep.subr.bf16.mxu0 0
      %3301 = vmatpush1.bf16.msra.mxu0 0
      %3302 = vmatprep.subr.bf16.mxu0 0
      %3303 = vmatpush1.bf16.msra.mxu0 0
      %3304 = vmatprep.subr.bf16.mxu0 0
      %3305 = vmatpush1.bf16.msra.mxu0 0
      %3306 = vmatprep.mubr.bf16.mxu0 0
      %3307 = vmatmul.mubr.bf16.gmra.mrb[0].mxu0 %v3269
      %v3308 = vpop.f32.mrb[0].mxu0
      %v3309 = vadd.f32 %v3261, %v3308
      %v3310 = vpop.f32.mrb[0].mxu0
      %v3311 = vpop.f32.mrb[0].mxu0
      %v3312 = vadd.f32 %v3262, %v3311
      %v3313 = vpop.f32.mrb[0].mxu0
      %3314 = vdwg.mxu0
      %v3315 = vxor.u32 %v3309, 2147483648
      %v3316 = vxor.u32 %v3312, 2147483648
      %v3317 = vmul.f32 %v3315, 1.442695
      %v3318 = vpow.pop %v3317
      %v3319 = vmul.f32 %v3316, 1.442695
      %v3320 = vpow.pop %v3319
      %v3321 = vadd.f32 %v3318, 1.0
      %v3322 = vadd.f32 %v3320, 1.0
      %v3323 = vrcp.pop %v3321
      %v3324 = vmul.f32 1.0, %v3323
      %v3325 = vrcp.pop %v3322
      %v3326 = vmul.f32 1.0, %v3325
      %3328 = vset.pattern.permute.xlu0 0
      %3329 = vperm.xlu0 %3328, %v3324
      %v3330 = vpop.permute.xlu0 %3329
      %3333 = vset.pattern.permute.xlu0 0
      %3334 = vperm.xlu0 %3333, %v3326
      %v3335 = vpop.permute.xlu0 %3334
      %v3337 = vmul.f32 %v3199, %v3330
      %v3338 = vmul.f32 %v3200, %v3330
      %v3339 = vmul.f32 %v3201, %v3335
      %v3340 = vmul.f32 %v3202, %v3335
      %v3341 = vadd.f32 %v3337, %v1909
      %v3342 = vadd.f32 %v3338, %v1910
      %v3343 = vadd.f32 %v3339, %v1911
      %v3344 = vadd.f32 %v3340, %v1912
      %s3345 = scalar_lea.vmem %s366, 32
      %3346 = vst [vmem:[%s3345] sm:$0xff] %v3341
      %3347 = vst [vmem:[%s3345 + $0x8] sm:$0xff] %v3342
      %3348 = vst [vmem:[%s3345 + $0x10] sm:$0xff] %v3343
      %3349 = vst [vmem:[%s3345 + $0x18] sm:$0xff] %v3344
      %s3350 = smul.u32 2, %s21
      %p3351 = scmp.lt.s32.totalorder %s3350, 3
      %s3352 = scalar_select %p3351, %s3350, 3
      %s3353 = smul.addr %s3352, 4
      %s3354 = smul.addr %s3353, 8
      %s3355 = scalar_lea.vmem %s10, %s3354
      // Predicated region
      $region61: #{rfcab_forward.1} parent=59 // pred_check
        %p3356 = pneg %p254
      $region62: #{rfcab_forward.1} parent=59 // pred_check_branch
        %3358 = sbr.rel (%p3356) target = $region64
      $region63: #{rfcab_forward.1} parent=59 // pred_region
        %s3359 = smul.u32 2, %s21
      $region64: #{rfcab_forward.1} parent=59 // pred_fallthru
        _
    $region60: #{rfcab_forward.1} parent=5 // pred_fallthru
      _
    %p3360 = scmp.le.s32.totalorder 2, %s16
    // Predicated region
    $region65: #{rfcab_forward.1} parent=5 // pred_check
      %p3361 = pneg %p3360
    $region66: #{rfcab_forward.1} parent=5 // pred_check_branch
      %3363 = sbr.rel (%p3361) target = $region68
    $region67: #{rfcab_forward.1} parent=5 // pred_region
      %s3364 = ssub.s32 %s16, 2
      // Predicated region
      $region69: #{rfcab_forward.1} parent=67 // pred_check
        %p3365 = pneg %p260
      $region70: #{rfcab_forward.1} parent=67 // pred_check_branch
        %3367 = sbr.rel (%p3365) target = $region72
      $region71: #{rfcab_forward.1} parent=67 // pred_region
        %s3368 = smul.u32 2, %s22
        %p3369 = scmp.lt.s32.totalorder %s3368, 3
        %s3370 = scalar_select %p3369, %s3368, 3
        %s3371 = smul.addr %s3370, 4
        %s3372 = smul.addr %s3371, 8
        %s3373 = scalar_lea.vmem %s10, %s3372
      $region72: #{rfcab_forward.1} parent=67 // pred_fallthru
        _
    $region68: #{rfcab_forward.1} parent=5 // pred_fallthru
      _
  $region6: #{rfcab_forward.1} parent=0 // loop_footer
    %s20 = sadd.s32 1, %s16
  $region7: #{rfcab_forward.1} parent=0 // loop_footer_branch
    %15 = sbr.rel target = $region3
  $region8: #{rfcab_forward.1} parent=0 // loop_exit
    _

</llo_original>
